<compile_context>
chip_gen: v6e
topology: v6e:2x2x1
jax: 0.10.0
libtpu: 0.0.40
codegen_flags: <defaults>
</compile_context>

<pallas_src>
import functools
import math

import jax
import jax.numpy as jnp
from jax.experimental import pallas as pl
from jax.experimental.pallas import tpu as pltpu


def _cross_attn_kernel(*refs, nhead, eps, compute_dtype, approx_recip, has_attn):
    if has_attn:
        (tgt_ref, mem_ref, qpos_ref, pos_ref,
         wqT_ref, wkT_ref, wvT_ref, woT_ref,
         bq_ref, bk_ref, bv_ref, bo_ref, g_ref, beta_ref,
         out_ref, attn_ref,
         q_scr, acc_scr, m_scr, l_scr, attn_scr) = refs
    else:
        (tgt_ref, mem_ref, qpos_ref, pos_ref,
         wqT_ref, wkT_ref, wvT_ref, woT_ref,
         bq_ref, bk_ref, bv_ref, bo_ref, g_ref, beta_ref,
         out_ref,
         q_scr, acc_scr, m_scr, l_scr) = refs
        attn_ref = None
        attn_scr = None

    f32 = jnp.float32
    cd = compute_dtype
    Lq, Bt, D = tgt_ref.shape
    Tk = mem_ref.shape[0]
    H = nhead
    Dh = D // H

    kv = pl.program_id(1)
    nkv = pl.num_programs(1)

    # ---- first kv step of each batch block: project Q once, init accumulators.
    @pl.when(kv == 0)
    def _init():
        q_in = (tgt_ref[...].astype(f32) + qpos_ref[...].astype(f32)).reshape(Lq * Bt, D)
        # nn.Linear y = x @ W.T + b; W.T and the 1/sqrt(Dh) scale are folded host-side.
        q = jnp.dot(q_in.astype(cd), wqT_ref[...], preferred_element_type=f32) + bq_ref[...]
        # one seq-first -> batch-first relayout, done in compute dtype
        q_scr[...] = jnp.transpose(q.astype(cd).reshape(Lq, Bt, D), (1, 0, 2))
        acc_scr[...] = jnp.zeros_like(acc_scr)
        m_scr[...] = jnp.full_like(m_scr, -jnp.inf)
        l_scr[...] = jnp.zeros_like(l_scr)
        if attn_scr is not None:
            attn_scr[...] = jnp.zeros_like(attn_scr)

    # ---- K/V projection for this kv tile (big-M matmuls on the flat token axis).
    mem = mem_ref[...].astype(f32)                                   # (Tk, Bt, D)
    k_in = (mem + pos_ref[...].astype(f32)).reshape(Tk * Bt, D)
    v_in = mem.reshape(Tk * Bt, D)
    k = jnp.dot(k_in.astype(cd), wkT_ref[...], preferred_element_type=f32) + bk_ref[...]
    v = jnp.dot(v_in.astype(cd), wvT_ref[...], preferred_element_type=f32) + bv_ref[...]
    kb = jnp.transpose(k.astype(cd).reshape(Tk, Bt, D), (1, 0, 2))   # (Bt, Tk, D)
    vb = jnp.transpose(v.astype(cd).reshape(Tk, Bt, D), (1, 0, 2))   # (Bt, Tk, D)

    qb = q_scr[...]                                                  # (Bt, Lq, D) in cd

    # ---- per-head online-softmax attention (heads = lane slices, no lane concat).
    for h in range(H):
        sl = slice(h * Dh, (h + 1) * Dh)
        s = jnp.einsum("bqd,bkd->bqk", qb[:, :, sl], kb[:, :, sl],
                       preferred_element_type=f32)                   # (Bt, Lq, Tk)
        m_prev = m_scr[:, :, h:h + 1]                                # (Bt, Lq, 1)
        m_new = jnp.maximum(m_prev, jnp.max(s, axis=-1, keepdims=True))
        alpha = jnp.exp(m_prev - m_new)
        p = jnp.exp(s - m_new)                                       # unnormalized probs
        l_new = alpha * l_scr[:, :, h:h + 1] + jnp.sum(p, axis=-1, keepdims=True)
        pv = jnp.einsum("bqk,bkd->bqd", p.astype(cd), vb[:, :, sl],
                        preferred_element_type=f32)                  # (Bt, Lq, Dh)
        acc_scr[:, :, sl] = alpha * acc_scr[:, :, sl] + pv
        m_scr[:, :, h:h + 1] = m_new
        l_scr[:, :, h:h + 1] = l_new
        if attn_scr is not None:
            # attention-weights mode runs with a single kv tile, so l_new is final;
            # exact reciprocal keeps the returned probabilities properly normalized.
            attn_scr[...] += p * pl.reciprocal(l_new, approx=False)

    # ---- last kv step: normalize, out-projection, residual + LayerNorm, write.
    @pl.when(kv == nkv - 1)
    def _finalize():
        r = pl.reciprocal(l_scr[...], approx=approx_recip)           # (Bt, Lq, H)
        for h in range(H):
            sl = slice(h * Dh, (h + 1) * Dh)
            acc_scr[:, :, sl] = acc_scr[:, :, sl] * r[:, :, h:h + 1]
        o2 = acc_scr[...].astype(cd).reshape(Bt * Lq, D)
        proj = jnp.dot(o2, woT_ref[...], preferred_element_type=f32) + bo_ref[...]
        proj_sf = jnp.transpose(proj.reshape(Bt, Lq, D), (1, 0, 2))  # -> (Lq, Bt, D)

        x = tgt_ref[...].astype(f32) + proj_sf                       # dropout(0) = identity
        mean = jnp.mean(x, axis=-1, keepdims=True)
        var = jnp.mean(jnp.square(x - mean), axis=-1, keepdims=True)
        y = (x - mean) * jax.lax.rsqrt(var + eps) * g_ref[...] + beta_ref[...]
        out_ref[...] = y.astype(out_ref.dtype)
        if attn_ref is not None:
            attn_ref[...] = (attn_scr[...] * (1.0 / H)).astype(attn_ref.dtype)


def cross_attention_layer(tgt, memory, params, *, nhead,
                          query_pos=None, pos=None, eps=1e-5,
                          compute_dtype=jnp.bfloat16, approx_recip=True,
                          return_attn_weights=True, attn_dtype=None,
                          batch_block=None, kv_block=None):
    """tgt: (Lq, B, D), memory: (Lk, B, D). Returns ((Lq, B, D), (B, Lq, Lk) or None)."""
    Lq, B, D = tgt.shape
    Lk, Bm, Dm = memory.shape
    assert (Bm, Dm) == (B, D)
    assert D % nhead == 0
    if query_pos is None:
        query_pos = jnp.zeros_like(tgt)
    if pos is None:
        pos = jnp.zeros_like(memory)

    # Batch blocking: keep >= 2 grid steps when possible so block I/O pipelines and
    # v7x's two TensorCores both get work.  Fail fast on tiling-illegal block sizes.
    if batch_block is None:
        if B > 16 and B % 16 == 0:
            Bt = 16
        elif B > 8 and B % 8 == 0:
            Bt = 8
        else:
            Bt = B
    else:
        Bt = batch_block
    assert B % Bt == 0, "batch_block must divide the batch size"
    assert Bt == B or Bt % 8 == 0, \
        "batch_block must be the full batch or a multiple of 8 ((8,128) tiling)"

    # Lk tiling (flash-style) bounds VMEM for long memories.  Normalized attention
    # weights need the full-Lk softmax -> that mode uses a single kv tile.
    if return_attn_weights:
        Tk = Lk
    elif kv_block is not None:
        Tk = kv_block
    elif Lk <= 512:
        Tk = Lk
    else:
        Tk = Lk
        for cand in (512, 256, 128):
            if Lk % cand == 0:
                Tk = cand
                break
    assert Lk % Tk == 0, "kv_block must divide the memory length"
    nkv = Lk // Tk

    f32 = jnp.float32
    cd = compute_dtype
    out_dtype = tgt.dtype
    # bf16 writeback halves the (B, Lq, Lk) HBM store for the head-averaged weights.
    attn_dtype = jnp.bfloat16 if attn_dtype is None else attn_dtype
    scale = 1.0 / math.sqrt(D // nhead)

    # One-time host-side weight prep: nn.Linear stores (out, in) -> pre-transpose,
    # fold the 1/sqrt(Dh) attention scale into Wq/bq, cast MXU operands to cd.
    wqT = (params["wq"].astype(f32).T * scale).astype(cd)
    wkT = params["wk"].astype(f32).T.astype(cd)
    wvT = params["wv"].astype(f32).T.astype(cd)
    woT = params["wo"].astype(f32).T.astype(cd)
    bq = (params["bq"].astype(f32) * scale).reshape(1, D)
    bk = params["bk"].astype(f32).reshape(1, D)
    bv = params["bv"].astype(f32).reshape(1, D)
    bo = params["bo"].astype(f32).reshape(1, D)
    gamma = params["gamma"].astype(f32).reshape(1, D)
    beta = params["beta"].astype(f32).reshape(1, D)

    grid = (B // Bt, nkv)
    tgt_spec = pl.BlockSpec((Lq, Bt, D), lambda b, k: (0, b, 0))
    mem_spec = pl.BlockSpec((Tk, Bt, D), lambda b, k: (k, b, 0))
    mat_spec = pl.BlockSpec((D, D), lambda b, k: (0, 0))
    vec_spec = pl.BlockSpec((1, D), lambda b, k: (0, 0))

    in_specs = [tgt_spec, mem_spec, tgt_spec, mem_spec,
                mat_spec, mat_spec, mat_spec, mat_spec,
                vec_spec, vec_spec, vec_spec, vec_spec, vec_spec, vec_spec]

    out_shape = [jax.ShapeDtypeStruct((Lq, B, D), out_dtype)]
    out_specs = [pl.BlockSpec((Lq, Bt, D), lambda b, k: (0, b, 0))]
    if return_attn_weights:
        out_shape.append(jax.ShapeDtypeStruct((B, Lq, Lk), attn_dtype))
        out_specs.append(pl.BlockSpec((Bt, Lq, Lk), lambda b, k: (b, 0, 0)))

    scratch_shapes = [pltpu.VMEM((Bt, Lq, D), cd),            # q (batch-first, pre-scaled)
                      pltpu.VMEM((Bt, Lq, D), f32),           # flash numerator accumulator
                      pltpu.VMEM((Bt, Lq, nhead), f32),       # running row max per head
                      pltpu.VMEM((Bt, Lq, nhead), f32)]       # running row sum per head
    if return_attn_weights:
        scratch_shapes.append(pltpu.VMEM((Bt, Lq, Lk), f32))  # head-summed attention probs

    # VMEM budget: double-buffered block I/O + weights + f32 working set, clamped
    # to 75% of physical VMEM (48 MiB on v7x, 96 MiB on v5e/v6e).
    isz = lambda dt: jnp.dtype(dt).itemsize
    blk = (2 * (2 * Lq * Bt * D + 2 * Tk * Bt * D) * isz(tgt.dtype)
           + 2 * Lq * Bt * D * isz(out_dtype))
    if return_attn_weights:
        blk += 2 * Bt * Lq * Lk * isz(attn_dtype)
    wts = 4 * D * D * isz(cd) + 6 * D * 4
    scr = Bt * Lq * D * (isz(cd) + 4) + 2 * Bt * Lq * nhead * 4
    if return_attn_weights:
        scr += Bt * Lq * Lk * 4
    work = 4 * (3 * Tk * Bt * D + 3 * Bt * Lq * Tk + 2 * Bt * Lq * D)
    try:
        cap = int(pltpu.get_tpu_info().vmem_capacity_bytes * 0.75)
    except Exception:
        cap = 96 * 2 ** 20
    vmem_limit = int(min(cap, max(32 * 2 ** 20, 2 * (blk + wts + scr + work))))

    kernel = functools.partial(_cross_attn_kernel, nhead=nhead, eps=eps,
                               compute_dtype=cd, approx_recip=approx_recip,
                               has_attn=return_attn_weights)

    outs = pl.pallas_call(
        kernel,
        out_shape=tuple(out_shape),
        grid=grid,
        in_specs=in_specs,
        out_specs=tuple(out_specs),
        scratch_shapes=scratch_shapes,
        compiler_params=pltpu.CompilerParams(
            dimension_semantics=("parallel", "arbitrary"),
            vmem_limit_bytes=vmem_limit),
    )(tgt, memory, query_pos, pos,
      wqT, wkT, wvT, woT, bq, bk, bv, bo, gamma, beta)

    if return_attn_weights:
        return outs[0], outs[1]
    return outs[0], None


def reference(tgt, memory, params, *, nhead, query_pos=None, pos=None, eps=1e-5):
    """Pure-JAX f32 reference mirroring PyTorch forward_post with dropout=0."""
    Lq, B, D = tgt.shape
    Lk = memory.shape[0]
    Dh = D // nhead
    q_in = tgt + (0.0 if query_pos is None else query_pos)
    k_in = memory + (0.0 if pos is None else pos)

    def proj(x, w, b):
        return jnp.einsum("lbd,ed->lbe", x, w) + b

    q = proj(q_in, params["wq"], params["bq"]) / math.sqrt(Dh)
    k = proj(k_in, params["wk"], params["bk"])
    v = proj(memory, params["wv"], params["bv"])

    def split(x, L):  # (L, B, D) -> (B, H, L, Dh)
        return jnp.transpose(x.reshape(L, B, nhead, Dh), (1, 2, 0, 3))

    qh, kh, vh = split(q, Lq), split(k, Lk), split(v, Lk)
    s = jnp.einsum("bhqd,bhkd->bhqk", qh, kh)
    p = jax.nn.softmax(s, axis=-1)
    o = jnp.einsum("bhqk,bhkd->bhqd", p, vh)                  # (B, H, Lq, Dh)
    o = jnp.transpose(o, (2, 0, 1, 3)).reshape(Lq, B, D)      # (Lq, B, D)
    o = jnp.einsum("lbd,ed->lbe", o, params["wo"]) + params["bo"]

    x = tgt + o
    mean = jnp.mean(x, axis=-1, keepdims=True)
    var = jnp.mean((x - mean) ** 2, axis=-1, keepdims=True)
    y = (x - mean) * jax.lax.rsqrt(var + eps) * params["gamma"] + params["beta"]
    attn = jnp.mean(p, axis=1)                                # (B, Lq, Lk) head-averaged
    return y, attn


if __name__ == "__main__":
    d_model, nhead = 32, 4
    Lq, Lk, B = 8, 16, 2

    key = jax.random.PRNGKey(0)
    keys = jax.random.split(key, 8)

    def xavier(k, shape):
        fan_out, fan_in = shape
        a = math.sqrt(6.0 / (fan_in + fan_out))
        return jax.random.uniform(k, shape, jnp.float32, -a, a)

    # Matches torch init: xavier_uniform_ on dim>1 params; biases / LayerNorm default.
    params = dict(
        wq=xavier(keys[0], (d_model, d_model)),
        wk=xavier(keys[1], (d_model, d_model)),
        wv=xavier(keys[2], (d_model, d_model)),
        wo=xavier(keys[3], (d_model, d_model)),
        bq=jnp.zeros((d_model,), jnp.float32),
        bk=jnp.zeros((d_model,), jnp.float32),
        bv=jnp.zeros((d_model,), jnp.float32),
        bo=jnp.zeros((d_model,), jnp.float32),
        gamma=jnp.ones((d_model,), jnp.float32),
        beta=jnp.zeros((d_model,), jnp.float32),
    )

    tgt = jax.random.normal(keys[4], (Lq, B, d_model), jnp.float32)
    memory = jax.random.normal(keys[5], (Lk, B, d_model), jnp.float32)
    query_pos = jax.random.normal(keys[6], (Lq, B, d_model), jnp.float32)
    pos = jax.random.normal(keys[7], (Lk, B, d_model), jnp.float32)

    ref_out, ref_attn = reference(tgt, memory, params, nhead=nhead,
                                  query_pos=query_pos, pos=pos)

    # 1) Strict correctness: f32 MXU operands, exact reciprocal, f32 attention output.
    out, attn = cross_attention_layer(tgt, memory, params, nhead=nhead,
                                      query_pos=query_pos, pos=pos,
                                      compute_dtype=jnp.float32,
                                      approx_recip=False,
                                      attn_dtype=jnp.float32)
    out, attn = jax.block_until_ready((out, attn))
    assert out.shape == (Lq, B, d_model) and attn.shape == (B, Lq, Lk)
    assert jnp.allclose(out, ref_out, atol=1e-4, rtol=1e-4)
    assert jnp.allclose(attn, ref_attn, atol=1e-4, rtol=1e-4)

    # 2) Flash path: Lk tiled into 2 kv grid steps (online softmax across steps).
    out_kv, no_attn = cross_attention_layer(tgt, memory, params, nhead=nhead,
                                            query_pos=query_pos, pos=pos,
                                            compute_dtype=jnp.float32,
                                            approx_recip=False,
                                            return_attn_weights=False,
                                            kv_block=8)
    out_kv = jax.block_until_ready(out_kv)
    assert no_attn is None
    assert jnp.allclose(out_kv, ref_out, atol=1e-4, rtol=1e-4)

    # 3) Performance mode: bf16 MXU operands (f32 accumulate), approx reciprocal,
    #    bf16 attention-weights writeback.
    out_bf, attn_bf = cross_attention_layer(tgt, memory, params, nhead=nhead,
                                            query_pos=query_pos, pos=pos)
    out_bf, attn_bf = jax.block_until_ready((out_bf, attn_bf))
    assert attn_bf.dtype == jnp.bfloat16
    assert jnp.allclose(out_bf, ref_out, atol=1e-1, rtol=1e-1)
    assert jnp.allclose(attn_bf.astype(jnp.float32), ref_attn, atol=6e-2, rtol=6e-2)

    print("KERNEL_OK")
</pallas_src>

<mosaic_0001>
module attributes {stable_mosaic.version = 11 : i64} {
  func.func @_cross_attn_kernel(%arg0: i32, %arg1: i32, %arg2: memref<8x2x32xf32, #tpu.memory_space<vmem>>, %arg3: memref<16x2x32xf32, #tpu.memory_space<vmem>>, %arg4: memref<8x2x32xf32, #tpu.memory_space<vmem>>, %arg5: memref<16x2x32xf32, #tpu.memory_space<vmem>>, %arg6: memref<32x32xf32, #tpu.memory_space<vmem>>, %arg7: memref<32x32xf32, #tpu.memory_space<vmem>>, %arg8: memref<32x32xf32, #tpu.memory_space<vmem>>, %arg9: memref<32x32xf32, #tpu.memory_space<vmem>>, %arg10: memref<1x32xf32, #tpu.memory_space<vmem>>, %arg11: memref<1x32xf32, #tpu.memory_space<vmem>>, %arg12: memref<1x32xf32, #tpu.memory_space<vmem>>, %arg13: memref<1x32xf32, #tpu.memory_space<vmem>>, %arg14: memref<1x32xf32, #tpu.memory_space<vmem>>, %arg15: memref<1x32xf32, #tpu.memory_space<vmem>>, %arg16: memref<8x2x32xf32, #tpu.memory_space<vmem>>, %arg17: memref<2x8x16xf32, #tpu.memory_space<vmem>>, %arg18: memref<2x8x32xf32, #tpu.memory_space<vmem>>, %arg19: memref<2x8x32xf32, #tpu.memory_space<vmem>>, %arg20: memref<2x8x4xf32, #tpu.memory_space<vmem>>, %arg21: memref<2x8x4xf32, #tpu.memory_space<vmem>>, %arg22: memref<2x8x16xf32, #tpu.memory_space<vmem>>) attributes {dimension_semantics = [#tpu.dimension_semantics<parallel>, #tpu.dimension_semantics<arbitrary>], iteration_bounds = array<i64: 1, 1>, scalar_prefetch = 0 : i64, scratch_operands = 5 : i64, tpu.core_type = #tpu.core_type<tc>, window_params = [{transform_indices = @transform_0, window_bounds = array<i64: 8, 2, 32>}, {transform_indices = @transform_1, window_bounds = array<i64: 16, 2, 32>}, {transform_indices = @transform_2, window_bounds = array<i64: 8, 2, 32>}, {transform_indices = @transform_3, window_bounds = array<i64: 16, 2, 32>}, {pipeline_mode = #tpu.pipeline_mode<synchronous>, transform_indices = @transform_4, window_bounds = array<i64: 32, 32>}, {pipeline_mode = #tpu.pipeline_mode<synchronous>, transform_indices = @transform_5, window_bounds = array<i64: 32, 32>}, {pipeline_mode = #tpu.pipeline_mode<synchronous>, transform_indices = @transform_6, window_bounds = array<i64: 32, 32>}, {pipeline_mode = #tpu.pipeline_mode<synchronous>, transform_indices = @transform_7, window_bounds = array<i64: 32, 32>}, {pipeline_mode = #tpu.pipeline_mode<synchronous>, transform_indices = @transform_8, window_bounds = array<i64: 1, 32>}, {pipeline_mode = #tpu.pipeline_mode<synchronous>, transform_indices = @transform_9, window_bounds = array<i64: 1, 32>}, {pipeline_mode = #tpu.pipeline_mode<synchronous>, transform_indices = @transform_10, window_bounds = array<i64: 1, 32>}, {pipeline_mode = #tpu.pipeline_mode<synchronous>, transform_indices = @transform_11, window_bounds = array<i64: 1, 32>}, {pipeline_mode = #tpu.pipeline_mode<synchronous>, transform_indices = @transform_12, window_bounds = array<i64: 1, 32>}, {pipeline_mode = #tpu.pipeline_mode<synchronous>, transform_indices = @transform_13, window_bounds = array<i64: 1, 32>}, {transform_indices = @transform_14, window_bounds = array<i64: 8, 2, 32>}, {transform_indices = @transform_15, window_bounds = array<i64: 2, 8, 16>}]} {
    %c0_i32 = arith.constant 0 : i32
    %0 = arith.cmpi eq, %arg1, %c0_i32 : i32
    %1 = arith.extui %0 : i1 to i32
    %c0_i32_0 = arith.constant 0 : i32
    %2 = arith.cmpi ne, %1, %c0_i32_0 : i32
    scf.if %2 {
      %c0_126 = arith.constant 0 : index
      %c0_127 = arith.constant 0 : index
      %c0_128 = arith.constant 0 : index
      %154 = vector.load %arg2[%c0_126, %c0_127, %c0_128] : memref<8x2x32xf32, #tpu.memory_space<vmem>>, vector<8x2x32xf32>
      %c0_129 = arith.constant 0 : index
      %c0_130 = arith.constant 0 : index
      %c0_131 = arith.constant 0 : index
      %155 = vector.load %arg4[%c0_129, %c0_130, %c0_131] : memref<8x2x32xf32, #tpu.memory_space<vmem>>, vector<8x2x32xf32>
      %156 = arith.addf %154, %155 : vector<8x2x32xf32>
      %157 = vector.shape_cast %156 : vector<8x2x32xf32> to vector<16x32xf32>
      %c0_132 = arith.constant 0 : index
      %c0_133 = arith.constant 0 : index
      %158 = vector.load %arg6[%c0_132, %c0_133] : memref<32x32xf32, #tpu.memory_space<vmem>>, vector<32x32xf32>
      %cst_134 = arith.constant dense<0.000000e+00> : vector<16x32xf32>
      %159 = tpu.matmul %157, %158, %cst_134 {dimension_numbers = #tpu.dot_dimension_numbers<[1], [0], [0], [1], [0, 0, 1, 1], [], []>} : vector<16x32xf32>, vector<32x32xf32>, vector<16x32xf32> -> vector<16x32xf32>
      %c0_135 = arith.constant 0 : index
      %c0_136 = arith.constant 0 : index
      %160 = vector.load %arg10[%c0_135, %c0_136] : memref<1x32xf32, #tpu.memory_space<vmem>>, vector<1x32xf32>
      %161 = vector.broadcast %160 : vector<1x32xf32> to vector<16x32xf32>
      %162 = arith.addf %159, %161 : vector<16x32xf32>
      %163 = vector.shape_cast %162 : vector<16x32xf32> to vector<8x2x32xf32>
      %164 = tpu.transpose %163, [1, 0, 2] : vector<8x2x32xf32> -> vector<2x8x32xf32>
      %c0_137 = arith.constant 0 : index
      %c0_138 = arith.constant 0 : index
      %c0_139 = arith.constant 0 : index
      %165 = vector.load %arg18[%c0_137, %c0_138, %c0_139] : memref<2x8x32xf32, #tpu.memory_space<vmem>>, vector<2x8x32xf32>
      tpu.vector_store %arg18[%c0_137, %c0_138, %c0_139], %164 {strides = array<i32>} : memref<2x8x32xf32, #tpu.memory_space<vmem>>, vector<2x8x32xf32>,
      %cst_140 = arith.constant 0.000000e+00 : f32
      %166 = vector.broadcast %cst_140 : f32 to vector<2x8x32xf32>
      %c0_141 = arith.constant 0 : index
      %c0_142 = arith.constant 0 : index
      %c0_143 = arith.constant 0 : index
      %167 = vector.load %arg19[%c0_141, %c0_142, %c0_143] : memref<2x8x32xf32, #tpu.memory_space<vmem>>, vector<2x8x32xf32>
      tpu.vector_store %arg19[%c0_141, %c0_142, %c0_143], %166 {strides = array<i32>} : memref<2x8x32xf32, #tpu.memory_space<vmem>>, vector<2x8x32xf32>,
      %cst_144 = arith.constant 0xFF800000 : f32
      %168 = vector.broadcast %cst_144 : f32 to vector<2x8x4xf32>
      %c0_145 = arith.constant 0 : index
      %c0_146 = arith.constant 0 : index
      %c0_147 = arith.constant 0 : index
      %169 = vector.load %arg20[%c0_145, %c0_146, %c0_147] : memref<2x8x4xf32, #tpu.memory_space<vmem>>, vector<2x8x4xf32>
      tpu.vector_store %arg20[%c0_145, %c0_146, %c0_147], %168 {strides = array<i32>} : memref<2x8x4xf32, #tpu.memory_space<vmem>>, vector<2x8x4xf32>,
      %cst_148 = arith.constant 0.000000e+00 : f32
      %170 = vector.broadcast %cst_148 : f32 to vector<2x8x4xf32>
      %c0_149 = arith.constant 0 : index
      %c0_150 = arith.constant 0 : index
      %c0_151 = arith.constant 0 : index
      %171 = vector.load %arg21[%c0_149, %c0_150, %c0_151] : memref<2x8x4xf32, #tpu.memory_space<vmem>>, vector<2x8x4xf32>
      tpu.vector_store %arg21[%c0_149, %c0_150, %c0_151], %170 {strides = array<i32>} : memref<2x8x4xf32, #tpu.memory_space<vmem>>, vector<2x8x4xf32>,
      %cst_152 = arith.constant 0.000000e+00 : f32
      %172 = vector.broadcast %cst_152 : f32 to vector<2x8x16xf32>
      %c0_153 = arith.constant 0 : index
      %c0_154 = arith.constant 0 : index
      %c0_155 = arith.constant 0 : index
      %173 = vector.load %arg22[%c0_153, %c0_154, %c0_155] : memref<2x8x16xf32, #tpu.memory_space<vmem>>, vector<2x8x16xf32>
      tpu.vector_store %arg22[%c0_153, %c0_154, %c0_155], %172 {strides = array<i32>} : memref<2x8x16xf32, #tpu.memory_space<vmem>>, vector<2x8x16xf32>,
    } else {
    }
    %c0 = arith.constant 0 : index
    %c0_1 = arith.constant 0 : index
    %c0_2 = arith.constant 0 : index
    %3 = vector.load %arg3[%c0, %c0_1, %c0_2] : memref<16x2x32xf32, #tpu.memory_space<vmem>>, vector<16x2x32xf32>
    %c0_3 = arith.constant 0 : index
    %c0_4 = arith.constant 0 : index
    %c0_5 = arith.constant 0 : index
    %4 = vector.load %arg5[%c0_3, %c0_4, %c0_5] : memref<16x2x32xf32, #tpu.memory_space<vmem>>, vector<16x2x32xf32>
    %5 = arith.addf %3, %4 : vector<16x2x32xf32>
    %6 = vector.shape_cast %5 : vector<16x2x32xf32> to vector<32x32xf32>
    %7 = vector.shape_cast %3 : vector<16x2x32xf32> to vector<32x32xf32>
    %c0_6 = arith.constant 0 : index
    %c0_7 = arith.constant 0 : index
    %8 = vector.load %arg7[%c0_6, %c0_7] : memref<32x32xf32, #tpu.memory_space<vmem>>, vector<32x32xf32>
    %cst = arith.constant dense<0.000000e+00> : vector<32x32xf32>
    %9 = tpu.matmul %6, %8, %cst {dimension_numbers = #tpu.dot_dimension_numbers<[1], [0], [0], [1], [0, 0, 1, 1], [], []>} : vector<32x32xf32>, vector<32x32xf32>, vector<32x32xf32> -> vector<32x32xf32>
    %c0_8 = arith.constant 0 : index
    %c0_9 = arith.constant 0 : index
    %10 = vector.load %arg11[%c0_8, %c0_9] : memref<1x32xf32, #tpu.memory_space<vmem>>, vector<1x32xf32>
    %11 = vector.broadcast %10 : vector<1x32xf32> to vector<32x32xf32>
    %12 = arith.addf %9, %11 : vector<32x32xf32>
    %c0_10 = arith.constant 0 : index
    %c0_11 = arith.constant 0 : index
    %13 = vector.load %arg8[%c0_10, %c0_11] : memref<32x32xf32, #tpu.memory_space<vmem>>, vector<32x32xf32>
    %cst_12 = arith.constant dense<0.000000e+00> : vector<32x32xf32>
    %14 = tpu.matmul %7, %13, %cst_12 {dimension_numbers = #tpu.dot_dimension_numbers<[1], [0], [0], [1], [0, 0, 1, 1], [], []>} : vector<32x32xf32>, vector<32x32xf32>, vector<32x32xf32> -> vector<32x32xf32>
    %c0_13 = arith.constant 0 : index
    %c0_14 = arith.constant 0 : index
    %15 = vector.load %arg12[%c0_13, %c0_14] : memref<1x32xf32, #tpu.memory_space<vmem>>, vector<1x32xf32>
    %16 = vector.broadcast %15 : vector<1x32xf32> to vector<32x32xf32>
    %17 = arith.addf %14, %16 : vector<32x32xf32>
    %18 = vector.shape_cast %12 : vector<32x32xf32> to vector<16x2x32xf32>
    %19 = tpu.transpose %18, [1, 0, 2] : vector<16x2x32xf32> -> vector<2x16x32xf32>
    %20 = vector.shape_cast %17 : vector<32x32xf32> to vector<16x2x32xf32>
    %21 = tpu.transpose %20, [1, 0, 2] : vector<16x2x32xf32> -> vector<2x16x32xf32>
    %c0_15 = arith.constant 0 : index
    %c0_16 = arith.constant 0 : index
    %c0_17 = arith.constant 0 : index
    %22 = vector.load %arg18[%c0_15, %c0_16, %c0_17] : memref<2x8x32xf32, #tpu.memory_space<vmem>>, vector<2x8x32xf32>
    %23 = vector.extract_strided_slice %22 {offsets = [0, 0, 0], sizes = [2, 8, 8], strides = [1, 1, 1]} : vector<2x8x32xf32> to vector<2x8x8xf32>
    %24 = vector.extract_strided_slice %19 {offsets = [0, 0, 0], sizes = [2, 16, 8], strides = [1, 1, 1]} : vector<2x16x32xf32> to vector<2x16x8xf32>
    "tpu.trace_start"() <{level = 10 : i32, message = "bqd,bkd->bqk"}> : () -> ()
    %cst_18 = arith.constant dense<0.000000e+00> : vector<2x8x16xf32>
    %25 = tpu.matmul %23, %24, %cst_18 {dimension_numbers = #tpu.dot_dimension_numbers<[2], [2], [1], [1], [0, 0, 0, 1, 1, 1], [0], [0]>} : vector<2x8x8xf32>, vector<2x16x8xf32>, vector<2x8x16xf32> -> vector<2x8x16xf32>
    "tpu.trace_stop"() : () -> ()
    %c0_19 = arith.constant 0 : index
    %c0_20 = arith.constant 0 : index
    %c0_21 = arith.constant 0 : index
    %26 = vector.load %arg20[%c0_19, %c0_20, %c0_21] : memref<2x8x4xf32, #tpu.memory_space<vmem>>, vector<2x8x1xf32>
    %cst_22 = arith.constant dense<0xFF800000> : vector<2x8xf32>
    %27 = vector.multi_reduction <maximumf>, %25, %cst_22 [2] : vector<2x8x16xf32> to vector<2x8xf32>
    %28 = vector.shape_cast %27 : vector<2x8xf32> to vector<2x8x1xf32>
    %29 = arith.maximumf %26, %28 : vector<2x8x1xf32>
    %30 = arith.subf %26, %29 : vector<2x8x1xf32>
    %31 = math.exp %30 : vector<2x8x1xf32>
    %32 = vector.broadcast %29 : vector<2x8x1xf32> to vector<2x8x16xf32>
    %33 = arith.subf %25, %32 : vector<2x8x16xf32>
    %34 = math.exp %33 : vector<2x8x16xf32>
    %c0_23 = arith.constant 0 : index
    %c0_24 = arith.constant 0 : index
    %c0_25 = arith.constant 0 : index
    %35 = vector.load %arg21[%c0_23, %c0_24, %c0_25] : memref<2x8x4xf32, #tpu.memory_space<vmem>>, vector<2x8x1xf32>
    %36 = arith.mulf %31, %35 : vector<2x8x1xf32>
    %cst_26 = arith.constant dense<0.000000e+00> : vector<2x8xf32>
    %37 = vector.multi_reduction <add>, %34, %cst_26 [2] : vector<2x8x16xf32> to vector<2x8xf32>
    %38 = vector.shape_cast %37 : vector<2x8xf32> to vector<2x8x1xf32>
    %39 = arith.addf %36, %38 : vector<2x8x1xf32>
    %40 = vector.extract_strided_slice %21 {offsets = [0, 0, 0], sizes = [2, 16, 8], strides = [1, 1, 1]} : vector<2x16x32xf32> to vector<2x16x8xf32>
    "tpu.trace_start"() <{level = 10 : i32, message = "bqk,bkd->bqd"}> : () -> ()
    %cst_27 = arith.constant dense<0.000000e+00> : vector<2x8x8xf32>
    %41 = tpu.matmul %34, %40, %cst_27 {dimension_numbers = #tpu.dot_dimension_numbers<[2], [1], [1], [2], [0, 0, 0, 1, 1, 2], [0], [0]>} : vector<2x8x16xf32>, vector<2x16x8xf32>, vector<2x8x8xf32> -> vector<2x8x8xf32>
    "tpu.trace_stop"() : () -> ()
    %c0_28 = arith.constant 0 : index
    %c0_29 = arith.constant 0 : index
    %c0_30 = arith.constant 0 : index
    %42 = vector.load %arg19[%c0_28, %c0_29, %c0_30] : memref<2x8x32xf32, #tpu.memory_space<vmem>>, vector<2x8x8xf32>
    %43 = vector.broadcast %31 : vector<2x8x1xf32> to vector<2x8x8xf32>
    %44 = arith.mulf %43, %42 : vector<2x8x8xf32>
    %45 = arith.addf %44, %41 : vector<2x8x8xf32>
    %c0_31 = arith.constant 0 : index
    %c0_32 = arith.constant 0 : index
    %c0_33 = arith.constant 0 : index
    %46 = vector.load %arg19[%c0_31, %c0_32, %c0_33] : memref<2x8x32xf32, #tpu.memory_space<vmem>>, vector<2x8x8xf32>
    tpu.vector_store %arg19[%c0_31, %c0_32, %c0_33], %45 {strides = array<i32>} : memref<2x8x32xf32, #tpu.memory_space<vmem>>, vector<2x8x8xf32>,
    %c0_34 = arith.constant 0 : index
    %c0_35 = arith.constant 0 : index
    %c0_36 = arith.constant 0 : index
    %47 = vector.load %arg20[%c0_34, %c0_35, %c0_36] : memref<2x8x4xf32, #tpu.memory_space<vmem>>, vector<2x8x1xf32>
    tpu.vector_store %arg20[%c0_34, %c0_35, %c0_36], %29 {strides = array<i32>} : memref<2x8x4xf32, #tpu.memory_space<vmem>>, vector<2x8x1xf32>,
    %c0_37 = arith.constant 0 : index
    %c0_38 = arith.constant 0 : index
    %c0_39 = arith.constant 0 : index
    %48 = vector.load %arg21[%c0_37, %c0_38, %c0_39] : memref<2x8x4xf32, #tpu.memory_space<vmem>>, vector<2x8x1xf32>
    tpu.vector_store %arg21[%c0_37, %c0_38, %c0_39], %39 {strides = array<i32>} : memref<2x8x4xf32, #tpu.memory_space<vmem>>, vector<2x8x1xf32>,
    %c0_40 = arith.constant 0 : index
    %c0_41 = arith.constant 0 : index
    %c0_42 = arith.constant 0 : index
    %49 = vector.load %arg22[%c0_40, %c0_41, %c0_42] : memref<2x8x16xf32, #tpu.memory_space<vmem>>, vector<2x8x16xf32>
    %50 = tpu.reciprocal %39 : vector<2x8x1xf32> -> vector<2x8x1xf32>
    %51 = vector.broadcast %50 : vector<2x8x1xf32> to vector<2x8x16xf32>
    %52 = arith.mulf %34, %51 : vector<2x8x16xf32>
    %53 = arith.addf %49, %52 : vector<2x8x16xf32>
    %c0_43 = arith.constant 0 : index
    %c0_44 = arith.constant 0 : index
    %c0_45 = arith.constant 0 : index
    %54 = vector.load %arg22[%c0_43, %c0_44, %c0_45] : memref<2x8x16xf32, #tpu.memory_space<vmem>>, vector<2x8x16xf32>
    tpu.vector_store %arg22[%c0_43, %c0_44, %c0_45], %53 {strides = array<i32>} : memref<2x8x16xf32, #tpu.memory_space<vmem>>, vector<2x8x16xf32>,
    %55 = vector.extract_strided_slice %22 {offsets = [0, 0, 8], sizes = [2, 8, 8], strides = [1, 1, 1]} : vector<2x8x32xf32> to vector<2x8x8xf32>
    %56 = vector.extract_strided_slice %19 {offsets = [0, 0, 8], sizes = [2, 16, 8], strides = [1, 1, 1]} : vector<2x16x32xf32> to vector<2x16x8xf32>
    "tpu.trace_start"() <{level = 10 : i32, message = "bqd,bkd->bqk"}> : () -> ()
    %cst_46 = arith.constant dense<0.000000e+00> : vector<2x8x16xf32>
    %57 = tpu.matmul %55, %56, %cst_46 {dimension_numbers = #tpu.dot_dimension_numbers<[2], [2], [1], [1], [0, 0, 0, 1, 1, 1], [0], [0]>} : vector<2x8x8xf32>, vector<2x16x8xf32>, vector<2x8x16xf32> -> vector<2x8x16xf32>
    "tpu.trace_stop"() : () -> ()
    %c0_47 = arith.constant 0 : index
    %c0_48 = arith.constant 0 : index
    %c1 = arith.constant 1 : index
    %58 = vector.load %arg20[%c0_47, %c0_48, %c1] : memref<2x8x4xf32, #tpu.memory_space<vmem>>, vector<2x8x1xf32>
    %cst_49 = arith.constant dense<0xFF800000> : vector<2x8xf32>
    %59 = vector.multi_reduction <maximumf>, %57, %cst_49 [2] : vector<2x8x16xf32> to vector<2x8xf32>
    %60 = vector.shape_cast %59 : vector<2x8xf32> to vector<2x8x1xf32>
    %61 = arith.maximumf %58, %60 : vector<2x8x1xf32>
    %62 = arith.subf %58, %61 : vector<2x8x1xf32>
    %63 = math.exp %62 : vector<2x8x1xf32>
    %64 = vector.broadcast %61 : vector<2x8x1xf32> to vector<2x8x16xf32>
    %65 = arith.subf %57, %64 : vector<2x8x16xf32>
    %66 = math.exp %65 : vector<2x8x16xf32>
    %c0_50 = arith.constant 0 : index
    %c0_51 = arith.constant 0 : index
    %c1_52 = arith.constant 1 : index
    %67 = vector.load %arg21[%c0_50, %c0_51, %c1_52] : memref<2x8x4xf32, #tpu.memory_space<vmem>>, vector<2x8x1xf32>
    %68 = arith.mulf %63, %67 : vector<2x8x1xf32>
    %cst_53 = arith.constant dense<0.000000e+00> : vector<2x8xf32>
    %69 = vector.multi_reduction <add>, %66, %cst_53 [2] : vector<2x8x16xf32> to vector<2x8xf32>
    %70 = vector.shape_cast %69 : vector<2x8xf32> to vector<2x8x1xf32>
    %71 = arith.addf %68, %70 : vector<2x8x1xf32>
    %72 = vector.extract_strided_slice %21 {offsets = [0, 0, 8], sizes = [2, 16, 8], strides = [1, 1, 1]} : vector<2x16x32xf32> to vector<2x16x8xf32>
    "tpu.trace_start"() <{level = 10 : i32, message = "bqk,bkd->bqd"}> : () -> ()
    %cst_54 = arith.constant dense<0.000000e+00> : vector<2x8x8xf32>
    %73 = tpu.matmul %66, %72, %cst_54 {dimension_numbers = #tpu.dot_dimension_numbers<[2], [1], [1], [2], [0, 0, 0, 1, 1, 2], [0], [0]>} : vector<2x8x16xf32>, vector<2x16x8xf32>, vector<2x8x8xf32> -> vector<2x8x8xf32>
    "tpu.trace_stop"() : () -> ()
    %c0_55 = arith.constant 0 : index
    %c0_56 = arith.constant 0 : index
    %c8 = arith.constant 8 : index
    %74 = vector.load %arg19[%c0_55, %c0_56, %c8] : memref<2x8x32xf32, #tpu.memory_space<vmem>>, vector<2x8x8xf32>
    %75 = vector.broadcast %63 : vector<2x8x1xf32> to vector<2x8x8xf32>
    %76 = arith.mulf %75, %74 : vector<2x8x8xf32>
    %77 = arith.addf %76, %73 : vector<2x8x8xf32>
    %c0_57 = arith.constant 0 : index
    %c0_58 = arith.constant 0 : index
    %c8_59 = arith.constant 8 : index
    %78 = vector.load %arg19[%c0_57, %c0_58, %c8_59] : memref<2x8x32xf32, #tpu.memory_space<vmem>>, vector<2x8x8xf32>
    tpu.vector_store %arg19[%c0_57, %c0_58, %c8_59], %77 {strides = array<i32>} : memref<2x8x32xf32, #tpu.memory_space<vmem>>, vector<2x8x8xf32>,
    %c0_60 = arith.constant 0 : index
    %c0_61 = arith.constant 0 : index
    %c1_62 = arith.constant 1 : index
    %79 = vector.load %arg20[%c0_60, %c0_61, %c1_62] : memref<2x8x4xf32, #tpu.memory_space<vmem>>, vector<2x8x1xf32>
    tpu.vector_store %arg20[%c0_60, %c0_61, %c1_62], %61 {strides = array<i32>} : memref<2x8x4xf32, #tpu.memory_space<vmem>>, vector<2x8x1xf32>,
    %c0_63 = arith.constant 0 : index
    %c0_64 = arith.constant 0 : index
    %c1_65 = arith.constant 1 : index
    %80 = vector.load %arg21[%c0_63, %c0_64, %c1_65] : memref<2x8x4xf32, #tpu.memory_space<vmem>>, vector<2x8x1xf32>
    tpu.vector_store %arg21[%c0_63, %c0_64, %c1_65], %71 {strides = array<i32>} : memref<2x8x4xf32, #tpu.memory_space<vmem>>, vector<2x8x1xf32>,
    %c0_66 = arith.constant 0 : index
    %c0_67 = arith.constant 0 : index
    %c0_68 = arith.constant 0 : index
    %81 = vector.load %arg22[%c0_66, %c0_67, %c0_68] : memref<2x8x16xf32, #tpu.memory_space<vmem>>, vector<2x8x16xf32>
    %82 = tpu.reciprocal %71 : vector<2x8x1xf32> -> vector<2x8x1xf32>
    %83 = vector.broadcast %82 : vector<2x8x1xf32> to vector<2x8x16xf32>
    %84 = arith.mulf %66, %83 : vector<2x8x16xf32>
    %85 = arith.addf %81, %84 : vector<2x8x16xf32>
    %c0_69 = arith.constant 0 : index
    %c0_70 = arith.constant 0 : index
    %c0_71 = arith.constant 0 : index
    %86 = vector.load %arg22[%c0_69, %c0_70, %c0_71] : memref<2x8x16xf32, #tpu.memory_space<vmem>>, vector<2x8x16xf32>
    tpu.vector_store %arg22[%c0_69, %c0_70, %c0_71], %85 {strides = array<i32>} : memref<2x8x16xf32, #tpu.memory_space<vmem>>, vector<2x8x16xf32>,
    %87 = vector.extract_strided_slice %22 {offsets = [0, 0, 16], sizes = [2, 8, 8], strides = [1, 1, 1]} : vector<2x8x32xf32> to vector<2x8x8xf32>
    %88 = vector.extract_strided_slice %19 {offsets = [0, 0, 16], sizes = [2, 16, 8], strides = [1, 1, 1]} : vector<2x16x32xf32> to vector<2x16x8xf32>
    "tpu.trace_start"() <{level = 10 : i32, message = "bqd,bkd->bqk"}> : () -> ()
    %cst_72 = arith.constant dense<0.000000e+00> : vector<2x8x16xf32>
    %89 = tpu.matmul %87, %88, %cst_72 {dimension_numbers = #tpu.dot_dimension_numbers<[2], [2], [1], [1], [0, 0, 0, 1, 1, 1], [0], [0]>} : vector<2x8x8xf32>, vector<2x16x8xf32>, vector<2x8x16xf32> -> vector<2x8x16xf32>
    "tpu.trace_stop"() : () -> ()
    %c0_73 = arith.constant 0 : index
    %c0_74 = arith.constant 0 : index
    %c2 = arith.constant 2 : index
    %90 = vector.load %arg20[%c0_73, %c0_74, %c2] : memref<2x8x4xf32, #tpu.memory_space<vmem>>, vector<2x8x1xf32>
    %cst_75 = arith.constant dense<0xFF800000> : vector<2x8xf32>
    %91 = vector.multi_reduction <maximumf>, %89, %cst_75 [2] : vector<2x8x16xf32> to vector<2x8xf32>
    %92 = vector.shape_cast %91 : vector<2x8xf32> to vector<2x8x1xf32>
    %93 = arith.maximumf %90, %92 : vector<2x8x1xf32>
    %94 = arith.subf %90, %93 : vector<2x8x1xf32>
    %95 = math.exp %94 : vector<2x8x1xf32>
    %96 = vector.broadcast %93 : vector<2x8x1xf32> to vector<2x8x16xf32>
    %97 = arith.subf %89, %96 : vector<2x8x16xf32>
    %98 = math.exp %97 : vector<2x8x16xf32>
    %c0_76 = arith.constant 0 : index
    %c0_77 = arith.constant 0 : index
    %c2_78 = arith.constant 2 : index
    %99 = vector.load %arg21[%c0_76, %c0_77, %c2_78] : memref<2x8x4xf32, #tpu.memory_space<vmem>>, vector<2x8x1xf32>
    %100 = arith.mulf %95, %99 : vector<2x8x1xf32>
    %cst_79 = arith.constant dense<0.000000e+00> : vector<2x8xf32>
    %101 = vector.multi_reduction <add>, %98, %cst_79 [2] : vector<2x8x16xf32> to vector<2x8xf32>
    %102 = vector.shape_cast %101 : vector<2x8xf32> to vector<2x8x1xf32>
    %103 = arith.addf %100, %102 : vector<2x8x1xf32>
    %104 = vector.extract_strided_slice %21 {offsets = [0, 0, 16], sizes = [2, 16, 8], strides = [1, 1, 1]} : vector<2x16x32xf32> to vector<2x16x8xf32>
    "tpu.trace_start"() <{level = 10 : i32, message = "bqk,bkd->bqd"}> : () -> ()
    %cst_80 = arith.constant dense<0.000000e+00> : vector<2x8x8xf32>
    %105 = tpu.matmul %98, %104, %cst_80 {dimension_numbers = #tpu.dot_dimension_numbers<[2], [1], [1], [2], [0, 0, 0, 1, 1, 2], [0], [0]>} : vector<2x8x16xf32>, vector<2x16x8xf32>, vector<2x8x8xf32> -> vector<2x8x8xf32>
    "tpu.trace_stop"() : () -> ()
    %c0_81 = arith.constant 0 : index
    %c0_82 = arith.constant 0 : index
    %c16 = arith.constant 16 : index
    %106 = vector.load %arg19[%c0_81, %c0_82, %c16] : memref<2x8x32xf32, #tpu.memory_space<vmem>>, vector<2x8x8xf32>
    %107 = vector.broadcast %95 : vector<2x8x1xf32> to vector<2x8x8xf32>
    %108 = arith.mulf %107, %106 : vector<2x8x8xf32>
    %109 = arith.addf %108, %105 : vector<2x8x8xf32>
    %c0_83 = arith.constant 0 : index
    %c0_84 = arith.constant 0 : index
    %c16_85 = arith.constant 16 : index
    %110 = vector.load %arg19[%c0_83, %c0_84, %c16_85] : memref<2x8x32xf32, #tpu.memory_space<vmem>>, vector<2x8x8xf32>
    tpu.vector_store %arg19[%c0_83, %c0_84, %c16_85], %109 {strides = array<i32>} : memref<2x8x32xf32, #tpu.memory_space<vmem>>, vector<2x8x8xf32>,
    %c0_86 = arith.constant 0 : index
    %c0_87 = arith.constant 0 : index
    %c2_88 = arith.constant 2 : index
    %111 = vector.load %arg20[%c0_86, %c0_87, %c2_88] : memref<2x8x4xf32, #tpu.memory_space<vmem>>, vector<2x8x1xf32>
    tpu.vector_store %arg20[%c0_86, %c0_87, %c2_88], %93 {strides = array<i32>} : memref<2x8x4xf32, #tpu.memory_space<vmem>>, vector<2x8x1xf32>,
    %c0_89 = arith.constant 0 : index
    %c0_90 = arith.constant 0 : index
    %c2_91 = arith.constant 2 : index
    %112 = vector.load %arg21[%c0_89, %c0_90, %c2_91] : memref<2x8x4xf32, #tpu.memory_space<vmem>>, vector<2x8x1xf32>
    tpu.vector_store %arg21[%c0_89, %c0_90, %c2_91], %103 {strides = array<i32>} : memref<2x8x4xf32, #tpu.memory_space<vmem>>, vector<2x8x1xf32>,
    %c0_92 = arith.constant 0 : index
    %c0_93 = arith.constant 0 : index
    %c0_94 = arith.constant 0 : index
    %113 = vector.load %arg22[%c0_92, %c0_93, %c0_94] : memref<2x8x16xf32, #tpu.memory_space<vmem>>, vector<2x8x16xf32>
    %114 = tpu.reciprocal %103 : vector<2x8x1xf32> -> vector<2x8x1xf32>
    %115 = vector.broadcast %114 : vector<2x8x1xf32> to vector<2x8x16xf32>
    %116 = arith.mulf %98, %115 : vector<2x8x16xf32>
    %117 = arith.addf %113, %116 : vector<2x8x16xf32>
    %c0_95 = arith.constant 0 : index
    %c0_96 = arith.constant 0 : index
    %c0_97 = arith.constant 0 : index
    %118 = vector.load %arg22[%c0_95, %c0_96, %c0_97] : memref<2x8x16xf32, #tpu.memory_space<vmem>>, vector<2x8x16xf32>
    tpu.vector_store %arg22[%c0_95, %c0_96, %c0_97], %117 {strides = array<i32>} : memref<2x8x16xf32, #tpu.memory_space<vmem>>, vector<2x8x16xf32>,
    %119 = vector.extract_strided_slice %22 {offsets = [0, 0, 24], sizes = [2, 8, 8], strides = [1, 1, 1]} : vector<2x8x32xf32> to vector<2x8x8xf32>
    %120 = vector.extract_strided_slice %19 {offsets = [0, 0, 24], sizes = [2, 16, 8], strides = [1, 1, 1]} : vector<2x16x32xf32> to vector<2x16x8xf32>
    "tpu.trace_start"() <{level = 10 : i32, message = "bqd,bkd->bqk"}> : () -> ()
    %cst_98 = arith.constant dense<0.000000e+00> : vector<2x8x16xf32>
    %121 = tpu.matmul %119, %120, %cst_98 {dimension_numbers = #tpu.dot_dimension_numbers<[2], [2], [1], [1], [0, 0, 0, 1, 1, 1], [0], [0]>} : vector<2x8x8xf32>, vector<2x16x8xf32>, vector<2x8x16xf32> -> vector<2x8x16xf32>
    "tpu.trace_stop"() : () -> ()
    %c0_99 = arith.constant 0 : index
    %c0_100 = arith.constant 0 : index
    %c3 = arith.constant 3 : index
    %122 = vector.load %arg20[%c0_99, %c0_100, %c3] : memref<2x8x4xf32, #tpu.memory_space<vmem>>, vector<2x8x1xf32>
    %cst_101 = arith.constant dense<0xFF800000> : vector<2x8xf32>
    %123 = vector.multi_reduction <maximumf>, %121, %cst_101 [2] : vector<2x8x16xf32> to vector<2x8xf32>
    %124 = vector.shape_cast %123 : vector<2x8xf32> to vector<2x8x1xf32>
    %125 = arith.maximumf %122, %124 : vector<2x8x1xf32>
    %126 = arith.subf %122, %125 : vector<2x8x1xf32>
    %127 = math.exp %126 : vector<2x8x1xf32>
    %128 = vector.broadcast %125 : vector<2x8x1xf32> to vector<2x8x16xf32>
    %129 = arith.subf %121, %128 : vector<2x8x16xf32>
    %130 = math.exp %129 : vector<2x8x16xf32>
    %c0_102 = arith.constant 0 : index
    %c0_103 = arith.constant 0 : index
    %c3_104 = arith.constant 3 : index
    %131 = vector.load %arg21[%c0_102, %c0_103, %c3_104] : memref<2x8x4xf32, #tpu.memory_space<vmem>>, vector<2x8x1xf32>
    %132 = arith.mulf %127, %131 : vector<2x8x1xf32>
    %cst_105 = arith.constant dense<0.000000e+00> : vector<2x8xf32>
    %133 = vector.multi_reduction <add>, %130, %cst_105 [2] : vector<2x8x16xf32> to vector<2x8xf32>
    %134 = vector.shape_cast %133 : vector<2x8xf32> to vector<2x8x1xf32>
    %135 = arith.addf %132, %134 : vector<2x8x1xf32>
    %136 = vector.extract_strided_slice %21 {offsets = [0, 0, 24], sizes = [2, 16, 8], strides = [1, 1, 1]} : vector<2x16x32xf32> to vector<2x16x8xf32>
    "tpu.trace_start"() <{level = 10 : i32, message = "bqk,bkd->bqd"}> : () -> ()
    %cst_106 = arith.constant dense<0.000000e+00> : vector<2x8x8xf32>
    %137 = tpu.matmul %130, %136, %cst_106 {dimension_numbers = #tpu.dot_dimension_numbers<[2], [1], [1], [2], [0, 0, 0, 1, 1, 2], [0], [0]>} : vector<2x8x16xf32>, vector<2x16x8xf32>, vector<2x8x8xf32> -> vector<2x8x8xf32>
    "tpu.trace_stop"() : () -> ()
    %c0_107 = arith.constant 0 : index
    %c0_108 = arith.constant 0 : index
    %c24 = arith.constant 24 : index
    %138 = vector.load %arg19[%c0_107, %c0_108, %c24] : memref<2x8x32xf32, #tpu.memory_space<vmem>>, vector<2x8x8xf32>
    %139 = vector.broadcast %127 : vector<2x8x1xf32> to vector<2x8x8xf32>
    %140 = arith.mulf %139, %138 : vector<2x8x8xf32>
    %141 = arith.addf %140, %137 : vector<2x8x8xf32>
    %c0_109 = arith.constant 0 : index
    %c0_110 = arith.constant 0 : index
    %c24_111 = arith.constant 24 : index
    %142 = vector.load %arg19[%c0_109, %c0_110, %c24_111] : memref<2x8x32xf32, #tpu.memory_space<vmem>>, vector<2x8x8xf32>
    tpu.vector_store %arg19[%c0_109, %c0_110, %c24_111], %141 {strides = array<i32>} : memref<2x8x32xf32, #tpu.memory_space<vmem>>, vector<2x8x8xf32>,
    %c0_112 = arith.constant 0 : index
    %c0_113 = arith.constant 0 : index
    %c3_114 = arith.constant 3 : index
    %143 = vector.load %arg20[%c0_112, %c0_113, %c3_114] : memref<2x8x4xf32, #tpu.memory_space<vmem>>, vector<2x8x1xf32>
    tpu.vector_store %arg20[%c0_112, %c0_113, %c3_114], %125 {strides = array<i32>} : memref<2x8x4xf32, #tpu.memory_space<vmem>>, vector<2x8x1xf32>,
    %c0_115 = arith.constant 0 : index
    %c0_116 = arith.constant 0 : index
    %c3_117 = arith.constant 3 : index
    %144 = vector.load %arg21[%c0_115, %c0_116, %c3_117] : memref<2x8x4xf32, #tpu.memory_space<vmem>>, vector<2x8x1xf32>
    tpu.vector_store %arg21[%c0_115, %c0_116, %c3_117], %135 {strides = array<i32>} : memref<2x8x4xf32, #tpu.memory_space<vmem>>, vector<2x8x1xf32>,
    %c0_118 = arith.constant 0 : index
    %c0_119 = arith.constant 0 : index
    %c0_120 = arith.constant 0 : index
    %145 = vector.load %arg22[%c0_118, %c0_119, %c0_120] : memref<2x8x16xf32, #tpu.memory_space<vmem>>, vector<2x8x16xf32>
    %146 = tpu.reciprocal %135 : vector<2x8x1xf32> -> vector<2x8x1xf32>
    %147 = vector.broadcast %146 : vector<2x8x1xf32> to vector<2x8x16xf32>
    %148 = arith.mulf %130, %147 : vector<2x8x16xf32>
    %149 = arith.addf %145, %148 : vector<2x8x16xf32>
    %c0_121 = arith.constant 0 : index
    %c0_122 = arith.constant 0 : index
    %c0_123 = arith.constant 0 : index
    %150 = vector.load %arg22[%c0_121, %c0_122, %c0_123] : memref<2x8x16xf32, #tpu.memory_space<vmem>>, vector<2x8x16xf32>
    tpu.vector_store %arg22[%c0_121, %c0_122, %c0_123], %149 {strides = array<i32>} : memref<2x8x16xf32, #tpu.memory_space<vmem>>, vector<2x8x16xf32>,
    %c0_i32_124 = arith.constant 0 : i32
    %151 = arith.cmpi eq, %arg1, %c0_i32_124 : i32
    %152 = arith.extui %151 : i1 to i32
    %c0_i32_125 = arith.constant 0 : i32
    %153 = arith.cmpi ne, %152, %c0_i32_125 : i32
    scf.if %153 {
      %c0_126 = arith.constant 0 : index
      %c0_127 = arith.constant 0 : index
      %c0_128 = arith.constant 0 : index
      %154 = vector.load %arg21[%c0_126, %c0_127, %c0_128] : memref<2x8x4xf32, #tpu.memory_space<vmem>>, vector<2x8x4xf32>
      %155 = tpu.reciprocal %154 : vector<2x8x4xf32> -> vector<2x8x4xf32>
      %c0_129 = arith.constant 0 : index
      %c0_130 = arith.constant 0 : index
      %c0_131 = arith.constant 0 : index
      %156 = vector.load %arg19[%c0_129, %c0_130, %c0_131] : memref<2x8x32xf32, #tpu.memory_space<vmem>>, vector<2x8x8xf32>
      %157 = vector.extract_strided_slice %155 {offsets = [0, 0, 0], sizes = [2, 8, 1], strides = [1, 1, 1]} : vector<2x8x4xf32> to vector<2x8x1xf32>
      %158 = vector.broadcast %157 : vector<2x8x1xf32> to vector<2x8x8xf32>
      %159 = arith.mulf %156, %158 : vector<2x8x8xf32>
      %c0_132 = arith.constant 0 : index
      %c0_133 = arith.constant 0 : index
      %c0_134 = arith.constant 0 : index
      %160 = vector.load %arg19[%c0_132, %c0_133, %c0_134] : memref<2x8x32xf32, #tpu.memory_space<vmem>>, vector<2x8x8xf32>
      tpu.vector_store %arg19[%c0_132, %c0_133, %c0_134], %159 {strides = array<i32>} : memref<2x8x32xf32, #tpu.memory_space<vmem>>, vector<2x8x8xf32>,
      %c0_135 = arith.constant 0 : index
      %c0_136 = arith.constant 0 : index
      %c8_137 = arith.constant 8 : index
      %161 = vector.load %arg19[%c0_135, %c0_136, %c8_137] : memref<2x8x32xf32, #tpu.memory_space<vmem>>, vector<2x8x8xf32>
      %162 = vector.extract_strided_slice %155 {offsets = [0, 0, 1], sizes = [2, 8, 1], strides = [1, 1, 1]} : vector<2x8x4xf32> to vector<2x8x1xf32>
      %163 = vector.broadcast %162 : vector<2x8x1xf32> to vector<2x8x8xf32>
      %164 = arith.mulf %161, %163 : vector<2x8x8xf32>
      %c0_138 = arith.constant 0 : index
      %c0_139 = arith.constant 0 : index
      %c8_140 = arith.constant 8 : index
      %165 = vector.load %arg19[%c0_138, %c0_139, %c8_140] : memref<2x8x32xf32, #tpu.memory_space<vmem>>, vector<2x8x8xf32>
      tpu.vector_store %arg19[%c0_138, %c0_139, %c8_140], %164 {strides = array<i32>} : memref<2x8x32xf32, #tpu.memory_space<vmem>>, vector<2x8x8xf32>,
      %c0_141 = arith.constant 0 : index
      %c0_142 = arith.constant 0 : index
      %c16_143 = arith.constant 16 : index
      %166 = vector.load %arg19[%c0_141, %c0_142, %c16_143] : memref<2x8x32xf32, #tpu.memory_space<vmem>>, vector<2x8x8xf32>
      %167 = vector.extract_strided_slice %155 {offsets = [0, 0, 2], sizes = [2, 8, 1], strides = [1, 1, 1]} : vector<2x8x4xf32> to vector<2x8x1xf32>
      %168 = vector.broadcast %167 : vector<2x8x1xf32> to vector<2x8x8xf32>
      %169 = arith.mulf %166, %168 : vector<2x8x8xf32>
      %c0_144 = arith.constant 0 : index
      %c0_145 = arith.constant 0 : index
      %c16_146 = arith.constant 16 : index
      %170 = vector.load %arg19[%c0_144, %c0_145, %c16_146] : memref<2x8x32xf32, #tpu.memory_space<vmem>>, vector<2x8x8xf32>
      tpu.vector_store %arg19[%c0_144, %c0_145, %c16_146], %169 {strides = array<i32>} : memref<2x8x32xf32, #tpu.memory_space<vmem>>, vector<2x8x8xf32>,
      %c0_147 = arith.constant 0 : index
      %c0_148 = arith.constant 0 : index
      %c24_149 = arith.constant 24 : index
      %171 = vector.load %arg19[%c0_147, %c0_148, %c24_149] : memref<2x8x32xf32, #tpu.memory_space<vmem>>, vector<2x8x8xf32>
      %172 = vector.extract_strided_slice %155 {offsets = [0, 0, 3], sizes = [2, 8, 1], strides = [1, 1, 1]} : vector<2x8x4xf32> to vector<2x8x1xf32>
      %173 = vector.broadcast %172 : vector<2x8x1xf32> to vector<2x8x8xf32>
      %174 = arith.mulf %171, %173 : vector<2x8x8xf32>
      %c0_150 = arith.constant 0 : index
      %c0_151 = arith.constant 0 : index
      %c24_152 = arith.constant 24 : index
      %175 = vector.load %arg19[%c0_150, %c0_151, %c24_152] : memref<2x8x32xf32, #tpu.memory_space<vmem>>, vector<2x8x8xf32>
      tpu.vector_store %arg19[%c0_150, %c0_151, %c24_152], %174 {strides = array<i32>} : memref<2x8x32xf32, #tpu.memory_space<vmem>>, vector<2x8x8xf32>,
      %c0_153 = arith.constant 0 : index
      %c0_154 = arith.constant 0 : index
      %c0_155 = arith.constant 0 : index
      %176 = vector.load %arg19[%c0_153, %c0_154, %c0_155] : memref<2x8x32xf32, #tpu.memory_space<vmem>>, vector<2x8x32xf32>
      %177 = vector.shape_cast %176 : vector<2x8x32xf32> to vector<16x32xf32>
      %c0_156 = arith.constant 0 : index
      %c0_157 = arith.constant 0 : index
      %178 = vector.load %arg9[%c0_156, %c0_157] : memref<32x32xf32, #tpu.memory_space<vmem>>, vector<32x32xf32>
      %cst_158 = arith.constant dense<0.000000e+00> : vector<16x32xf32>
      %179 = tpu.matmul %177, %178, %cst_158 {dimension_numbers = #tpu.dot_dimension_numbers<[1], [0], [0], [1], [0, 0, 1, 1], [], []>} : vector<16x32xf32>, vector<32x32xf32>, vector<16x32xf32> -> vector<16x32xf32>
      %c0_159 = arith.constant 0 : index
      %c0_160 = arith.constant 0 : index
      %180 = vector.load %arg13[%c0_159, %c0_160] : memref<1x32xf32, #tpu.memory_space<vmem>>, vector<1x32xf32>
      %181 = vector.broadcast %180 : vector<1x32xf32> to vector<16x32xf32>
      %182 = arith.addf %179, %181 : vector<16x32xf32>
      %183 = vector.shape_cast %182 : vector<16x32xf32> to vector<2x8x32xf32>
      %184 = tpu.transpose %183, [1, 0, 2] : vector<2x8x32xf32> -> vector<8x2x32xf32>
      %c0_161 = arith.constant 0 : index
      %c0_162 = arith.constant 0 : index
      %c0_163 = arith.constant 0 : index
      %185 = vector.load %arg2[%c0_161, %c0_162, %c0_163] : memref<8x2x32xf32, #tpu.memory_space<vmem>>, vector<8x2x32xf32>
      %186 = arith.addf %185, %184 : vector<8x2x32xf32>
      %cst_164 = arith.constant dense<0.000000e+00> : vector<8x2xf32>
      %187 = vector.multi_reduction <add>, %186, %cst_164 [2] : vector<8x2x32xf32> to vector<8x2xf32>
      %188 = vector.shape_cast %187 : vector<8x2xf32> to vector<8x2x1xf32>
      %cst_165 = arith.constant 3.200000e+01 : f32
      %189 = vector.broadcast %cst_165 : f32 to vector<8x2x1xf32>
      %190 = arith.divf %188, %189 : vector<8x2x1xf32>
      %191 = vector.broadcast %190 : vector<8x2x1xf32> to vector<8x2x32xf32>
      %192 = arith.subf %186, %191 : vector<8x2x32xf32>
      %193 = arith.mulf %192, %192 : vector<8x2x32xf32>
      %cst_166 = arith.constant dense<0.000000e+00> : vector<8x2xf32>
      %194 = vector.multi_reduction <add>, %193, %cst_166 [2] : vector<8x2x32xf32> to vector<8x2xf32>
      %195 = vector.shape_cast %194 : vector<8x2xf32> to vector<8x2x1xf32>
      %cst_167 = arith.constant 3.200000e+01 : f32
      %196 = vector.broadcast %cst_167 : f32 to vector<8x2x1xf32>
      %197 = arith.divf %195, %196 : vector<8x2x1xf32>
      %198 = vector.broadcast %190 : vector<8x2x1xf32> to vector<8x2x32xf32>
      %199 = arith.subf %186, %198 : vector<8x2x32xf32>
      %cst_168 = arith.constant 9.99999974E-6 : f32
      %200 = vector.broadcast %cst_168 : f32 to vector<8x2x1xf32>
      %201 = arith.addf %197, %200 : vector<8x2x1xf32>
      %202 = math.rsqrt %201 : vector<8x2x1xf32>
      %203 = vector.broadcast %202 : vector<8x2x1xf32> to vector<8x2x32xf32>
      %204 = arith.mulf %199, %203 : vector<8x2x32xf32>
      %c0_169 = arith.constant 0 : index
      %c0_170 = arith.constant 0 : index
      %205 = vector.load %arg14[%c0_169, %c0_170] : memref<1x32xf32, #tpu.memory_space<vmem>>, vector<1x32xf32>
      %206 = vector.shape_cast %205 : vector<1x32xf32> to vector<1x1x32xf32>
      %207 = vector.broadcast %206 : vector<1x1x32xf32> to vector<8x2x32xf32>
      %208 = arith.mulf %204, %207 : vector<8x2x32xf32>
      %c0_171 = arith.constant 0 : index
      %c0_172 = arith.constant 0 : index
      %209 = vector.load %arg15[%c0_171, %c0_172] : memref<1x32xf32, #tpu.memory_space<vmem>>, vector<1x32xf32>
      %210 = vector.shape_cast %209 : vector<1x32xf32> to vector<1x1x32xf32>
      %211 = vector.broadcast %210 : vector<1x1x32xf32> to vector<8x2x32xf32>
      %212 = arith.addf %208, %211 : vector<8x2x32xf32>
      %c0_173 = arith.constant 0 : index
      %c0_174 = arith.constant 0 : index
      %c0_175 = arith.constant 0 : index
      %213 = vector.load %arg16[%c0_173, %c0_174, %c0_175] : memref<8x2x32xf32, #tpu.memory_space<vmem>>, vector<8x2x32xf32>
      tpu.vector_store %arg16[%c0_173, %c0_174, %c0_175], %212 {strides = array<i32>} : memref<8x2x32xf32, #tpu.memory_space<vmem>>, vector<8x2x32xf32>,
      %c0_176 = arith.constant 0 : index
      %c0_177 = arith.constant 0 : index
      %c0_178 = arith.constant 0 : index
      %214 = vector.load %arg22[%c0_176, %c0_177, %c0_178] : memref<2x8x16xf32, #tpu.memory_space<vmem>>, vector<2x8x16xf32>
      %cst_179 = arith.constant 2.500000e-01 : f32
      %215 = vector.broadcast %cst_179 : f32 to vector<2x8x16xf32>
      %216 = arith.mulf %214, %215 : vector<2x8x16xf32>
      %c0_180 = arith.constant 0 : index
      %c0_181 = arith.constant 0 : index
      %c0_182 = arith.constant 0 : index
      %217 = vector.load %arg17[%c0_180, %c0_181, %c0_182] : memref<2x8x16xf32, #tpu.memory_space<vmem>>, vector<2x8x16xf32>
      tpu.vector_store %arg17[%c0_180, %c0_181, %c0_182], %216 {strides = array<i32>} : memref<2x8x16xf32, #tpu.memory_space<vmem>>, vector<2x8x16xf32>,
    } else {
    }
    return
  }
  func.func @transform_0(%arg0: i32, %arg1: i32) -> (i32, i32, i32) {
    %c0_i32 = arith.constant 0 : i32
    %c0_i32_0 = arith.constant 0 : i32
    %c0_i32_1 = arith.constant 0 : i32
    return %c0_i32, %arg0, %c0_i32_0 : i32, i32, i32
  }
  func.func @transform_1(%arg0: i32, %arg1: i32) -> (i32, i32, i32) {
    %c0_i32 = arith.constant 0 : i32
    %c0_i32_0 = arith.constant 0 : i32
    return %arg1, %arg0, %c0_i32 : i32, i32, i32
  }
  func.func @transform_2(%arg0: i32, %arg1: i32) -> (i32, i32, i32) {
    %c0_i32 = arith.constant 0 : i32
    %c0_i32_0 = arith.constant 0 : i32
    %c0_i32_1 = arith.constant 0 : i32
    return %c0_i32, %arg0, %c0_i32_0 : i32, i32, i32
  }
  func.func @transform_3(%arg0: i32, %arg1: i32) -> (i32, i32, i32) {
    %c0_i32 = arith.constant 0 : i32
    %c0_i32_0 = arith.constant 0 : i32
    return %arg1, %arg0, %c0_i32 : i32, i32, i32
  }
  func.func @transform_4(%arg0: i32, %arg1: i32) -> (i32, i32) {
    %c0_i32 = arith.constant 0 : i32
    %c0_i32_0 = arith.constant 0 : i32
    %c0_i32_1 = arith.constant 0 : i32
    return %c0_i32, %c0_i32_0 : i32, i32
  }
  func.func @transform_5(%arg0: i32, %arg1: i32) -> (i32, i32) {
    %c0_i32 = arith.constant 0 : i32
    %c0_i32_0 = arith.constant 0 : i32
    %c0_i32_1 = arith.constant 0 : i32
    return %c0_i32, %c0_i32_0 : i32, i32
  }
  func.func @transform_6(%arg0: i32, %arg1: i32) -> (i32, i32) {
    %c0_i32 = arith.constant 0 : i32
    %c0_i32_0 = arith.constant 0 : i32
    %c0_i32_1 = arith.constant 0 : i32
    return %c0_i32, %c0_i32_0 : i32, i32
  }
  func.func @transform_7(%arg0: i32, %arg1: i32) -> (i32, i32) {
    %c0_i32 = arith.constant 0 : i32
    %c0_i32_0 = arith.constant 0 : i32
    %c0_i32_1 = arith.constant 0 : i32
    return %c0_i32, %c0_i32_0 : i32, i32
  }
  func.func @transform_8(%arg0: i32, %arg1: i32) -> (i32, i32) {
    %c0_i32 = arith.constant 0 : i32
    %c0_i32_0 = arith.constant 0 : i32
    %c0_i32_1 = arith.constant 0 : i32
    return %c0_i32, %c0_i32_0 : i32, i32
  }
  func.func @transform_9(%arg0: i32, %arg1: i32) -> (i32, i32) {
    %c0_i32 = arith.constant 0 : i32
    %c0_i32_0 = arith.constant 0 : i32
    %c0_i32_1 = arith.constant 0 : i32
    return %c0_i32, %c0_i32_0 : i32, i32
  }
  func.func @transform_10(%arg0: i32, %arg1: i32) -> (i32, i32) {
    %c0_i32 = arith.constant 0 : i32
    %c0_i32_0 = arith.constant 0 : i32
    %c0_i32_1 = arith.constant 0 : i32
    return %c0_i32, %c0_i32_0 : i32, i32
  }
  func.func @transform_11(%arg0: i32, %arg1: i32) -> (i32, i32) {
    %c0_i32 = arith.constant 0 : i32
    %c0_i32_0 = arith.constant 0 : i32
    %c0_i32_1 = arith.constant 0 : i32
    return %c0_i32, %c0_i32_0 : i32, i32
  }
  func.func @transform_12(%arg0: i32, %arg1: i32) -> (i32, i32) {
    %c0_i32 = arith.constant 0 : i32
    %c0_i32_0 = arith.constant 0 : i32
    %c0_i32_1 = arith.constant 0 : i32
    return %c0_i32, %c0_i32_0 : i32, i32
  }
  func.func @transform_13(%arg0: i32, %arg1: i32) -> (i32, i32) {
    %c0_i32 = arith.constant 0 : i32
    %c0_i32_0 = arith.constant 0 : i32
    %c0_i32_1 = arith.constant 0 : i32
    return %c0_i32, %c0_i32_0 : i32, i32
  }
  func.func @transform_14(%arg0: i32, %arg1: i32) -> (i32, i32, i32) {
    %c0_i32 = arith.constant 0 : i32
    %c0_i32_0 = arith.constant 0 : i32
    %c0_i32_1 = arith.constant 0 : i32
    return %c0_i32, %arg0, %c0_i32_0 : i32, i32, i32
  }
  func.func @transform_15(%arg0: i32, %arg1: i32) -> (i32, i32, i32) {
    %c0_i32 = arith.constant 0 : i32
    %c0_i32_0 = arith.constant 0 : i32
    %c0_i32_1 = arith.constant 0 : i32
    return %arg0, %c0_i32, %c0_i32_0 : i32, i32, i32
  }
}

</mosaic_0001>

<llo_original>
// kernel: tpu_custom_call.1
$region0: #{tpu_custom_call.1}
  #allocation0 [shape = 'u32[]', space=smem, size = 0x4, offset = 0x4, fixed_abs, tag = 'smem constant byte address 0x4 - core index']
  #allocation1 [shape = 'u32[144,128]{1,0:T(1,128)}', space=vmem, size = 0x12000, scoped, tag = 'internal scratch']
  #allocation2 [shape = 'f32[2,8,32]{2,1,0:T(8,128)}', space=vmem, size = 0x2000, scoped, tag = 'scratch operand']
  #allocation3 [shape = 'f32[2,8,32]{2,1,0:T(8,128)}', space=vmem, size = 0x2000, scoped, tag = 'scratch operand']
  #allocation4 [shape = 'f32[2,8,4]{2,1,0:T(8,128)}', space=vmem, size = 0x2000, scoped, tag = 'scratch operand']
  #allocation5 [shape = 'f32[2,8,4]{2,1,0:T(8,128)}', space=vmem, size = 0x2000, scoped, tag = 'scratch operand']
  #allocation6 [shape = 'f32[2,8,16]{2,1,0:T(8,128)}', space=vmem, size = 0x2000, scoped, tag = 'scratch operand']
  %s0 = inlined_call_operand.hbm [shape: f32[8,2,32], index: 0, kind: input, shape index: {}]
  %s1 = inlined_call_operand.hbm [shape: f32[16,2,32], index: 1, kind: input, shape index: {}]
  %s2 = inlined_call_operand.hbm [shape: f32[8,2,32], index: 2, kind: input, shape index: {}]
  %s3 = inlined_call_operand.hbm [shape: f32[16,2,32], index: 3, kind: input, shape index: {}]
  %s4 = inlined_call_operand.hbm [shape: f32[32,32], index: 4, kind: input, shape index: {}]
  %s5 = inlined_call_operand.hbm [shape: f32[32,32], index: 5, kind: input, shape index: {}]
  %s6 = inlined_call_operand.hbm [shape: f32[32,32], index: 6, kind: input, shape index: {}]
  %s7 = inlined_call_operand.hbm [shape: f32[32,32], index: 7, kind: input, shape index: {}]
  %s8 = inlined_call_operand.vmem [shape: f32[1,32], index: 8, kind: input, shape index: {}]
  %s9 = inlined_call_operand.vmem [shape: f32[1,32], index: 9, kind: input, shape index: {}]
  %s10 = inlined_call_operand.vmem [shape: f32[1,32], index: 10, kind: input, shape index: {}]
  %s11 = inlined_call_operand.vmem [shape: f32[1,32], index: 11, kind: input, shape index: {}]
  %s12 = inlined_call_operand.vmem [shape: f32[1,32], index: 12, kind: input, shape index: {}]
  %s13 = inlined_call_operand.vmem [shape: f32[1,32], index: 13, kind: input, shape index: {}]
  %s14 = inlined_call_operand.hbm [shape: f32[8,2,32], index: 14, kind: output, shape index: {0}]
  %s15 = inlined_call_operand.hbm [shape: f32[2,8,16], index: 15, kind: output, shape index: {1}]
  %16 = xla_tuple %s14, %s15
  %s17 = sld [smem:[#allocation0]]
  $region114: #{tpu_custom_call.1} parent=0
    _
  %s19 = ssub.s32 1, %s17
  %s20 = scalar_select 0, %s19, %s17
  $region1: #{tpu_custom_call.1} parent=0
    #allocation7 [shape = 'u8[8192]{0}', space=vmem, size = 0x2000, scoped, tag = 'input window, operand 0, single buffered']
    #allocation8 [shape = 's32[1]{0}', space=sflag, size = 0x4, scoped, tag = 'scoped memory for tpu_custom_call.1']
    #allocation9 [shape = 's32[1]{0}', space=sflag, size = 0x4, scoped, tag = 'scoped memory for tpu_custom_call.1']
    #allocation10 [shape = 'u8[16384]{0}', space=vmem, size = 0x4000, scoped, tag = 'input window, operand 1, single buffered']
    #allocation11 [shape = 's32[1]{0}', space=sflag, size = 0x4, scoped, tag = 'scoped memory for tpu_custom_call.1']
    #allocation12 [shape = 'u8[8192]{0}', space=vmem, size = 0x2000, scoped, tag = 'input window, operand 2, single buffered']
    #allocation13 [shape = 'u8[16384]{0}', space=vmem, size = 0x4000, scoped, tag = 'input window, operand 3, single buffered']
    #allocation14 [shape = 's32[1]{0}', space=sflag, size = 0x4, scoped, tag = 'scoped memory for tpu_custom_call.1']
    #allocation15 [shape = 'u8[16384]{0}', space=vmem, size = 0x4000, scoped, tag = 'input window, operand 4, single buffered']
    #allocation16 [shape = 'u8[16384]{0}', space=vmem, size = 0x4000, scoped, tag = 'input window, operand 5, single buffered']
    #allocation17 [shape = 's32[1]{0}', space=sflag, size = 0x4, scoped, tag = 'scoped memory for tpu_custom_call.1']
    #allocation18 [shape = 'u8[16384]{0}', space=vmem, size = 0x4000, scoped, tag = 'input window, operand 6, single buffered']
    #allocation19 [shape = 'u8[16384]{0}', space=vmem, size = 0x4000, scoped, tag = 'input window, operand 7, single buffered']
    #allocation20 [shape = 's32[1]{0}', space=sflag, size = 0x4, scoped, tag = 'scoped memory for tpu_custom_call.1']
    #allocation21 [shape = 'u8[8192]{0}', space=vmem, size = 0x2000, scoped, tag = 'output window, operand 0, single buffered']
    #allocation22 [shape = 'u8[8192]{0}', space=vmem, size = 0x2000, scoped, tag = 'output window, operand 1, single buffered']
    #allocation23 [shape = 's32[1]{0}', space=sflag, size = 0x4, scoped, tag = 'scoped memory for tpu_custom_call.1']
    %21 = vsyncpa [#allocation8], 0
    %22 = vsyncpa [#allocation11], 0
    %23 = vsyncpa [#allocation14], 0
    %24 = vsyncpa [#allocation17], 0
    %25 = vsyncpa [#allocation20], 0
    %26 = vsyncpa [#allocation9], 0
    %27 = vsyncpa [#allocation23], 0
    // Predicated region
    $region2: #{tpu_custom_call.1} parent=1 // pred_check
      _
    $region3: #{tpu_custom_call.1} parent=1 // pred_check_branch
      %29 = sbr.rel (0) target = $region5
    $region4: #{tpu_custom_call.1} parent=1 // pred_region
      %s31 = ssub.s32 256, 256
      %32 = vsyncadd [#allocation8], %s31
      %s33 = sshll.u32 [#allocation7], 4
      %s34 = int_to_ptr.vmem [resolvable:$true] %s33
      %39 = dma.hbm_to_vmem [thread:$0]  %s0, 256, %s34, [#allocation8], 32, 32, 2
    $region5: #{tpu_custom_call.1} parent=1 // pred_fallthru
      _
    // Predicated region
    $region6: #{tpu_custom_call.1} parent=1 // pred_check
      _
    $region7: #{tpu_custom_call.1} parent=1 // pred_check_branch
      %41 = sbr.rel (0) target = $region9
    $region8: #{tpu_custom_call.1} parent=1 // pred_region
      %s43 = ssub.s32 512, 512
      %44 = vsyncadd [#allocation11], %s43
      %s45 = sshll.u32 [#allocation10], 4
      %s46 = int_to_ptr.vmem [resolvable:$true] %s45
      %51 = dma.hbm_to_vmem [thread:$0]  %s1, 512, %s46, [#allocation11], 32, 32, 2
    $region9: #{tpu_custom_call.1} parent=1 // pred_fallthru
      _
    // Predicated region
    $region10: #{tpu_custom_call.1} parent=1 // pred_check
      _
    $region11: #{tpu_custom_call.1} parent=1 // pred_check_branch
      %53 = sbr.rel (0) target = $region13
    $region12: #{tpu_custom_call.1} parent=1 // pred_region
      %s55 = ssub.s32 256, 256
      %56 = vsyncadd [#allocation11], %s55
      %s57 = sshll.u32 [#allocation12], 4
      %s58 = int_to_ptr.vmem [resolvable:$true] %s57
      %63 = dma.hbm_to_vmem [thread:$0]  %s2, 256, %s58, [#allocation11], 32, 32, 2
    $region13: #{tpu_custom_call.1} parent=1 // pred_fallthru
      _
    // Predicated region
    $region14: #{tpu_custom_call.1} parent=1 // pred_check
      _
    $region15: #{tpu_custom_call.1} parent=1 // pred_check_branch
      %65 = sbr.rel (0) target = $region17
    $region16: #{tpu_custom_call.1} parent=1 // pred_region
      %s67 = ssub.s32 512, 512
      %68 = vsyncadd [#allocation14], %s67
      %s69 = sshll.u32 [#allocation13], 4
      %s70 = int_to_ptr.vmem [resolvable:$true] %s69
      %75 = dma.hbm_to_vmem [thread:$0]  %s3, 512, %s70, [#allocation14], 32, 32, 2
    $region17: #{tpu_custom_call.1} parent=1 // pred_fallthru
      _
    // Predicated region
    $region18: #{tpu_custom_call.1} parent=1 // pred_check
      _
    $region19: #{tpu_custom_call.1} parent=1 // pred_check_branch
      %77 = sbr.rel (0) target = $region21
    $region20: #{tpu_custom_call.1} parent=1 // pred_region
      %s79 = ssub.s32 512, 512
      %80 = vsyncadd [#allocation14], %s79
      %s81 = sshll.u32 [#allocation15], 4
      %s82 = int_to_ptr.vmem [resolvable:$true] %s81
      %87 = dma.hbm_to_vmem [thread:$0]  %s4, 512, %s82, [#allocation14], 128, 128, 8
    $region21: #{tpu_custom_call.1} parent=1 // pred_fallthru
      _
    // Predicated region
    $region22: #{tpu_custom_call.1} parent=1 // pred_check
      _
    $region23: #{tpu_custom_call.1} parent=1 // pred_check_branch
      %89 = sbr.rel (0) target = $region25
    $region24: #{tpu_custom_call.1} parent=1 // pred_region
      %s91 = ssub.s32 512, 512
      %92 = vsyncadd [#allocation17], %s91
      %s93 = sshll.u32 [#allocation16], 4
      %s94 = int_to_ptr.vmem [resolvable:$true] %s93
      %99 = dma.hbm_to_vmem [thread:$0]  %s5, 512, %s94, [#allocation17], 128, 128, 8
    $region25: #{tpu_custom_call.1} parent=1 // pred_fallthru
      _
    // Predicated region
    $region26: #{tpu_custom_call.1} parent=1 // pred_check
      _
    $region27: #{tpu_custom_call.1} parent=1 // pred_check_branch
      %101 = sbr.rel (0) target = $region29
    $region28: #{tpu_custom_call.1} parent=1 // pred_region
      %s103 = ssub.s32 512, 512
      %104 = vsyncadd [#allocation17], %s103
      %s105 = sshll.u32 [#allocation18], 4
      %s106 = int_to_ptr.vmem [resolvable:$true] %s105
      %111 = dma.hbm_to_vmem [thread:$0]  %s6, 512, %s106, [#allocation17], 128, 128, 8
    $region29: #{tpu_custom_call.1} parent=1 // pred_fallthru
      _
    // Predicated region
    $region30: #{tpu_custom_call.1} parent=1 // pred_check
      _
    $region31: #{tpu_custom_call.1} parent=1 // pred_check_branch
      %113 = sbr.rel (0) target = $region33
    $region32: #{tpu_custom_call.1} parent=1 // pred_region
      %s115 = ssub.s32 512, 512
      %116 = vsyncadd [#allocation20], %s115
      %s117 = sshll.u32 [#allocation19], 4
      %s118 = int_to_ptr.vmem [resolvable:$true] %s117
      %123 = dma.hbm_to_vmem [thread:$0]  %s7, 512, %s118, [#allocation20], 128, 128, 8
    $region33: #{tpu_custom_call.1} parent=1 // pred_fallthru
      _
    // Predicated region
    $region34: #{tpu_custom_call.1} parent=1 // pred_check
      _
    $region35: #{tpu_custom_call.1} parent=1 // pred_check_branch
      %125 = sbr.rel (0) target = $region37
    $region36: #{tpu_custom_call.1} parent=1 // pred_region
      _
    $region37: #{tpu_custom_call.1} parent=1 // pred_fallthru
      _
    // Predicated region
    $region38: #{tpu_custom_call.1} parent=1 // pred_check
      _
    $region39: #{tpu_custom_call.1} parent=1 // pred_check_branch
      %127 = sbr.rel (0) target = $region41
    $region40: #{tpu_custom_call.1} parent=1 // pred_region
      _
    $region41: #{tpu_custom_call.1} parent=1 // pred_fallthru
      _
    // Predicated region
    $region42: #{tpu_custom_call.1} parent=1 // pred_check
      _
    $region43: #{tpu_custom_call.1} parent=1 // pred_check_branch
      %129 = sbr.rel (0) target = $region45
    $region44: #{tpu_custom_call.1} parent=1 // pred_region
      _
    $region45: #{tpu_custom_call.1} parent=1 // pred_fallthru
      _
    // Predicated region
    $region46: #{tpu_custom_call.1} parent=1 // pred_check
      _
    $region47: #{tpu_custom_call.1} parent=1 // pred_check_branch
      %131 = sbr.rel (0) target = $region49
    $region48: #{tpu_custom_call.1} parent=1 // pred_region
      _
    $region49: #{tpu_custom_call.1} parent=1 // pred_fallthru
      _
    // Predicated region
    $region50: #{tpu_custom_call.1} parent=1 // pred_check
      _
    $region51: #{tpu_custom_call.1} parent=1 // pred_check_branch
      %133 = sbr.rel (0) target = $region53
    $region52: #{tpu_custom_call.1} parent=1 // pred_region
      _
    $region53: #{tpu_custom_call.1} parent=1 // pred_fallthru
      _
    // Predicated region
    $region54: #{tpu_custom_call.1} parent=1 // pred_check
      _
    $region55: #{tpu_custom_call.1} parent=1 // pred_check_branch
      %135 = sbr.rel (0) target = $region57
    $region56: #{tpu_custom_call.1} parent=1 // pred_region
      _
    $region57: #{tpu_custom_call.1} parent=1 // pred_fallthru
      _
    // Predicated region
    $region58: #{tpu_custom_call.1} parent=1 // pred_check
      _
    $region59: #{tpu_custom_call.1} parent=1 // pred_check_branch
      %137 = sbr.rel (0) target = $region61
    $region60: #{tpu_custom_call.1} parent=1 // pred_region
      %138 = dma.done [#allocation8], 256
    $region61: #{tpu_custom_call.1} parent=1 // pred_fallthru
      _
    // Predicated region
    $region62: #{tpu_custom_call.1} parent=1 // pred_check
      _
    $region63: #{tpu_custom_call.1} parent=1 // pred_check_branch
      %140 = sbr.rel (0) target = $region65
    $region64: #{tpu_custom_call.1} parent=1 // pred_region
      %141 = dma.done [#allocation11], 512
    $region65: #{tpu_custom_call.1} parent=1 // pred_fallthru
      _
    // Predicated region
    $region66: #{tpu_custom_call.1} parent=1 // pred_check
      _
    $region67: #{tpu_custom_call.1} parent=1 // pred_check_branch
      %143 = sbr.rel (0) target = $region69
    $region68: #{tpu_custom_call.1} parent=1 // pred_region
      %144 = dma.done [#allocation11], 256
    $region69: #{tpu_custom_call.1} parent=1 // pred_fallthru
      _
    // Predicated region
    $region70: #{tpu_custom_call.1} parent=1 // pred_check
      _
    $region71: #{tpu_custom_call.1} parent=1 // pred_check_branch
      %146 = sbr.rel (0) target = $region73
    $region72: #{tpu_custom_call.1} parent=1 // pred_region
      %147 = dma.done [#allocation14], 512
    $region73: #{tpu_custom_call.1} parent=1 // pred_fallthru
      _
    // Predicated region
    $region74: #{tpu_custom_call.1} parent=1 // pred_check
      _
    $region75: #{tpu_custom_call.1} parent=1 // pred_check_branch
      %149 = sbr.rel (0) target = $region77
    $region76: #{tpu_custom_call.1} parent=1 // pred_region
      %150 = dma.done [#allocation14], 512
    $region77: #{tpu_custom_call.1} parent=1 // pred_fallthru
      _
    // Predicated region
    $region78: #{tpu_custom_call.1} parent=1 // pred_check
      _
    $region79: #{tpu_custom_call.1} parent=1 // pred_check_branch
      %152 = sbr.rel (0) target = $region81
    $region80: #{tpu_custom_call.1} parent=1 // pred_region
      %153 = dma.done [#allocation17], 512
    $region81: #{tpu_custom_call.1} parent=1 // pred_fallthru
      _
    // Predicated region
    $region82: #{tpu_custom_call.1} parent=1 // pred_check
      _
    $region83: #{tpu_custom_call.1} parent=1 // pred_check_branch
      %155 = sbr.rel (0) target = $region85
    $region84: #{tpu_custom_call.1} parent=1 // pred_region
      %156 = dma.done [#allocation17], 512
    $region85: #{tpu_custom_call.1} parent=1 // pred_fallthru
      _
    // Predicated region
    $region86: #{tpu_custom_call.1} parent=1 // pred_check
      _
    $region87: #{tpu_custom_call.1} parent=1 // pred_check_branch
      %158 = sbr.rel (0) target = $region89
    $region88: #{tpu_custom_call.1} parent=1 // pred_region
      %159 = dma.done [#allocation20], 512
    $region89: #{tpu_custom_call.1} parent=1 // pred_fallthru
      _
    %p160 = scmp.eq.s32.totalorder 0, 0
    // Predicated region
    $region90: #{tpu_custom_call.1} parent=1 // pred_check
      %p161 = pneg %p160
    $region91: #{tpu_custom_call.1} parent=1 // pred_check_branch
      %163 = sbr.rel (%p161) target = $region93
    $region92: #{tpu_custom_call.1} parent=1 // pred_region
      %v164 = vld [vmem:[#allocation7] sm:$0x3]
      %v165 = vld [vmem:[#allocation7 + $0x2] sm:$0x3]
      %v166 = vld [vmem:[#allocation7 + $0x4] sm:$0x3]
      %v167 = vld [vmem:[#allocation7 + $0x6] sm:$0x3]
      %v168 = vld [vmem:[#allocation7 + $0x8] sm:$0x3]
      %v169 = vld [vmem:[#allocation7 + $0xa] sm:$0x3]
      %v170 = vld [vmem:[#allocation7 + $0xc] sm:$0x3]
      %v171 = vld [vmem:[#allocation7 + $0xe] sm:$0x3]
      %v172 = vld [vmem:[#allocation12] sm:$0x3]
      %v173 = vld [vmem:[#allocation12 + $0x2] sm:$0x3]
      %v174 = vld [vmem:[#allocation12 + $0x4] sm:$0x3]
      %v175 = vld [vmem:[#allocation12 + $0x6] sm:$0x3]
      %v176 = vld [vmem:[#allocation12 + $0x8] sm:$0x3]
      %v177 = vld [vmem:[#allocation12 + $0xa] sm:$0x3]
      %v178 = vld [vmem:[#allocation12 + $0xc] sm:$0x3]
      %v179 = vld [vmem:[#allocation12 + $0xe] sm:$0x3]
      %v180 = vadd.f32 %v164, %v172
      %v181 = vadd.f32 %v165, %v173
      %v182 = vadd.f32 %v166, %v174
      %v183 = vadd.f32 %v167, %v175
      %v184 = vadd.f32 %v168, %v176
      %v185 = vadd.f32 %v169, %v177
      %v186 = vadd.f32 %v170, %v178
      %v187 = vadd.f32 %v171, %v179
      %v188 = vld [vmem:[#allocation15] sm:$0xff]
      %v189 = vld [vmem:[#allocation15 + $0x8] sm:$0xff]
      %v190 = vld [vmem:[#allocation15 + $0x10] sm:$0xff]
      %v191 = vld [vmem:[#allocation15 + $0x18] sm:$0xff]
      %v192 = vld [vmem:[%s8] sm:$0x1]
      %v194 = vlaneseq
      %v195 = vshrl.u32 %v194, 7
      %v196 = vsub.s32 0, %v195
      %v197 = vrot.slane %v192, %v196
      %v207 = vcombine.low %v180, %v181
      %v208 = vcombine.low %v182, %v183
      %v210 = vunpack.c.l.s4 1983009808
      %v211 = vunpack.c.0.s8 %v210
      %v212 = vlaneseq
      %v213 = vshrl.u32 %v212, 7
      %v214 = vsub.s32 %v211, %v213
      %v215 = vrot.slane %v207, %v214
      %v217 = vunpack.c.l.s4 1983009808
      %v218 = vunpack.c.0.s8 %v217
      %v219 = vlaneseq
      %v220 = vshrl.u32 %v219, 7
      %v221 = vsub.s32 %v218, %v220
      %v222 = vrot.slane %v208, %v221
      %v223 = vcombine.low %v215, %v222
      %v224 = vcombine.low %v184, %v185
      %v225 = vcombine.low %v186, %v187
      %v227 = vunpack.c.l.s4 1983009808
      %v228 = vunpack.c.0.s8 %v227
      %v229 = vlaneseq
      %v230 = vshrl.u32 %v229, 7
      %v231 = vsub.s32 %v228, %v230
      %v232 = vrot.slane %v224, %v231
      %v234 = vunpack.c.l.s4 1983009808
      %v235 = vunpack.c.0.s8 %v234
      %v236 = vlaneseq
      %v237 = vshrl.u32 %v236, 7
      %v238 = vsub.s32 %v235, %v237
      %v239 = vrot.slane %v225, %v238
      %v240 = vcombine.low %v232, %v239
      %vm241 = vcmask 261120
      %v242 = vsel %vm241, %v223, 0
      %v244 = vsel %vm241, %v240, 0
      %246 = vmatprep.subr.mxu0 0.0
      %247 = vmatpush1.msra.mxu0 0.0
      %248 = vmatprep.subr.mxu0 0.0
      %249 = vmatpush1.msra.mxu0 0.0
      %250 = vmatprep.subr.mxu0 0.0
      %251 = vmatpush1.msra.mxu0 0.0
      %252 = vmatprep.subr.mxu0 0.0
      %253 = vmatpush1.msra.mxu0 0.0
      %254 = vmatprep.subr.mxu0 0.0
      %255 = vmatpush1.msra.mxu0 0.0
      %256 = vmatprep.subr.mxu0 0.0
      %257 = vmatpush1.msra.mxu0 0.0
      %258 = vmatprep.subr.mxu0 0.0
      %259 = vmatpush1.msra.mxu0 0.0
      %260 = vmatprep.subr.mxu0 0.0
      %261 = vmatpush1.msra.mxu0 0.0
      %262 = vmatprep.subr.mxu0 0.0
      %263 = vmatpush1.msra.mxu0 0.0
      %264 = vmatprep.subr.mxu0 0.0
      %265 = vmatpush1.msra.mxu0 0.0
      %266 = vmatprep.subr.mxu0 0.0
      %267 = vmatpush1.msra.mxu0 0.0
      %268 = vmatprep.subr.mxu0 0.0
      %269 = vmatpush1.msra.mxu0 0.0
      %270 = vmatprep.subr.mxu0 0.0
      %271 = vmatpush1.msra.mxu0 %v191
      %272 = vmatprep.subr.mxu0 0.0
      %273 = vmatpush1.msra.mxu0 %v190
      %274 = vmatprep.subr.mxu0 0.0
      %275 = vmatpush1.msra.mxu0 %v189
      %276 = vmatprep.subr.mxu0 0.0
      %277 = vmatpush1.msra.mxu0 %v188
      %278 = vmatprep.subr.mxu0 0.0
      %279 = vmatpush2.msra.mxu0 0.0
      %280 = vmatprep.subr.mxu0 0.0
      %281 = vmatpush2.msra.mxu0 0.0
      %282 = vmatprep.subr.mxu0 0.0
      %283 = vmatpush2.msra.mxu0 0.0
      %284 = vmatprep.subr.mxu0 0.0
      %285 = vmatpush2.msra.mxu0 0.0
      %286 = vmatprep.subr.mxu0 0.0
      %287 = vmatpush2.msra.mxu0 0.0
      %288 = vmatprep.subr.mxu0 0.0
      %289 = vmatpush2.msra.mxu0 0.0
      %290 = vmatprep.subr.mxu0 0.0
      %291 = vmatpush2.msra.mxu0 0.0
      %292 = vmatprep.subr.mxu0 0.0
      %293 = vmatpush2.msra.mxu0 0.0
      %294 = vmatprep.subr.mxu0 0.0
      %295 = vmatpush2.msra.mxu0 0.0
      %296 = vmatprep.subr.mxu0 0.0
      %297 = vmatpush2.msra.mxu0 0.0
      %298 = vmatprep.subr.mxu0 0.0
      %299 = vmatpush2.msra.mxu0 0.0
      %300 = vmatprep.subr.mxu0 0.0
      %301 = vmatpush2.msra.mxu0 0.0
      %302 = vmatprep.subr.mxu0 0.0
      %303 = vmatpush2.msra.mxu0 0.0
      %304 = vmatprep.subr.mxu0 0.0
      %305 = vmatpush2.msra.mxu0 0.0
      %306 = vmatprep.subr.mxu0 0.0
      %307 = vmatpush2.msra.mxu0 0.0
      %308 = vmatprep.subr.mxu0 0.0
      %309 = vmatpush2.msra.mxu0 0.0
      %310 = vmatprep.mubr.f32.mxu0 0.0
      %311 = vmatmul.mubr.f32.gmra.mxu0 %v242
      %v312 = vpop.f32.mrf.mxu0
      %v313 = vadd.f32 %v197, %v312
      %v314 = vpop.f32.mrf.mxu0
      %315 = vmatprep.mubr.f32.mxu0 0.0
      %316 = vmatmul.mubr.f32.gmra.mxu0 %v244
      %v317 = vpop.f32.mrf.mxu0
      %v318 = vadd.f32 %v197, %v317
      %v319 = vpop.f32.mrf.mxu0
      %320 = vdwg.mxu0
      %v323 = vcombine.high %v313, %v313
      %v325 = vunpack.c.l.s4 1983009808
      %v326 = vunpack.c.0.s8 %v325
      %v327 = vlaneseq
      %v328 = vshrl.u32 %v327, 7
      %v329 = vsub.s32 %v326, %v328
      %v330 = vrot.slane %v313, %v329
      %v332 = vunpack.c.l.s4 1983009808
      %v333 = vunpack.c.0.s8 %v332
      %v334 = vlaneseq
      %v335 = vshrl.u32 %v334, 7
      %v336 = vsub.s32 %v333, %v335
      %v337 = vrot.slane %v323, %v336
      %v338 = vcombine.high %v330, %v330
      %v339 = vcombine.high %v337, %v337
      %v340 = vcombine.high %v318, %v318
      %v342 = vunpack.c.l.s4 1983009808
      %v343 = vunpack.c.0.s8 %v342
      %v344 = vlaneseq
      %v345 = vshrl.u32 %v344, 7
      %v346 = vsub.s32 %v343, %v345
      %v347 = vrot.slane %v318, %v346
      %v349 = vunpack.c.l.s4 1983009808
      %v350 = vunpack.c.0.s8 %v349
      %v351 = vlaneseq
      %v352 = vshrl.u32 %v351, 7
      %v353 = vsub.s32 %v350, %v352
      %v354 = vrot.slane %v340, %v353
      %v355 = vcombine.high %v347, %v347
      %v356 = vcombine.high %v354, %v354
      %v365 = vcombine.low %v330, %v338
      %v367 = vunpack.c.l.s4 1934713408
      %v368 = vunpack.c.0.s8 %v367
      %v369 = vlaneseq
      %v370 = vshrl.u32 %v369, 7
      %v371 = vsub.s32 %v368, %v370
      %v372 = vrot.slane %v365, %v371
      %v373 = vcombine.high %v372, 0.0
      %v374 = vcombine.low %v337, %v339
      %v376 = vunpack.c.l.s4 1934713408
      %v377 = vunpack.c.0.s8 %v376
      %v378 = vlaneseq
      %v379 = vshrl.u32 %v378, 7
      %v380 = vsub.s32 %v377, %v379
      %v381 = vrot.slane %v374, %v380
      %v382 = vcombine.high %v381, 0.0
      %v383 = vcombine.low %v347, %v355
      %v385 = vunpack.c.l.s4 1934713408
      %v386 = vunpack.c.0.s8 %v385
      %v387 = vlaneseq
      %v388 = vshrl.u32 %v387, 7
      %v389 = vsub.s32 %v386, %v388
      %v390 = vrot.slane %v383, %v389
      %v391 = vcombine.high %v390, 0.0
      %v392 = vcombine.low %v354, %v356
      %v394 = vunpack.c.l.s4 1934713408
      %v395 = vunpack.c.0.s8 %v394
      %v396 = vlaneseq
      %v397 = vshrl.u32 %v396, 7
      %v398 = vsub.s32 %v395, %v397
      %v399 = vrot.slane %v392, %v398
      %v400 = vcombine.high %v399, 0.0
      %v409 = vcombine.low %v372, %v381
      %v410 = vcombine.low %v390, %v399
      %v412 = vunpack.c.l.s4 1983009808
      %v413 = vunpack.c.0.s8 %v412
      %v414 = vlaneseq
      %v415 = vshrl.u32 %v414, 7
      %v416 = vsub.s32 %v413, %v415
      %v417 = vrot.slane %v409, %v416
      %v419 = vunpack.c.l.s4 1983009808
      %v420 = vunpack.c.0.s8 %v419
      %v421 = vlaneseq
      %v422 = vshrl.u32 %v421, 7
      %v423 = vsub.s32 %v420, %v422
      %v424 = vrot.slane %v410, %v423
      %v425 = vcombine.low %v417, %v424
      %v426 = vcombine.low %v373, %v382
      %v427 = vcombine.low %v391, %v400
      %v429 = vunpack.c.l.s4 1983009808
      %v430 = vunpack.c.0.s8 %v429
      %v431 = vlaneseq
      %v432 = vshrl.u32 %v431, 7
      %v433 = vsub.s32 %v430, %v432
      %v434 = vrot.slane %v426, %v433
      %v436 = vunpack.c.l.s4 1983009808
      %v437 = vunpack.c.0.s8 %v436
      %v438 = vlaneseq
      %v439 = vshrl.u32 %v438, 7
      %v440 = vsub.s32 %v437, %v439
      %v441 = vrot.slane %v427, %v440
      %v442 = vcombine.low %v434, %v441
      %445 = vst.msk [vmem:[#allocation2] sm:$0xff] %vm241, %v425
      %446 = vst.msk [vmem:[#allocation2 + $0x8] sm:$0xff] %vm241, %v442
      %447 = vst.msk [vmem:[#allocation3] sm:$0xff] %vm241, 0.0
      %448 = vst.msk [vmem:[#allocation3 + $0x8] sm:$0xff] %vm241, 0.0
      %vm449 = vcmask 31744
      %450 = vst.msk [vmem:[#allocation4] sm:$0xff] %vm449, -inf
      %451 = vst.msk [vmem:[#allocation4 + $0x8] sm:$0xff] %vm449, -inf
      %452 = vst.msk [vmem:[#allocation5] sm:$0xff] %vm449, 0.0
      %453 = vst.msk [vmem:[#allocation5 + $0x8] sm:$0xff] %vm449, 0.0
      %vm454 = vcmask 130048
      %455 = vst.msk [vmem:[#allocation6] sm:$0xff] %vm454, 0.0
      %456 = vst.msk [vmem:[#allocation6 + $0x8] sm:$0xff] %vm454, 0.0
    $region93: #{tpu_custom_call.1} parent=1 // pred_fallthru
      _
    %v457 = vld [vmem:[#allocation10] sm:$0x3]
    %v458 = vld [vmem:[#allocation10 + $0x2] sm:$0x3]
    %v459 = vld [vmem:[#allocation10 + $0x4] sm:$0x3]
    %v460 = vld [vmem:[#allocation10 + $0x6] sm:$0x3]
    %v461 = vld [vmem:[#allocation10 + $0x8] sm:$0x3]
    %v462 = vld [vmem:[#allocation10 + $0xa] sm:$0x3]
    %v463 = vld [vmem:[#allocation10 + $0xc] sm:$0x3]
    %v464 = vld [vmem:[#allocation10 + $0xe] sm:$0x3]
    %v465 = vld [vmem:[#allocation10 + $0x10] sm:$0x3]
    %v466 = vld [vmem:[#allocation10 + $0x12] sm:$0x3]
    %v467 = vld [vmem:[#allocation10 + $0x14] sm:$0x3]
    %v468 = vld [vmem:[#allocation10 + $0x16] sm:$0x3]
    %v469 = vld [vmem:[#allocation10 + $0x18] sm:$0x3]
    %v470 = vld [vmem:[#allocation10 + $0x1a] sm:$0x3]
    %v471 = vld [vmem:[#allocation10 + $0x1c] sm:$0x3]
    %v472 = vld [vmem:[#allocation10 + $0x1e] sm:$0x3]
    %v473 = vld [vmem:[#allocation13] sm:$0x3]
    %v474 = vld [vmem:[#allocation13 + $0x2] sm:$0x3]
    %v475 = vld [vmem:[#allocation13 + $0x4] sm:$0x3]
    %v476 = vld [vmem:[#allocation13 + $0x6] sm:$0x3]
    %v477 = vld [vmem:[#allocation13 + $0x8] sm:$0x3]
    %v478 = vld [vmem:[#allocation13 + $0xa] sm:$0x3]
    %v479 = vld [vmem:[#allocation13 + $0xc] sm:$0x3]
    %v480 = vld [vmem:[#allocation13 + $0xe] sm:$0x3]
    %v481 = vld [vmem:[#allocation13 + $0x10] sm:$0x3]
    %v482 = vld [vmem:[#allocation13 + $0x12] sm:$0x3]
    %v483 = vld [vmem:[#allocation13 + $0x14] sm:$0x3]
    %v484 = vld [vmem:[#allocation13 + $0x16] sm:$0x3]
    %v485 = vld [vmem:[#allocation13 + $0x18] sm:$0x3]
    %v486 = vld [vmem:[#allocation13 + $0x1a] sm:$0x3]
    %v487 = vld [vmem:[#allocation13 + $0x1c] sm:$0x3]
    %v488 = vld [vmem:[#allocation13 + $0x1e] sm:$0x3]
    %v489 = vadd.f32 %v457, %v473
    %v490 = vadd.f32 %v458, %v474
    %v491 = vadd.f32 %v459, %v475
    %v492 = vadd.f32 %v460, %v476
    %v493 = vadd.f32 %v461, %v477
    %v494 = vadd.f32 %v462, %v478
    %v495 = vadd.f32 %v463, %v479
    %v496 = vadd.f32 %v464, %v480
    %v497 = vadd.f32 %v465, %v481
    %v498 = vadd.f32 %v466, %v482
    %v499 = vadd.f32 %v467, %v483
    %v500 = vadd.f32 %v468, %v484
    %v501 = vadd.f32 %v469, %v485
    %v502 = vadd.f32 %v470, %v486
    %v503 = vadd.f32 %v471, %v487
    %v504 = vadd.f32 %v472, %v488
    %v505 = vld [vmem:[#allocation16] sm:$0xff]
    %v506 = vld [vmem:[#allocation16 + $0x8] sm:$0xff]
    %v507 = vld [vmem:[#allocation16 + $0x10] sm:$0xff]
    %v508 = vld [vmem:[#allocation16 + $0x18] sm:$0xff]
    %v509 = vld [vmem:[%s9] sm:$0x1]
    %v511 = vlaneseq
    %v512 = vshrl.u32 %v511, 7
    %v513 = vsub.s32 0, %v512
    %v514 = vrot.slane %v509, %v513
    %v532 = vcombine.low %v489, %v490
    %v533 = vcombine.low %v491, %v492
    %v535 = vunpack.c.l.s4 1983009808
    %v536 = vunpack.c.0.s8 %v535
    %v537 = vlaneseq
    %v538 = vshrl.u32 %v537, 7
    %v539 = vsub.s32 %v536, %v538
    %v540 = vrot.slane %v532, %v539
    %v542 = vunpack.c.l.s4 1983009808
    %v543 = vunpack.c.0.s8 %v542
    %v544 = vlaneseq
    %v545 = vshrl.u32 %v544, 7
    %v546 = vsub.s32 %v543, %v545
    %v547 = vrot.slane %v533, %v546
    %v548 = vcombine.low %v540, %v547
    %v549 = vcombine.low %v493, %v494
    %v550 = vcombine.low %v495, %v496
    %v552 = vunpack.c.l.s4 1983009808
    %v553 = vunpack.c.0.s8 %v552
    %v554 = vlaneseq
    %v555 = vshrl.u32 %v554, 7
    %v556 = vsub.s32 %v553, %v555
    %v557 = vrot.slane %v549, %v556
    %v559 = vunpack.c.l.s4 1983009808
    %v560 = vunpack.c.0.s8 %v559
    %v561 = vlaneseq
    %v562 = vshrl.u32 %v561, 7
    %v563 = vsub.s32 %v560, %v562
    %v564 = vrot.slane %v550, %v563
    %v565 = vcombine.low %v557, %v564
    %v566 = vcombine.low %v497, %v498
    %v567 = vcombine.low %v499, %v500
    %v569 = vunpack.c.l.s4 1983009808
    %v570 = vunpack.c.0.s8 %v569
    %v571 = vlaneseq
    %v572 = vshrl.u32 %v571, 7
    %v573 = vsub.s32 %v570, %v572
    %v574 = vrot.slane %v566, %v573
    %v576 = vunpack.c.l.s4 1983009808
    %v577 = vunpack.c.0.s8 %v576
    %v578 = vlaneseq
    %v579 = vshrl.u32 %v578, 7
    %v580 = vsub.s32 %v577, %v579
    %v581 = vrot.slane %v567, %v580
    %v582 = vcombine.low %v574, %v581
    %v583 = vcombine.low %v501, %v502
    %v584 = vcombine.low %v503, %v504
    %v586 = vunpack.c.l.s4 1983009808
    %v587 = vunpack.c.0.s8 %v586
    %v588 = vlaneseq
    %v589 = vshrl.u32 %v588, 7
    %v590 = vsub.s32 %v587, %v589
    %v591 = vrot.slane %v583, %v590
    %v593 = vunpack.c.l.s4 1983009808
    %v594 = vunpack.c.0.s8 %v593
    %v595 = vlaneseq
    %v596 = vshrl.u32 %v595, 7
    %v597 = vsub.s32 %v594, %v596
    %v598 = vrot.slane %v584, %v597
    %v599 = vcombine.low %v591, %v598
    %vm600 = vcmask 261120
    %v601 = vsel %vm600, %v548, 0
    %v603 = vsel %vm600, %v565, 0
    %v605 = vsel %vm600, %v582, 0
    %v607 = vsel %vm600, %v599, 0
    %609 = vmatprep.subr.mxu0 0.0
    %610 = vmatpush1.msra.mxu0 0.0
    %611 = vmatprep.subr.mxu0 0.0
    %612 = vmatpush1.msra.mxu0 0.0
    %613 = vmatprep.subr.mxu0 0.0
    %614 = vmatpush1.msra.mxu0 0.0
    %615 = vmatprep.subr.mxu0 0.0
    %616 = vmatpush1.msra.mxu0 0.0
    %617 = vmatprep.subr.mxu0 0.0
    %618 = vmatpush1.msra.mxu0 0.0
    %619 = vmatprep.subr.mxu0 0.0
    %620 = vmatpush1.msra.mxu0 0.0
    %621 = vmatprep.subr.mxu0 0.0
    %622 = vmatpush1.msra.mxu0 0.0
    %623 = vmatprep.subr.mxu0 0.0
    %624 = vmatpush1.msra.mxu0 0.0
    %625 = vmatprep.subr.mxu0 0.0
    %626 = vmatpush1.msra.mxu0 0.0
    %627 = vmatprep.subr.mxu0 0.0
    %628 = vmatpush1.msra.mxu0 0.0
    %629 = vmatprep.subr.mxu0 0.0
    %630 = vmatpush1.msra.mxu0 0.0
    %631 = vmatprep.subr.mxu0 0.0
    %632 = vmatpush1.msra.mxu0 0.0
    %633 = vmatprep.subr.mxu0 0.0
    %634 = vmatpush1.msra.mxu0 %v508
    %635 = vmatprep.subr.mxu0 0.0
    %636 = vmatpush1.msra.mxu0 %v507
    %637 = vmatprep.subr.mxu0 0.0
    %638 = vmatpush1.msra.mxu0 %v506
    %639 = vmatprep.subr.mxu0 0.0
    %640 = vmatpush1.msra.mxu0 %v505
    %641 = vmatprep.subr.mxu0 0.0
    %642 = vmatpush2.msra.mxu0 0.0
    %643 = vmatprep.subr.mxu0 0.0
    %644 = vmatpush2.msra.mxu0 0.0
    %645 = vmatprep.subr.mxu0 0.0
    %646 = vmatpush2.msra.mxu0 0.0
    %647 = vmatprep.subr.mxu0 0.0
    %648 = vmatpush2.msra.mxu0 0.0
    %649 = vmatprep.subr.mxu0 0.0
    %650 = vmatpush2.msra.mxu0 0.0
    %651 = vmatprep.subr.mxu0 0.0
    %652 = vmatpush2.msra.mxu0 0.0
    %653 = vmatprep.subr.mxu0 0.0
    %654 = vmatpush2.msra.mxu0 0.0
    %655 = vmatprep.subr.mxu0 0.0
    %656 = vmatpush2.msra.mxu0 0.0
    %657 = vmatprep.subr.mxu0 0.0
    %658 = vmatpush2.msra.mxu0 0.0
    %659 = vmatprep.subr.mxu0 0.0
    %660 = vmatpush2.msra.mxu0 0.0
    %661 = vmatprep.subr.mxu0 0.0
    %662 = vmatpush2.msra.mxu0 0.0
    %663 = vmatprep.subr.mxu0 0.0
    %664 = vmatpush2.msra.mxu0 0.0
    %665 = vmatprep.subr.mxu0 0.0
    %666 = vmatpush2.msra.mxu0 0.0
    %667 = vmatprep.subr.mxu0 0.0
    %668 = vmatpush2.msra.mxu0 0.0
    %669 = vmatprep.subr.mxu0 0.0
    %670 = vmatpush2.msra.mxu0 0.0
    %671 = vmatprep.subr.mxu0 0.0
    %672 = vmatpush2.msra.mxu0 0.0
    %673 = vmatprep.mubr.f32.mxu0 0.0
    %674 = vmatmul.mubr.f32.gmra.mxu0 %v601
    %v675 = vpop.f32.mrf.mxu0
    %v676 = vadd.f32 %v514, %v675
    %v677 = vpop.f32.mrf.mxu0
    %678 = vmatprep.mubr.f32.mxu0 0.0
    %679 = vmatmul.mubr.f32.gmra.mxu0 %v603
    %v680 = vpop.f32.mrf.mxu0
    %v681 = vadd.f32 %v514, %v680
    %v682 = vpop.f32.mrf.mxu0
    %683 = vmatprep.mubr.f32.mxu0 0.0
    %684 = vmatmul.mubr.f32.gmra.mxu0 %v605
    %v685 = vpop.f32.mrf.mxu0
    %v686 = vadd.f32 %v514, %v685
    %v687 = vpop.f32.mrf.mxu0
    %688 = vmatprep.mubr.f32.mxu0 0.0
    %689 = vmatmul.mubr.f32.gmra.mxu0 %v607
    %v690 = vpop.f32.mrf.mxu0
    %v691 = vadd.f32 %v514, %v690
    %v692 = vpop.f32.mrf.mxu0
    %693 = vdwg.mxu0
    %v694 = vld [vmem:[#allocation18] sm:$0xff]
    %v695 = vld [vmem:[#allocation18 + $0x8] sm:$0xff]
    %v696 = vld [vmem:[#allocation18 + $0x10] sm:$0xff]
    %v697 = vld [vmem:[#allocation18 + $0x18] sm:$0xff]
    %v698 = vld [vmem:[%s10] sm:$0x1]
    %v700 = vlaneseq
    %v701 = vshrl.u32 %v700, 7
    %v702 = vsub.s32 0, %v701
    %v703 = vrot.slane %v698, %v702
    %v721 = vcombine.low %v457, %v458
    %v722 = vcombine.low %v459, %v460
    %v724 = vunpack.c.l.s4 1983009808
    %v725 = vunpack.c.0.s8 %v724
    %v726 = vlaneseq
    %v727 = vshrl.u32 %v726, 7
    %v728 = vsub.s32 %v725, %v727
    %v729 = vrot.slane %v721, %v728
    %v731 = vunpack.c.l.s4 1983009808
    %v732 = vunpack.c.0.s8 %v731
    %v733 = vlaneseq
    %v734 = vshrl.u32 %v733, 7
    %v735 = vsub.s32 %v732, %v734
    %v736 = vrot.slane %v722, %v735
    %v737 = vcombine.low %v729, %v736
    %v738 = vcombine.low %v461, %v462
    %v739 = vcombine.low %v463, %v464
    %v741 = vunpack.c.l.s4 1983009808
    %v742 = vunpack.c.0.s8 %v741
    %v743 = vlaneseq
    %v744 = vshrl.u32 %v743, 7
    %v745 = vsub.s32 %v742, %v744
    %v746 = vrot.slane %v738, %v745
    %v748 = vunpack.c.l.s4 1983009808
    %v749 = vunpack.c.0.s8 %v748
    %v750 = vlaneseq
    %v751 = vshrl.u32 %v750, 7
    %v752 = vsub.s32 %v749, %v751
    %v753 = vrot.slane %v739, %v752
    %v754 = vcombine.low %v746, %v753
    %v755 = vcombine.low %v465, %v466
    %v756 = vcombine.low %v467, %v468
    %v758 = vunpack.c.l.s4 1983009808
    %v759 = vunpack.c.0.s8 %v758
    %v760 = vlaneseq
    %v761 = vshrl.u32 %v760, 7
    %v762 = vsub.s32 %v759, %v761
    %v763 = vrot.slane %v755, %v762
    %v765 = vunpack.c.l.s4 1983009808
    %v766 = vunpack.c.0.s8 %v765
    %v767 = vlaneseq
    %v768 = vshrl.u32 %v767, 7
    %v769 = vsub.s32 %v766, %v768
    %v770 = vrot.slane %v756, %v769
    %v771 = vcombine.low %v763, %v770
    %v772 = vcombine.low %v469, %v470
    %v773 = vcombine.low %v471, %v472
    %v775 = vunpack.c.l.s4 1983009808
    %v776 = vunpack.c.0.s8 %v775
    %v777 = vlaneseq
    %v778 = vshrl.u32 %v777, 7
    %v779 = vsub.s32 %v776, %v778
    %v780 = vrot.slane %v772, %v779
    %v782 = vunpack.c.l.s4 1983009808
    %v783 = vunpack.c.0.s8 %v782
    %v784 = vlaneseq
    %v785 = vshrl.u32 %v784, 7
    %v786 = vsub.s32 %v783, %v785
    %v787 = vrot.slane %v773, %v786
    %v788 = vcombine.low %v780, %v787
    %v789 = vsel %vm600, %v737, 0
    %v791 = vsel %vm600, %v754, 0
    %v793 = vsel %vm600, %v771, 0
    %v795 = vsel %vm600, %v788, 0
    %797 = vmatprep.subr.mxu0 0.0
    %798 = vmatpush1.msra.mxu0 0.0
    %799 = vmatprep.subr.mxu0 0.0
    %800 = vmatpush1.msra.mxu0 0.0
    %801 = vmatprep.subr.mxu0 0.0
    %802 = vmatpush1.msra.mxu0 0.0
    %803 = vmatprep.subr.mxu0 0.0
    %804 = vmatpush1.msra.mxu0 0.0
    %805 = vmatprep.subr.mxu0 0.0
    %806 = vmatpush1.msra.mxu0 0.0
    %807 = vmatprep.subr.mxu0 0.0
    %808 = vmatpush1.msra.mxu0 0.0
    %809 = vmatprep.subr.mxu0 0.0
    %810 = vmatpush1.msra.mxu0 0.0
    %811 = vmatprep.subr.mxu0 0.0
    %812 = vmatpush1.msra.mxu0 0.0
    %813 = vmatprep.subr.mxu0 0.0
    %814 = vmatpush1.msra.mxu0 0.0
    %815 = vmatprep.subr.mxu0 0.0
    %816 = vmatpush1.msra.mxu0 0.0
    %817 = vmatprep.subr.mxu0 0.0
    %818 = vmatpush1.msra.mxu0 0.0
    %819 = vmatprep.subr.mxu0 0.0
    %820 = vmatpush1.msra.mxu0 0.0
    %821 = vmatprep.subr.mxu0 0.0
    %822 = vmatpush1.msra.mxu0 %v697
    %823 = vmatprep.subr.mxu0 0.0
    %824 = vmatpush1.msra.mxu0 %v696
    %825 = vmatprep.subr.mxu0 0.0
    %826 = vmatpush1.msra.mxu0 %v695
    %827 = vmatprep.subr.mxu0 0.0
    %828 = vmatpush1.msra.mxu0 %v694
    %829 = vmatprep.subr.mxu0 0.0
    %830 = vmatpush2.msra.mxu0 0.0
    %831 = vmatprep.subr.mxu0 0.0
    %832 = vmatpush2.msra.mxu0 0.0
    %833 = vmatprep.subr.mxu0 0.0
    %834 = vmatpush2.msra.mxu0 0.0
    %835 = vmatprep.subr.mxu0 0.0
    %836 = vmatpush2.msra.mxu0 0.0
    %837 = vmatprep.subr.mxu0 0.0
    %838 = vmatpush2.msra.mxu0 0.0
    %839 = vmatprep.subr.mxu0 0.0
    %840 = vmatpush2.msra.mxu0 0.0
    %841 = vmatprep.subr.mxu0 0.0
    %842 = vmatpush2.msra.mxu0 0.0
    %843 = vmatprep.subr.mxu0 0.0
    %844 = vmatpush2.msra.mxu0 0.0
    %845 = vmatprep.subr.mxu0 0.0
    %846 = vmatpush2.msra.mxu0 0.0
    %847 = vmatprep.subr.mxu0 0.0
    %848 = vmatpush2.msra.mxu0 0.0
    %849 = vmatprep.subr.mxu0 0.0
    %850 = vmatpush2.msra.mxu0 0.0
    %851 = vmatprep.subr.mxu0 0.0
    %852 = vmatpush2.msra.mxu0 0.0
    %853 = vmatprep.subr.mxu0 0.0
    %854 = vmatpush2.msra.mxu0 0.0
    %855 = vmatprep.subr.mxu0 0.0
    %856 = vmatpush2.msra.mxu0 0.0
    %857 = vmatprep.subr.mxu0 0.0
    %858 = vmatpush2.msra.mxu0 0.0
    %859 = vmatprep.subr.mxu0 0.0
    %860 = vmatpush2.msra.mxu0 0.0
    %861 = vmatprep.mubr.f32.mxu0 0.0
    %862 = vmatmul.mubr.f32.gmra.mxu0 %v789
    %v863 = vpop.f32.mrf.mxu0
    %v864 = vadd.f32 %v703, %v863
    %v865 = vpop.f32.mrf.mxu0
    %866 = vmatprep.mubr.f32.mxu0 0.0
    %867 = vmatmul.mubr.f32.gmra.mxu0 %v791
    %v868 = vpop.f32.mrf.mxu0
    %v869 = vadd.f32 %v703, %v868
    %v870 = vpop.f32.mrf.mxu0
    %871 = vmatprep.mubr.f32.mxu0 0.0
    %872 = vmatmul.mubr.f32.gmra.mxu0 %v793
    %v873 = vpop.f32.mrf.mxu0
    %v874 = vadd.f32 %v703, %v873
    %v875 = vpop.f32.mrf.mxu0
    %876 = vmatprep.mubr.f32.mxu0 0.0
    %877 = vmatmul.mubr.f32.gmra.mxu0 %v795
    %v878 = vpop.f32.mrf.mxu0
    %v879 = vadd.f32 %v703, %v878
    %v880 = vpop.f32.mrf.mxu0
    %881 = vdwg.mxu0
    %v886 = vcombine.high %v676, %v676
    %v888 = vunpack.c.l.s4 1983009808
    %v889 = vunpack.c.0.s8 %v888
    %v890 = vlaneseq
    %v891 = vshrl.u32 %v890, 7
    %v892 = vsub.s32 %v889, %v891
    %v893 = vrot.slane %v676, %v892
    %v895 = vunpack.c.l.s4 1983009808
    %v896 = vunpack.c.0.s8 %v895
    %v897 = vlaneseq
    %v898 = vshrl.u32 %v897, 7
    %v899 = vsub.s32 %v896, %v898
    %v900 = vrot.slane %v886, %v899
    %v901 = vcombine.high %v893, %v893
    %v902 = vcombine.high %v900, %v900
    %v903 = vcombine.high %v681, %v681
    %v905 = vunpack.c.l.s4 1983009808
    %v906 = vunpack.c.0.s8 %v905
    %v907 = vlaneseq
    %v908 = vshrl.u32 %v907, 7
    %v909 = vsub.s32 %v906, %v908
    %v910 = vrot.slane %v681, %v909
    %v912 = vunpack.c.l.s4 1983009808
    %v913 = vunpack.c.0.s8 %v912
    %v914 = vlaneseq
    %v915 = vshrl.u32 %v914, 7
    %v916 = vsub.s32 %v913, %v915
    %v917 = vrot.slane %v903, %v916
    %v918 = vcombine.high %v910, %v910
    %v919 = vcombine.high %v917, %v917
    %v920 = vcombine.high %v686, %v686
    %v922 = vunpack.c.l.s4 1983009808
    %v923 = vunpack.c.0.s8 %v922
    %v924 = vlaneseq
    %v925 = vshrl.u32 %v924, 7
    %v926 = vsub.s32 %v923, %v925
    %v927 = vrot.slane %v686, %v926
    %v929 = vunpack.c.l.s4 1983009808
    %v930 = vunpack.c.0.s8 %v929
    %v931 = vlaneseq
    %v932 = vshrl.u32 %v931, 7
    %v933 = vsub.s32 %v930, %v932
    %v934 = vrot.slane %v920, %v933
    %v935 = vcombine.high %v927, %v927
    %v936 = vcombine.high %v934, %v934
    %v937 = vcombine.high %v691, %v691
    %v939 = vunpack.c.l.s4 1983009808
    %v940 = vunpack.c.0.s8 %v939
    %v941 = vlaneseq
    %v942 = vshrl.u32 %v941, 7
    %v943 = vsub.s32 %v940, %v942
    %v944 = vrot.slane %v691, %v943
    %v946 = vunpack.c.l.s4 1983009808
    %v947 = vunpack.c.0.s8 %v946
    %v948 = vlaneseq
    %v949 = vshrl.u32 %v948, 7
    %v950 = vsub.s32 %v947, %v949
    %v951 = vrot.slane %v937, %v950
    %v952 = vcombine.high %v944, %v944
    %v953 = vcombine.high %v951, %v951
    %v970 = vcombine.low %v893, %v901
    %v972 = vunpack.c.l.s4 1934713408
    %v973 = vunpack.c.0.s8 %v972
    %v974 = vlaneseq
    %v975 = vshrl.u32 %v974, 7
    %v976 = vsub.s32 %v973, %v975
    %v977 = vrot.slane %v970, %v976
    %v978 = vcombine.high %v977, 0.0
    %v979 = vcombine.low %v900, %v902
    %v981 = vunpack.c.l.s4 1934713408
    %v982 = vunpack.c.0.s8 %v981
    %v983 = vlaneseq
    %v984 = vshrl.u32 %v983, 7
    %v985 = vsub.s32 %v982, %v984
    %v986 = vrot.slane %v979, %v985
    %v987 = vcombine.high %v986, 0.0
    %v988 = vcombine.low %v910, %v918
    %v990 = vunpack.c.l.s4 1934713408
    %v991 = vunpack.c.0.s8 %v990
    %v992 = vlaneseq
    %v993 = vshrl.u32 %v992, 7
    %v994 = vsub.s32 %v991, %v993
    %v995 = vrot.slane %v988, %v994
    %v996 = vcombine.high %v995, 0.0
    %v997 = vcombine.low %v917, %v919
    %v999 = vunpack.c.l.s4 1934713408
    %v1000 = vunpack.c.0.s8 %v999
    %v1001 = vlaneseq
    %v1002 = vshrl.u32 %v1001, 7
    %v1003 = vsub.s32 %v1000, %v1002
    %v1004 = vrot.slane %v997, %v1003
    %v1005 = vcombine.high %v1004, 0.0
    %v1006 = vcombine.low %v927, %v935
    %v1008 = vunpack.c.l.s4 1934713408
    %v1009 = vunpack.c.0.s8 %v1008
    %v1010 = vlaneseq
    %v1011 = vshrl.u32 %v1010, 7
    %v1012 = vsub.s32 %v1009, %v1011
    %v1013 = vrot.slane %v1006, %v1012
    %v1014 = vcombine.high %v1013, 0.0
    %v1015 = vcombine.low %v934, %v936
    %v1017 = vunpack.c.l.s4 1934713408
    %v1018 = vunpack.c.0.s8 %v1017
    %v1019 = vlaneseq
    %v1020 = vshrl.u32 %v1019, 7
    %v1021 = vsub.s32 %v1018, %v1020
    %v1022 = vrot.slane %v1015, %v1021
    %v1023 = vcombine.high %v1022, 0.0
    %v1024 = vcombine.low %v944, %v952
    %v1026 = vunpack.c.l.s4 1934713408
    %v1027 = vunpack.c.0.s8 %v1026
    %v1028 = vlaneseq
    %v1029 = vshrl.u32 %v1028, 7
    %v1030 = vsub.s32 %v1027, %v1029
    %v1031 = vrot.slane %v1024, %v1030
    %v1032 = vcombine.high %v1031, 0.0
    %v1033 = vcombine.low %v951, %v953
    %v1035 = vunpack.c.l.s4 1934713408
    %v1036 = vunpack.c.0.s8 %v1035
    %v1037 = vlaneseq
    %v1038 = vshrl.u32 %v1037, 7
    %v1039 = vsub.s32 %v1036, %v1038
    %v1040 = vrot.slane %v1033, %v1039
    %v1041 = vcombine.high %v1040, 0.0
    %v1046 = vcombine.high %v864, %v864
    %v1048 = vunpack.c.l.s4 1983009808
    %v1049 = vunpack.c.0.s8 %v1048
    %v1050 = vlaneseq
    %v1051 = vshrl.u32 %v1050, 7
    %v1052 = vsub.s32 %v1049, %v1051
    %v1053 = vrot.slane %v864, %v1052
    %v1055 = vunpack.c.l.s4 1983009808
    %v1056 = vunpack.c.0.s8 %v1055
    %v1057 = vlaneseq
    %v1058 = vshrl.u32 %v1057, 7
    %v1059 = vsub.s32 %v1056, %v1058
    %v1060 = vrot.slane %v1046, %v1059
    %v1061 = vcombine.high %v1053, %v1053
    %v1062 = vcombine.high %v1060, %v1060
    %v1063 = vcombine.high %v869, %v869
    %v1065 = vunpack.c.l.s4 1983009808
    %v1066 = vunpack.c.0.s8 %v1065
    %v1067 = vlaneseq
    %v1068 = vshrl.u32 %v1067, 7
    %v1069 = vsub.s32 %v1066, %v1068
    %v1070 = vrot.slane %v869, %v1069
    %v1072 = vunpack.c.l.s4 1983009808
    %v1073 = vunpack.c.0.s8 %v1072
    %v1074 = vlaneseq
    %v1075 = vshrl.u32 %v1074, 7
    %v1076 = vsub.s32 %v1073, %v1075
    %v1077 = vrot.slane %v1063, %v1076
    %v1078 = vcombine.high %v1070, %v1070
    %v1079 = vcombine.high %v1077, %v1077
    %v1080 = vcombine.high %v874, %v874
    %v1082 = vunpack.c.l.s4 1983009808
    %v1083 = vunpack.c.0.s8 %v1082
    %v1084 = vlaneseq
    %v1085 = vshrl.u32 %v1084, 7
    %v1086 = vsub.s32 %v1083, %v1085
    %v1087 = vrot.slane %v874, %v1086
    %v1089 = vunpack.c.l.s4 1983009808
    %v1090 = vunpack.c.0.s8 %v1089
    %v1091 = vlaneseq
    %v1092 = vshrl.u32 %v1091, 7
    %v1093 = vsub.s32 %v1090, %v1092
    %v1094 = vrot.slane %v1080, %v1093
    %v1095 = vcombine.high %v1087, %v1087
    %v1096 = vcombine.high %v1094, %v1094
    %v1097 = vcombine.high %v879, %v879
    %v1099 = vunpack.c.l.s4 1983009808
    %v1100 = vunpack.c.0.s8 %v1099
    %v1101 = vlaneseq
    %v1102 = vshrl.u32 %v1101, 7
    %v1103 = vsub.s32 %v1100, %v1102
    %v1104 = vrot.slane %v879, %v1103
    %v1106 = vunpack.c.l.s4 1983009808
    %v1107 = vunpack.c.0.s8 %v1106
    %v1108 = vlaneseq
    %v1109 = vshrl.u32 %v1108, 7
    %v1110 = vsub.s32 %v1107, %v1109
    %v1111 = vrot.slane %v1097, %v1110
    %v1112 = vcombine.high %v1104, %v1104
    %v1113 = vcombine.high %v1111, %v1111
    %v1130 = vcombine.low %v1053, %v1061
    %v1132 = vunpack.c.l.s4 1934713408
    %v1133 = vunpack.c.0.s8 %v1132
    %v1134 = vlaneseq
    %v1135 = vshrl.u32 %v1134, 7
    %v1136 = vsub.s32 %v1133, %v1135
    %v1137 = vrot.slane %v1130, %v1136
    %v1138 = vcombine.high %v1137, 0.0
    %v1139 = vcombine.low %v1060, %v1062
    %v1141 = vunpack.c.l.s4 1934713408
    %v1142 = vunpack.c.0.s8 %v1141
    %v1143 = vlaneseq
    %v1144 = vshrl.u32 %v1143, 7
    %v1145 = vsub.s32 %v1142, %v1144
    %v1146 = vrot.slane %v1139, %v1145
    %v1147 = vcombine.high %v1146, 0.0
    %v1148 = vcombine.low %v1070, %v1078
    %v1150 = vunpack.c.l.s4 1934713408
    %v1151 = vunpack.c.0.s8 %v1150
    %v1152 = vlaneseq
    %v1153 = vshrl.u32 %v1152, 7
    %v1154 = vsub.s32 %v1151, %v1153
    %v1155 = vrot.slane %v1148, %v1154
    %v1156 = vcombine.high %v1155, 0.0
    %v1157 = vcombine.low %v1077, %v1079
    %v1159 = vunpack.c.l.s4 1934713408
    %v1160 = vunpack.c.0.s8 %v1159
    %v1161 = vlaneseq
    %v1162 = vshrl.u32 %v1161, 7
    %v1163 = vsub.s32 %v1160, %v1162
    %v1164 = vrot.slane %v1157, %v1163
    %v1165 = vcombine.high %v1164, 0.0
    %v1166 = vcombine.low %v1087, %v1095
    %v1168 = vunpack.c.l.s4 1934713408
    %v1169 = vunpack.c.0.s8 %v1168
    %v1170 = vlaneseq
    %v1171 = vshrl.u32 %v1170, 7
    %v1172 = vsub.s32 %v1169, %v1171
    %v1173 = vrot.slane %v1166, %v1172
    %v1174 = vcombine.high %v1173, 0.0
    %v1175 = vcombine.low %v1094, %v1096
    %v1177 = vunpack.c.l.s4 1934713408
    %v1178 = vunpack.c.0.s8 %v1177
    %v1179 = vlaneseq
    %v1180 = vshrl.u32 %v1179, 7
    %v1181 = vsub.s32 %v1178, %v1180
    %v1182 = vrot.slane %v1175, %v1181
    %v1183 = vcombine.high %v1182, 0.0
    %v1184 = vcombine.low %v1104, %v1112
    %v1186 = vunpack.c.l.s4 1934713408
    %v1187 = vunpack.c.0.s8 %v1186
    %v1188 = vlaneseq
    %v1189 = vshrl.u32 %v1188, 7
    %v1190 = vsub.s32 %v1187, %v1189
    %v1191 = vrot.slane %v1184, %v1190
    %v1192 = vcombine.high %v1191, 0.0
    %v1193 = vcombine.low %v1111, %v1113
    %v1195 = vunpack.c.l.s4 1934713408
    %v1196 = vunpack.c.0.s8 %v1195
    %v1197 = vlaneseq
    %v1198 = vshrl.u32 %v1197, 7
    %v1199 = vsub.s32 %v1196, %v1198
    %v1200 = vrot.slane %v1193, %v1199
    %v1201 = vcombine.high %v1200, 0.0
    %v1202 = vld [vmem:[#allocation2] sm:$0xff]
    %v1203 = vld [vmem:[#allocation2 + $0x8] sm:$0xff]
    %v1212 = vcombine.low %v977, %v986
    %v1213 = vcombine.low %v995, %v1004
    %v1215 = vunpack.c.l.s4 1983009808
    %v1216 = vunpack.c.0.s8 %v1215
    %v1217 = vlaneseq
    %v1218 = vshrl.u32 %v1217, 7
    %v1219 = vsub.s32 %v1216, %v1218
    %v1220 = vrot.slane %v1212, %v1219
    %v1222 = vunpack.c.l.s4 1983009808
    %v1223 = vunpack.c.0.s8 %v1222
    %v1224 = vlaneseq
    %v1225 = vshrl.u32 %v1224, 7
    %v1226 = vsub.s32 %v1223, %v1225
    %v1227 = vrot.slane %v1213, %v1226
    %v1228 = vcombine.low %v1220, %v1227
    %v1229 = vcombine.low %v1013, %v1022
    %v1230 = vcombine.low %v1031, %v1040
    %v1232 = vunpack.c.l.s4 1983009808
    %v1233 = vunpack.c.0.s8 %v1232
    %v1234 = vlaneseq
    %v1235 = vshrl.u32 %v1234, 7
    %v1236 = vsub.s32 %v1233, %v1235
    %v1237 = vrot.slane %v1229, %v1236
    %v1239 = vunpack.c.l.s4 1983009808
    %v1240 = vunpack.c.0.s8 %v1239
    %v1241 = vlaneseq
    %v1242 = vshrl.u32 %v1241, 7
    %v1243 = vsub.s32 %v1240, %v1242
    %v1244 = vrot.slane %v1230, %v1243
    %v1245 = vcombine.low %v1237, %v1244
    %vm1246 = vcmask 64512
    %v1248 = vsel %vm1246, %v1202, 0
    %v1250 = vsel %vm1246, %v1228, 0
    %v1252 = vsel %vm1246, %v1245, 0
    %1254 = vmatprep.subr.mxu0 0.0
    %1255 = vmatpush1.xpose.msra.mxu0 0.0
    %1256 = vmatprep.subr.mxu0 0.0
    %1257 = vmatpush1.xpose.msra.mxu0 0.0
    %1258 = vmatprep.subr.mxu0 0.0
    %1259 = vmatpush1.xpose.msra.mxu0 0.0
    %1260 = vmatprep.subr.mxu0 0.0
    %1261 = vmatpush1.xpose.msra.mxu0 0.0
    %1262 = vmatprep.subr.mxu0 0.0
    %1263 = vmatpush1.xpose.msra.mxu0 0.0
    %1264 = vmatprep.subr.mxu0 0.0
    %1265 = vmatpush1.xpose.msra.mxu0 0.0
    %1266 = vmatprep.subr.mxu0 0.0
    %1267 = vmatpush1.xpose.msra.mxu0 0.0
    %1268 = vmatprep.subr.mxu0 0.0
    %1269 = vmatpush1.xpose.msra.mxu0 0.0
    %1270 = vmatprep.subr.mxu0 0.0
    %1271 = vmatpush1.xpose.msra.mxu0 0.0
    %1272 = vmatprep.subr.mxu0 0.0
    %1273 = vmatpush1.xpose.msra.mxu0 0.0
    %1274 = vmatprep.subr.mxu0 0.0
    %1275 = vmatpush1.xpose.msra.mxu0 0.0
    %1276 = vmatprep.subr.mxu0 0.0
    %1277 = vmatpush1.xpose.msra.mxu0 0.0
    %1278 = vmatprep.subr.mxu0 0.0
    %1279 = vmatpush1.xpose.msra.mxu0 0.0
    %1280 = vmatprep.subr.mxu0 0.0
    %1281 = vmatpush1.xpose.msra.mxu0 0.0
    %1282 = vmatprep.subr.mxu0 0.0
    %1283 = vmatpush1.xpose.msra.mxu0 %v1252
    %1284 = vmatprep.subr.mxu0 0.0
    %1285 = vmatpush1.xpose.msra.mxu0 %v1250
    %1286 = vmatprep.subr.mxu0 0.0
    %1287 = vmatpush2.xpose.msra.mxu0 0.0
    %1288 = vmatprep.subr.mxu0 0.0
    %1289 = vmatpush2.xpose.msra.mxu0 0.0
    %1290 = vmatprep.subr.mxu0 0.0
    %1291 = vmatpush2.xpose.msra.mxu0 0.0
    %1292 = vmatprep.subr.mxu0 0.0
    %1293 = vmatpush2.xpose.msra.mxu0 0.0
    %1294 = vmatprep.subr.mxu0 0.0
    %1295 = vmatpush2.xpose.msra.mxu0 0.0
    %1296 = vmatprep.subr.mxu0 0.0
    %1297 = vmatpush2.xpose.msra.mxu0 0.0
    %1298 = vmatprep.subr.mxu0 0.0
    %1299 = vmatpush2.xpose.msra.mxu0 0.0
    %1300 = vmatprep.subr.mxu0 0.0
    %1301 = vmatpush2.xpose.msra.mxu0 0.0
    %1302 = vmatprep.subr.mxu0 0.0
    %1303 = vmatpush2.xpose.msra.mxu0 0.0
    %1304 = vmatprep.subr.mxu0 0.0
    %1305 = vmatpush2.xpose.msra.mxu0 0.0
    %1306 = vmatprep.subr.mxu0 0.0
    %1307 = vmatpush2.xpose.msra.mxu0 0.0
    %1308 = vmatprep.subr.mxu0 0.0
    %1309 = vmatpush2.xpose.msra.mxu0 0.0
    %1310 = vmatprep.subr.mxu0 0.0
    %1311 = vmatpush2.xpose.msra.mxu0 0.0
    %1312 = vmatprep.subr.mxu0 0.0
    %1313 = vmatpush2.xpose.msra.mxu0 0.0
    %1314 = vmatprep.subr.mxu0 0.0
    %1315 = vmatpush2.xpose.msra.mxu0 0.0
    %1316 = vmatprep.subr.mxu0 0.0
    %1317 = vmatpush2.xpose.msra.mxu0 0.0
    %1318 = vmatprep.mubr.f32.mxu0 0.0
    %1319 = vmatmul.mubr.f32.gmra.mxu0 %v1248
    %v1320 = vpop.f32.mrf.mxu0
    %v1321 = vadd.f32 0.0, %v1320
    %v1322 = vpop.f32.mrf.mxu0
    %1323 = vdwg.mxu0
    %v1332 = vcombine.low %v978, %v987
    %v1333 = vcombine.low %v996, %v1005
    %v1335 = vunpack.c.l.s4 1983009808
    %v1336 = vunpack.c.0.s8 %v1335
    %v1337 = vlaneseq
    %v1338 = vshrl.u32 %v1337, 7
    %v1339 = vsub.s32 %v1336, %v1338
    %v1340 = vrot.slane %v1332, %v1339
    %v1342 = vunpack.c.l.s4 1983009808
    %v1343 = vunpack.c.0.s8 %v1342
    %v1344 = vlaneseq
    %v1345 = vshrl.u32 %v1344, 7
    %v1346 = vsub.s32 %v1343, %v1345
    %v1347 = vrot.slane %v1333, %v1346
    %v1348 = vcombine.low %v1340, %v1347
    %v1349 = vcombine.low %v1014, %v1023
    %v1350 = vcombine.low %v1032, %v1041
    %v1352 = vunpack.c.l.s4 1983009808
    %v1353 = vunpack.c.0.s8 %v1352
    %v1354 = vlaneseq
    %v1355 = vshrl.u32 %v1354, 7
    %v1356 = vsub.s32 %v1353, %v1355
    %v1357 = vrot.slane %v1349, %v1356
    %v1359 = vunpack.c.l.s4 1983009808
    %v1360 = vunpack.c.0.s8 %v1359
    %v1361 = vlaneseq
    %v1362 = vshrl.u32 %v1361, 7
    %v1363 = vsub.s32 %v1360, %v1362
    %v1364 = vrot.slane %v1350, %v1363
    %v1365 = vcombine.low %v1357, %v1364
    %v1367 = vsel %vm1246, %v1203, 0
    %v1369 = vsel %vm1246, %v1348, 0
    %v1371 = vsel %vm1246, %v1365, 0
    %1373 = vmatprep.subr.mxu0 0.0
    %1374 = vmatpush1.xpose.msra.mxu0 0.0
    %1375 = vmatprep.subr.mxu0 0.0
    %1376 = vmatpush1.xpose.msra.mxu0 0.0
    %1377 = vmatprep.subr.mxu0 0.0
    %1378 = vmatpush1.xpose.msra.mxu0 0.0
    %1379 = vmatprep.subr.mxu0 0.0
    %1380 = vmatpush1.xpose.msra.mxu0 0.0
    %1381 = vmatprep.subr.mxu0 0.0
    %1382 = vmatpush1.xpose.msra.mxu0 0.0
    %1383 = vmatprep.subr.mxu0 0.0
    %1384 = vmatpush1.xpose.msra.mxu0 0.0
    %1385 = vmatprep.subr.mxu0 0.0
    %1386 = vmatpush1.xpose.msra.mxu0 0.0
    %1387 = vmatprep.subr.mxu0 0.0
    %1388 = vmatpush1.xpose.msra.mxu0 0.0
    %1389 = vmatprep.subr.mxu0 0.0
    %1390 = vmatpush1.xpose.msra.mxu0 0.0
    %1391 = vmatprep.subr.mxu0 0.0
    %1392 = vmatpush1.xpose.msra.mxu0 0.0
    %1393 = vmatprep.subr.mxu0 0.0
    %1394 = vmatpush1.xpose.msra.mxu0 0.0
    %1395 = vmatprep.subr.mxu0 0.0
    %1396 = vmatpush1.xpose.msra.mxu0 0.0
    %1397 = vmatprep.subr.mxu0 0.0
    %1398 = vmatpush1.xpose.msra.mxu0 0.0
    %1399 = vmatprep.subr.mxu0 0.0
    %1400 = vmatpush1.xpose.msra.mxu0 0.0
    %1401 = vmatprep.subr.mxu0 0.0
    %1402 = vmatpush1.xpose.msra.mxu0 %v1371
    %1403 = vmatprep.subr.mxu0 0.0
    %1404 = vmatpush1.xpose.msra.mxu0 %v1369
    %1405 = vmatprep.subr.mxu0 0.0
    %1406 = vmatpush2.xpose.msra.mxu0 0.0
    %1407 = vmatprep.subr.mxu0 0.0
    %1408 = vmatpush2.xpose.msra.mxu0 0.0
    %1409 = vmatprep.subr.mxu0 0.0
    %1410 = vmatpush2.xpose.msra.mxu0 0.0
    %1411 = vmatprep.subr.mxu0 0.0
    %1412 = vmatpush2.xpose.msra.mxu0 0.0
    %1413 = vmatprep.subr.mxu0 0.0
    %1414 = vmatpush2.xpose.msra.mxu0 0.0
    %1415 = vmatprep.subr.mxu0 0.0
    %1416 = vmatpush2.xpose.msra.mxu0 0.0
    %1417 = vmatprep.subr.mxu0 0.0
    %1418 = vmatpush2.xpose.msra.mxu0 0.0
    %1419 = vmatprep.subr.mxu0 0.0
    %1420 = vmatpush2.xpose.msra.mxu0 0.0
    %1421 = vmatprep.subr.mxu0 0.0
    %1422 = vmatpush2.xpose.msra.mxu0 0.0
    %1423 = vmatprep.subr.mxu0 0.0
    %1424 = vmatpush2.xpose.msra.mxu0 0.0
    %1425 = vmatprep.subr.mxu0 0.0
    %1426 = vmatpush2.xpose.msra.mxu0 0.0
    %1427 = vmatprep.subr.mxu0 0.0
    %1428 = vmatpush2.xpose.msra.mxu0 0.0
    %1429 = vmatprep.subr.mxu0 0.0
    %1430 = vmatpush2.xpose.msra.mxu0 0.0
    %1431 = vmatprep.subr.mxu0 0.0
    %1432 = vmatpush2.xpose.msra.mxu0 0.0
    %1433 = vmatprep.subr.mxu0 0.0
    %1434 = vmatpush2.xpose.msra.mxu0 0.0
    %1435 = vmatprep.subr.mxu0 0.0
    %1436 = vmatpush2.xpose.msra.mxu0 0.0
    %1437 = vmatprep.mubr.f32.mxu0 0.0
    %1438 = vmatmul.mubr.f32.gmra.mxu0 %v1367
    %v1439 = vpop.f32.mrf.mxu0
    %v1440 = vadd.f32 0.0, %v1439
    %v1441 = vpop.f32.mrf.mxu0
    %1442 = vdwg.mxu0
    %v1443 = vld [vmem:[#allocation4] sm:$0xff]
    %v1444 = vld [vmem:[#allocation4 + $0x8] sm:$0xff]
    %vm1445 = vcmask 130048
    %v1446 = vsel %vm1445, %v1321, -inf
    %1447 = vmax.xlane.f32.xlu0 %v1446
    %v1448 = vpop.xlane.xlu0 %1447
    %v1449 = vsel %vm1445, %v1440, -inf
    %1450 = vmax.xlane.f32.xlu0 %v1449
    %v1451 = vpop.xlane.xlu0 %1450
    %v1452 = vmax.f32 %v1443, %v1448
    %v1453 = vmax.f32 %v1444, %v1451
    %v1454 = vsub.f32 %v1443, %v1452
    %v1455 = vsub.f32 %v1444, %v1453
    %v1456 = vmul.f32 %v1454, 1.442695
    %v1457 = vpow.pop %v1456
    %v1458 = vmul.f32 %v1455, 1.442695
    %v1459 = vpow.pop %v1458
    %1461 = vset.pattern.permute.xlu0 0
    %1462 = vperm.xlu0 %1461, %v1452
    %v1463 = vpop.permute.xlu0 %1462
    %1466 = vset.pattern.permute.xlu0 0
    %1467 = vperm.xlu0 %1466, %v1453
    %v1468 = vpop.permute.xlu0 %1467
    %v1470 = vsub.f32 %v1321, %v1463
    %v1471 = vsub.f32 %v1440, %v1468
    %v1472 = vmul.f32 %v1470, 1.442695
    %v1473 = vpow.pop %v1472
    %v1474 = vmul.f32 %v1471, 1.442695
    %v1475 = vpow.pop %v1474
    %v1476 = vld [vmem:[#allocation5] sm:$0xff]
    %v1477 = vld [vmem:[#allocation5 + $0x8] sm:$0xff]
    %v1478 = vmul.f32 %v1457, %v1476
    %v1479 = vmul.f32 %v1459, %v1477
    %v1480 = vsel %vm1445, %v1473, 0.0
    %1481 = vadd.xlane.f32.xlu0 %v1480
    %v1482 = vpop.xlane.xlu0 %1481
    %v1483 = vsel %vm1445, %v1475, 0.0
    %1484 = vadd.xlane.f32.xlu0 %v1483
    %v1485 = vpop.xlane.xlu0 %1484
    %v1486 = vadd.f32 %v1478, %v1482
    %v1487 = vadd.f32 %v1479, %v1485
    %v1496 = vcombine.low %v1137, %v1146
    %v1497 = vcombine.low %v1155, %v1164
    %v1499 = vunpack.c.l.s4 1983009808
    %v1500 = vunpack.c.0.s8 %v1499
    %v1501 = vlaneseq
    %v1502 = vshrl.u32 %v1501, 7
    %v1503 = vsub.s32 %v1500, %v1502
    %v1504 = vrot.slane %v1496, %v1503
    %v1506 = vunpack.c.l.s4 1983009808
    %v1507 = vunpack.c.0.s8 %v1506
    %v1508 = vlaneseq
    %v1509 = vshrl.u32 %v1508, 7
    %v1510 = vsub.s32 %v1507, %v1509
    %v1511 = vrot.slane %v1497, %v1510
    %v1512 = vcombine.low %v1504, %v1511
    %v1513 = vcombine.low %v1173, %v1182
    %v1514 = vcombine.low %v1191, %v1200
    %v1516 = vunpack.c.l.s4 1983009808
    %v1517 = vunpack.c.0.s8 %v1516
    %v1518 = vlaneseq
    %v1519 = vshrl.u32 %v1518, 7
    %v1520 = vsub.s32 %v1517, %v1519
    %v1521 = vrot.slane %v1513, %v1520
    %v1523 = vunpack.c.l.s4 1983009808
    %v1524 = vunpack.c.0.s8 %v1523
    %v1525 = vlaneseq
    %v1526 = vshrl.u32 %v1525, 7
    %v1527 = vsub.s32 %v1524, %v1526
    %v1528 = vrot.slane %v1514, %v1527
    %v1529 = vcombine.low %v1521, %v1528
    %v1533 = vsel %vm1445, %v1473, 0
    %1535 = vmatprep.subr.mxu0 0.0
    %1536 = vmatpush1.msra.mxu0 0.0
    %1537 = vmatprep.subr.mxu0 0.0
    %1538 = vmatpush1.msra.mxu0 0.0
    %1539 = vmatprep.subr.mxu0 0.0
    %1540 = vmatpush1.msra.mxu0 0.0
    %1541 = vmatprep.subr.mxu0 0.0
    %1542 = vmatpush1.msra.mxu0 0.0
    %1543 = vmatprep.subr.mxu0 0.0
    %1544 = vmatpush1.msra.mxu0 0.0
    %1545 = vmatprep.subr.mxu0 0.0
    %1546 = vmatpush1.msra.mxu0 0.0
    %1547 = vmatprep.subr.mxu0 0.0
    %1548 = vmatpush1.msra.mxu0 0.0
    %1549 = vmatprep.subr.mxu0 0.0
    %1550 = vmatpush1.msra.mxu0 0.0
    %1551 = vmatprep.subr.mxu0 0.0
    %1552 = vmatpush1.msra.mxu0 0.0
    %1553 = vmatprep.subr.mxu0 0.0
    %1554 = vmatpush1.msra.mxu0 0.0
    %1555 = vmatprep.subr.mxu0 0.0
    %1556 = vmatpush1.msra.mxu0 0.0
    %1557 = vmatprep.subr.mxu0 0.0
    %1558 = vmatpush1.msra.mxu0 0.0
    %1559 = vmatprep.subr.mxu0 0.0
    %1560 = vmatpush1.msra.mxu0 0.0
    %1561 = vmatprep.subr.mxu0 0.0
    %1562 = vmatpush1.msra.mxu0 0.0
    %1563 = vmatprep.subr.mxu0 0.0
    %1564 = vmatpush1.msra.mxu0 %v1529
    %1565 = vmatprep.subr.mxu0 0.0
    %1566 = vmatpush1.msra.mxu0 %v1512
    %1567 = vmatprep.subr.mxu0 0.0
    %1568 = vmatpush2.msra.mxu0 0.0
    %1569 = vmatprep.subr.mxu0 0.0
    %1570 = vmatpush2.msra.mxu0 0.0
    %1571 = vmatprep.subr.mxu0 0.0
    %1572 = vmatpush2.msra.mxu0 0.0
    %1573 = vmatprep.subr.mxu0 0.0
    %1574 = vmatpush2.msra.mxu0 0.0
    %1575 = vmatprep.subr.mxu0 0.0
    %1576 = vmatpush2.msra.mxu0 0.0
    %1577 = vmatprep.subr.mxu0 0.0
    %1578 = vmatpush2.msra.mxu0 0.0
    %1579 = vmatprep.subr.mxu0 0.0
    %1580 = vmatpush2.msra.mxu0 0.0
    %1581 = vmatprep.subr.mxu0 0.0
    %1582 = vmatpush2.msra.mxu0 0.0
    %1583 = vmatprep.subr.mxu0 0.0
    %1584 = vmatpush2.msra.mxu0 0.0
    %1585 = vmatprep.subr.mxu0 0.0
    %1586 = vmatpush2.msra.mxu0 0.0
    %1587 = vmatprep.subr.mxu0 0.0
    %1588 = vmatpush2.msra.mxu0 0.0
    %1589 = vmatprep.subr.mxu0 0.0
    %1590 = vmatpush2.msra.mxu0 0.0
    %1591 = vmatprep.subr.mxu0 0.0
    %1592 = vmatpush2.msra.mxu0 0.0
    %1593 = vmatprep.subr.mxu0 0.0
    %1594 = vmatpush2.msra.mxu0 0.0
    %1595 = vmatprep.subr.mxu0 0.0
    %1596 = vmatpush2.msra.mxu0 0.0
    %1597 = vmatprep.subr.mxu0 0.0
    %1598 = vmatpush2.msra.mxu0 0.0
    %1599 = vmatprep.mubr.f32.mxu0 0.0
    %1600 = vmatmul.mubr.f32.gmra.mxu0 %v1533
    %v1601 = vpop.f32.mrf.mxu0
    %v1602 = vadd.f32 0.0, %v1601
    %v1603 = vpop.f32.mrf.mxu0
    %1604 = vdwg.mxu0
    %v1613 = vcombine.low %v1138, %v1147
    %v1614 = vcombine.low %v1156, %v1165
    %v1616 = vunpack.c.l.s4 1983009808
    %v1617 = vunpack.c.0.s8 %v1616
    %v1618 = vlaneseq
    %v1619 = vshrl.u32 %v1618, 7
    %v1620 = vsub.s32 %v1617, %v1619
    %v1621 = vrot.slane %v1613, %v1620
    %v1623 = vunpack.c.l.s4 1983009808
    %v1624 = vunpack.c.0.s8 %v1623
    %v1625 = vlaneseq
    %v1626 = vshrl.u32 %v1625, 7
    %v1627 = vsub.s32 %v1624, %v1626
    %v1628 = vrot.slane %v1614, %v1627
    %v1629 = vcombine.low %v1621, %v1628
    %v1630 = vcombine.low %v1174, %v1183
    %v1631 = vcombine.low %v1192, %v1201
    %v1633 = vunpack.c.l.s4 1983009808
    %v1634 = vunpack.c.0.s8 %v1633
    %v1635 = vlaneseq
    %v1636 = vshrl.u32 %v1635, 7
    %v1637 = vsub.s32 %v1634, %v1636
    %v1638 = vrot.slane %v1630, %v1637
    %v1640 = vunpack.c.l.s4 1983009808
    %v1641 = vunpack.c.0.s8 %v1640
    %v1642 = vlaneseq
    %v1643 = vshrl.u32 %v1642, 7
    %v1644 = vsub.s32 %v1641, %v1643
    %v1645 = vrot.slane %v1631, %v1644
    %v1646 = vcombine.low %v1638, %v1645
    %v1650 = vsel %vm1445, %v1475, 0
    %1652 = vmatprep.subr.mxu0 0.0
    %1653 = vmatpush1.msra.mxu0 0.0
    %1654 = vmatprep.subr.mxu0 0.0
    %1655 = vmatpush1.msra.mxu0 0.0
    %1656 = vmatprep.subr.mxu0 0.0
    %1657 = vmatpush1.msra.mxu0 0.0
    %1658 = vmatprep.subr.mxu0 0.0
    %1659 = vmatpush1.msra.mxu0 0.0
    %1660 = vmatprep.subr.mxu0 0.0
    %1661 = vmatpush1.msra.mxu0 0.0
    %1662 = vmatprep.subr.mxu0 0.0
    %1663 = vmatpush1.msra.mxu0 0.0
    %1664 = vmatprep.subr.mxu0 0.0
    %1665 = vmatpush1.msra.mxu0 0.0
    %1666 = vmatprep.subr.mxu0 0.0
    %1667 = vmatpush1.msra.mxu0 0.0
    %1668 = vmatprep.subr.mxu0 0.0
    %1669 = vmatpush1.msra.mxu0 0.0
    %1670 = vmatprep.subr.mxu0 0.0
    %1671 = vmatpush1.msra.mxu0 0.0
    %1672 = vmatprep.subr.mxu0 0.0
    %1673 = vmatpush1.msra.mxu0 0.0
    %1674 = vmatprep.subr.mxu0 0.0
    %1675 = vmatpush1.msra.mxu0 0.0
    %1676 = vmatprep.subr.mxu0 0.0
    %1677 = vmatpush1.msra.mxu0 0.0
    %1678 = vmatprep.subr.mxu0 0.0
    %1679 = vmatpush1.msra.mxu0 0.0
    %1680 = vmatprep.subr.mxu0 0.0
    %1681 = vmatpush1.msra.mxu0 %v1646
    %1682 = vmatprep.subr.mxu0 0.0
    %1683 = vmatpush1.msra.mxu0 %v1629
    %1684 = vmatprep.subr.mxu0 0.0
    %1685 = vmatpush2.msra.mxu0 0.0
    %1686 = vmatprep.subr.mxu0 0.0
    %1687 = vmatpush2.msra.mxu0 0.0
    %1688 = vmatprep.subr.mxu0 0.0
    %1689 = vmatpush2.msra.mxu0 0.0
    %1690 = vmatprep.subr.mxu0 0.0
    %1691 = vmatpush2.msra.mxu0 0.0
    %1692 = vmatprep.subr.mxu0 0.0
    %1693 = vmatpush2.msra.mxu0 0.0
    %1694 = vmatprep.subr.mxu0 0.0
    %1695 = vmatpush2.msra.mxu0 0.0
    %1696 = vmatprep.subr.mxu0 0.0
    %1697 = vmatpush2.msra.mxu0 0.0
    %1698 = vmatprep.subr.mxu0 0.0
    %1699 = vmatpush2.msra.mxu0 0.0
    %1700 = vmatprep.subr.mxu0 0.0
    %1701 = vmatpush2.msra.mxu0 0.0
    %1702 = vmatprep.subr.mxu0 0.0
    %1703 = vmatpush2.msra.mxu0 0.0
    %1704 = vmatprep.subr.mxu0 0.0
    %1705 = vmatpush2.msra.mxu0 0.0
    %1706 = vmatprep.subr.mxu0 0.0
    %1707 = vmatpush2.msra.mxu0 0.0
    %1708 = vmatprep.subr.mxu0 0.0
    %1709 = vmatpush2.msra.mxu0 0.0
    %1710 = vmatprep.subr.mxu0 0.0
    %1711 = vmatpush2.msra.mxu0 0.0
    %1712 = vmatprep.subr.mxu0 0.0
    %1713 = vmatpush2.msra.mxu0 0.0
    %1714 = vmatprep.subr.mxu0 0.0
    %1715 = vmatpush2.msra.mxu0 0.0
    %1716 = vmatprep.mubr.f32.mxu0 0.0
    %1717 = vmatmul.mubr.f32.gmra.mxu0 %v1650
    %v1718 = vpop.f32.mrf.mxu0
    %v1719 = vadd.f32 0.0, %v1718
    %v1720 = vpop.f32.mrf.mxu0
    %1721 = vdwg.mxu0
    %v1722 = vld [vmem:[#allocation3] sm:$0xff]
    %v1723 = vld [vmem:[#allocation3 + $0x8] sm:$0xff]
    %1725 = vset.pattern.permute.xlu0 0
    %1726 = vperm.xlu0 %1725, %v1457
    %v1727 = vpop.permute.xlu0 %1726
    %1730 = vset.pattern.permute.xlu0 0
    %1731 = vperm.xlu0 %1730, %v1459
    %v1732 = vpop.permute.xlu0 %1731
    %v1734 = vmul.f32 %v1727, %v1722
    %v1735 = vmul.f32 %v1732, %v1723
    %v1736 = vadd.f32 %v1734, %v1602
    %v1737 = vadd.f32 %v1735, %v1719
    %1738 = vst.msk [vmem:[#allocation3] sm:$0xff] %vm1246, %v1736
    %1739 = vst.msk [vmem:[#allocation3 + $0x8] sm:$0xff] %vm1246, %v1737
    %vm1740 = vcmask 7168
    %1741 = vst.msk [vmem:[#allocation4] sm:$0xff] %vm1740, %v1452
    %1742 = vst.msk [vmem:[#allocation4 + $0x8] sm:$0xff] %vm1740, %v1453
    %1743 = vst.msk [vmem:[#allocation5] sm:$0xff] %vm1740, %v1486
    %1744 = vst.msk [vmem:[#allocation5 + $0x8] sm:$0xff] %vm1740, %v1487
    %v1745 = vld [vmem:[#allocation6] sm:$0xff]
    %v1746 = vld [vmem:[#allocation6 + $0x8] sm:$0xff]
    %v1747 = vrcp.pop %v1486
    %v1748 = vrcp.pop %v1487
    %1750 = vset.pattern.permute.xlu0 0
    %1751 = vperm.xlu0 %1750, %v1747
    %v1752 = vpop.permute.xlu0 %1751
    %1755 = vset.pattern.permute.xlu0 0
    %1756 = vperm.xlu0 %1755, %v1748
    %v1757 = vpop.permute.xlu0 %1756
    %v1759 = vmul.f32 %v1473, %v1752
    %v1760 = vmul.f32 %v1475, %v1757
    %v1761 = vadd.f32 %v1745, %v1759
    %v1762 = vadd.f32 %v1746, %v1760
    %1763 = vst.msk [vmem:[#allocation6] sm:$0xff] %vm1445, %v1761
    %1764 = vst.msk [vmem:[#allocation6 + $0x8] sm:$0xff] %vm1445, %v1762
    %1765 = vrot.lane.b32.xlu0 %v1202, 120
    %v1766 = vpop.permute.xlu0 %1765
    %1767 = vrot.lane.b32.xlu0 %v1228, 120
    %v1768 = vpop.permute.xlu0 %1767
    %1769 = vrot.lane.b32.xlu0 %v1245, 120
    %v1770 = vpop.permute.xlu0 %1769
    %v1771 = vsel %vm1246, %v1766, 0
    %v1773 = vsel %vm1246, %v1768, 0
    %v1775 = vsel %vm1246, %v1770, 0
    %1777 = vmatprep.subr.mxu0 0.0
    %1778 = vmatpush1.xpose.msra.mxu0 0.0
    %1779 = vmatprep.subr.mxu0 0.0
    %1780 = vmatpush1.xpose.msra.mxu0 0.0
    %1781 = vmatprep.subr.mxu0 0.0
    %1782 = vmatpush1.xpose.msra.mxu0 0.0
    %1783 = vmatprep.subr.mxu0 0.0
    %1784 = vmatpush1.xpose.msra.mxu0 0.0
    %1785 = vmatprep.subr.mxu0 0.0
    %1786 = vmatpush1.xpose.msra.mxu0 0.0
    %1787 = vmatprep.subr.mxu0 0.0
    %1788 = vmatpush1.xpose.msra.mxu0 0.0
    %1789 = vmatprep.subr.mxu0 0.0
    %1790 = vmatpush1.xpose.msra.mxu0 0.0
    %1791 = vmatprep.subr.mxu0 0.0
    %1792 = vmatpush1.xpose.msra.mxu0 0.0
    %1793 = vmatprep.subr.mxu0 0.0
    %1794 = vmatpush1.xpose.msra.mxu0 0.0
    %1795 = vmatprep.subr.mxu0 0.0
    %1796 = vmatpush1.xpose.msra.mxu0 0.0
    %1797 = vmatprep.subr.mxu0 0.0
    %1798 = vmatpush1.xpose.msra.mxu0 0.0
    %1799 = vmatprep.subr.mxu0 0.0
    %1800 = vmatpush1.xpose.msra.mxu0 0.0
    %1801 = vmatprep.subr.mxu0 0.0
    %1802 = vmatpush1.xpose.msra.mxu0 0.0
    %1803 = vmatprep.subr.mxu0 0.0
    %1804 = vmatpush1.xpose.msra.mxu0 0.0
    %1805 = vmatprep.subr.mxu0 0.0
    %1806 = vmatpush1.xpose.msra.mxu0 %v1775
    %1807 = vmatprep.subr.mxu0 0.0
    %1808 = vmatpush1.xpose.msra.mxu0 %v1773
    %1809 = vmatprep.subr.mxu0 0.0
    %1810 = vmatpush2.xpose.msra.mxu0 0.0
    %1811 = vmatprep.subr.mxu0 0.0
    %1812 = vmatpush2.xpose.msra.mxu0 0.0
    %1813 = vmatprep.subr.mxu0 0.0
    %1814 = vmatpush2.xpose.msra.mxu0 0.0
    %1815 = vmatprep.subr.mxu0 0.0
    %1816 = vmatpush2.xpose.msra.mxu0 0.0
    %1817 = vmatprep.subr.mxu0 0.0
    %1818 = vmatpush2.xpose.msra.mxu0 0.0
    %1819 = vmatprep.subr.mxu0 0.0
    %1820 = vmatpush2.xpose.msra.mxu0 0.0
    %1821 = vmatprep.subr.mxu0 0.0
    %1822 = vmatpush2.xpose.msra.mxu0 0.0
    %1823 = vmatprep.subr.mxu0 0.0
    %1824 = vmatpush2.xpose.msra.mxu0 0.0
    %1825 = vmatprep.subr.mxu0 0.0
    %1826 = vmatpush2.xpose.msra.mxu0 0.0
    %1827 = vmatprep.subr.mxu0 0.0
    %1828 = vmatpush2.xpose.msra.mxu0 0.0
    %1829 = vmatprep.subr.mxu0 0.0
    %1830 = vmatpush2.xpose.msra.mxu0 0.0
    %1831 = vmatprep.subr.mxu0 0.0
    %1832 = vmatpush2.xpose.msra.mxu0 0.0
    %1833 = vmatprep.subr.mxu0 0.0
    %1834 = vmatpush2.xpose.msra.mxu0 0.0
    %1835 = vmatprep.subr.mxu0 0.0
    %1836 = vmatpush2.xpose.msra.mxu0 0.0
    %1837 = vmatprep.subr.mxu0 0.0
    %1838 = vmatpush2.xpose.msra.mxu0 0.0
    %1839 = vmatprep.subr.mxu0 0.0
    %1840 = vmatpush2.xpose.msra.mxu0 0.0
    %1841 = vmatprep.mubr.f32.mxu0 0.0
    %1842 = vmatmul.mubr.f32.gmra.mxu0 %v1771
    %v1843 = vpop.f32.mrf.mxu0
    %v1844 = vadd.f32 0.0, %v1843
    %v1845 = vpop.f32.mrf.mxu0
    %1846 = vdwg.mxu0
    %1847 = vrot.lane.b32.xlu0 %v1203, 120
    %v1848 = vpop.permute.xlu0 %1847
    %1849 = vrot.lane.b32.xlu0 %v1348, 120
    %v1850 = vpop.permute.xlu0 %1849
    %1851 = vrot.lane.b32.xlu0 %v1365, 120
    %v1852 = vpop.permute.xlu0 %1851
    %v1853 = vsel %vm1246, %v1848, 0
    %v1855 = vsel %vm1246, %v1850, 0
    %v1857 = vsel %vm1246, %v1852, 0
    %1859 = vmatprep.subr.mxu0 0.0
    %1860 = vmatpush1.xpose.msra.mxu0 0.0
    %1861 = vmatprep.subr.mxu0 0.0
    %1862 = vmatpush1.xpose.msra.mxu0 0.0
    %1863 = vmatprep.subr.mxu0 0.0
    %1864 = vmatpush1.xpose.msra.mxu0 0.0
    %1865 = vmatprep.subr.mxu0 0.0
    %1866 = vmatpush1.xpose.msra.mxu0 0.0
    %1867 = vmatprep.subr.mxu0 0.0
    %1868 = vmatpush1.xpose.msra.mxu0 0.0
    %1869 = vmatprep.subr.mxu0 0.0
    %1870 = vmatpush1.xpose.msra.mxu0 0.0
    %1871 = vmatprep.subr.mxu0 0.0
    %1872 = vmatpush1.xpose.msra.mxu0 0.0
    %1873 = vmatprep.subr.mxu0 0.0
    %1874 = vmatpush1.xpose.msra.mxu0 0.0
    %1875 = vmatprep.subr.mxu0 0.0
    %1876 = vmatpush1.xpose.msra.mxu0 0.0
    %1877 = vmatprep.subr.mxu0 0.0
    %1878 = vmatpush1.xpose.msra.mxu0 0.0
    %1879 = vmatprep.subr.mxu0 0.0
    %1880 = vmatpush1.xpose.msra.mxu0 0.0
    %1881 = vmatprep.subr.mxu0 0.0
    %1882 = vmatpush1.xpose.msra.mxu0 0.0
    %1883 = vmatprep.subr.mxu0 0.0
    %1884 = vmatpush1.xpose.msra.mxu0 0.0
    %1885 = vmatprep.subr.mxu0 0.0
    %1886 = vmatpush1.xpose.msra.mxu0 0.0
    %1887 = vmatprep.subr.mxu0 0.0
    %1888 = vmatpush1.xpose.msra.mxu0 %v1857
    %1889 = vmatprep.subr.mxu0 0.0
    %1890 = vmatpush1.xpose.msra.mxu0 %v1855
    %1891 = vmatprep.subr.mxu0 0.0
    %1892 = vmatpush2.xpose.msra.mxu0 0.0
    %1893 = vmatprep.subr.mxu0 0.0
    %1894 = vmatpush2.xpose.msra.mxu0 0.0
    %1895 = vmatprep.subr.mxu0 0.0
    %1896 = vmatpush2.xpose.msra.mxu0 0.0
    %1897 = vmatprep.subr.mxu0 0.0
    %1898 = vmatpush2.xpose.msra.mxu0 0.0
    %1899 = vmatprep.subr.mxu0 0.0
    %1900 = vmatpush2.xpose.msra.mxu0 0.0
    %1901 = vmatprep.subr.mxu0 0.0
    %1902 = vmatpush2.xpose.msra.mxu0 0.0
    %1903 = vmatprep.subr.mxu0 0.0
    %1904 = vmatpush2.xpose.msra.mxu0 0.0
    %1905 = vmatprep.subr.mxu0 0.0
    %1906 = vmatpush2.xpose.msra.mxu0 0.0
    %1907 = vmatprep.subr.mxu0 0.0
    %1908 = vmatpush2.xpose.msra.mxu0 0.0
    %1909 = vmatprep.subr.mxu0 0.0
    %1910 = vmatpush2.xpose.msra.mxu0 0.0
    %1911 = vmatprep.subr.mxu0 0.0
    %1912 = vmatpush2.xpose.msra.mxu0 0.0
    %1913 = vmatprep.subr.mxu0 0.0
    %1914 = vmatpush2.xpose.msra.mxu0 0.0
    %1915 = vmatprep.subr.mxu0 0.0
    %1916 = vmatpush2.xpose.msra.mxu0 0.0
    %1917 = vmatprep.subr.mxu0 0.0
    %1918 = vmatpush2.xpose.msra.mxu0 0.0
    %1919 = vmatprep.subr.mxu0 0.0
    %1920 = vmatpush2.xpose.msra.mxu0 0.0
    %1921 = vmatprep.subr.mxu0 0.0
    %1922 = vmatpush2.xpose.msra.mxu0 0.0
    %1923 = vmatprep.mubr.f32.mxu0 0.0
    %1924 = vmatmul.mubr.f32.gmra.mxu0 %v1853
    %v1925 = vpop.f32.mrf.mxu0
    %v1926 = vadd.f32 0.0, %v1925
    %v1927 = vpop.f32.mrf.mxu0
    %1928 = vdwg.mxu0
    %v1929 = vld [vmem:[#allocation4] sm:$0xff]
    %v1930 = vld [vmem:[#allocation4 + $0x8] sm:$0xff]
    %v1931 = vsel %vm1445, %v1844, -inf
    %1932 = vmax.xlane.f32.xlu0 %v1931
    %v1933 = vpop.xlane.xlu0 %1932
    %v1934 = vsel %vm1445, %v1926, -inf
    %1935 = vmax.xlane.f32.xlu0 %v1934
    %v1936 = vpop.xlane.xlu0 %1935
    %v1937 = vmax.f32 %v1929, %v1933
    %v1938 = vmax.f32 %v1930, %v1936
    %v1939 = vsub.f32 %v1929, %v1937
    %v1940 = vsub.f32 %v1930, %v1938
    %v1941 = vmul.f32 %v1939, 1.442695
    %v1942 = vpow.pop %v1941
    %v1943 = vmul.f32 %v1940, 1.442695
    %v1944 = vpow.pop %v1943
    %1946 = vset.pattern.permute.xlu0 1
    %1947 = vperm.xlu0 %1946, %v1937
    %v1948 = vpop.permute.xlu0 %1947
    %1951 = vset.pattern.permute.xlu0 1
    %1952 = vperm.xlu0 %1951, %v1938
    %v1953 = vpop.permute.xlu0 %1952
    %v1955 = vsub.f32 %v1844, %v1948
    %v1956 = vsub.f32 %v1926, %v1953
    %v1957 = vmul.f32 %v1955, 1.442695
    %v1958 = vpow.pop %v1957
    %v1959 = vmul.f32 %v1956, 1.442695
    %v1960 = vpow.pop %v1959
    %v1961 = vld [vmem:[#allocation5] sm:$0xff]
    %v1962 = vld [vmem:[#allocation5 + $0x8] sm:$0xff]
    %v1963 = vmul.f32 %v1942, %v1961
    %v1964 = vmul.f32 %v1944, %v1962
    %v1965 = vsel %vm1445, %v1958, 0.0
    %1966 = vadd.xlane.f32.xlu0 %v1965
    %v1967 = vpop.xlane.xlu0 %1966
    %v1968 = vsel %vm1445, %v1960, 0.0
    %1969 = vadd.xlane.f32.xlu0 %v1968
    %v1970 = vpop.xlane.xlu0 %1969
    %v1971 = vadd.f32 %v1963, %v1967
    %v1972 = vadd.f32 %v1964, %v1970
    %1973 = vrot.lane.b32.xlu0 %v1512, 120
    %v1974 = vpop.permute.xlu0 %1973
    %1975 = vrot.lane.b32.xlu0 %v1529, 120
    %v1976 = vpop.permute.xlu0 %1975
    %v1980 = vsel %vm1445, %v1958, 0
    %1982 = vmatprep.subr.mxu0 0.0
    %1983 = vmatpush1.msra.mxu0 0.0
    %1984 = vmatprep.subr.mxu0 0.0
    %1985 = vmatpush1.msra.mxu0 0.0
    %1986 = vmatprep.subr.mxu0 0.0
    %1987 = vmatpush1.msra.mxu0 0.0
    %1988 = vmatprep.subr.mxu0 0.0
    %1989 = vmatpush1.msra.mxu0 0.0
    %1990 = vmatprep.subr.mxu0 0.0
    %1991 = vmatpush1.msra.mxu0 0.0
    %1992 = vmatprep.subr.mxu0 0.0
    %1993 = vmatpush1.msra.mxu0 0.0
    %1994 = vmatprep.subr.mxu0 0.0
    %1995 = vmatpush1.msra.mxu0 0.0
    %1996 = vmatprep.subr.mxu0 0.0
    %1997 = vmatpush1.msra.mxu0 0.0
    %1998 = vmatprep.subr.mxu0 0.0
    %1999 = vmatpush1.msra.mxu0 0.0
    %2000 = vmatprep.subr.mxu0 0.0
    %2001 = vmatpush1.msra.mxu0 0.0
    %2002 = vmatprep.subr.mxu0 0.0
    %2003 = vmatpush1.msra.mxu0 0.0
    %2004 = vmatprep.subr.mxu0 0.0
    %2005 = vmatpush1.msra.mxu0 0.0
    %2006 = vmatprep.subr.mxu0 0.0
    %2007 = vmatpush1.msra.mxu0 0.0
    %2008 = vmatprep.subr.mxu0 0.0
    %2009 = vmatpush1.msra.mxu0 0.0
    %2010 = vmatprep.subr.mxu0 0.0
    %2011 = vmatpush1.msra.mxu0 %v1976
    %2012 = vmatprep.subr.mxu0 0.0
    %2013 = vmatpush1.msra.mxu0 %v1974
    %2014 = vmatprep.subr.mxu0 0.0
    %2015 = vmatpush2.msra.mxu0 0.0
    %2016 = vmatprep.subr.mxu0 0.0
    %2017 = vmatpush2.msra.mxu0 0.0
    %2018 = vmatprep.subr.mxu0 0.0
    %2019 = vmatpush2.msra.mxu0 0.0
    %2020 = vmatprep.subr.mxu0 0.0
    %2021 = vmatpush2.msra.mxu0 0.0
    %2022 = vmatprep.subr.mxu0 0.0
    %2023 = vmatpush2.msra.mxu0 0.0
    %2024 = vmatprep.subr.mxu0 0.0
    %2025 = vmatpush2.msra.mxu0 0.0
    %2026 = vmatprep.subr.mxu0 0.0
    %2027 = vmatpush2.msra.mxu0 0.0
    %2028 = vmatprep.subr.mxu0 0.0
    %2029 = vmatpush2.msra.mxu0 0.0
    %2030 = vmatprep.subr.mxu0 0.0
    %2031 = vmatpush2.msra.mxu0 0.0
    %2032 = vmatprep.subr.mxu0 0.0
    %2033 = vmatpush2.msra.mxu0 0.0
    %2034 = vmatprep.subr.mxu0 0.0
    %2035 = vmatpush2.msra.mxu0 0.0
    %2036 = vmatprep.subr.mxu0 0.0
    %2037 = vmatpush2.msra.mxu0 0.0
    %2038 = vmatprep.subr.mxu0 0.0
    %2039 = vmatpush2.msra.mxu0 0.0
    %2040 = vmatprep.subr.mxu0 0.0
    %2041 = vmatpush2.msra.mxu0 0.0
    %2042 = vmatprep.subr.mxu0 0.0
    %2043 = vmatpush2.msra.mxu0 0.0
    %2044 = vmatprep.subr.mxu0 0.0
    %2045 = vmatpush2.msra.mxu0 0.0
    %2046 = vmatprep.mubr.f32.mxu0 0.0
    %2047 = vmatmul.mubr.f32.gmra.mxu0 %v1980
    %v2048 = vpop.f32.mrf.mxu0
    %v2049 = vadd.f32 0.0, %v2048
    %v2050 = vpop.f32.mrf.mxu0
    %2051 = vdwg.mxu0
    %2052 = vrot.lane.b32.xlu0 %v1629, 120
    %v2053 = vpop.permute.xlu0 %2052
    %2054 = vrot.lane.b32.xlu0 %v1646, 120
    %v2055 = vpop.permute.xlu0 %2054
    %v2059 = vsel %vm1445, %v1960, 0
    %2061 = vmatprep.subr.mxu0 0.0
    %2062 = vmatpush1.msra.mxu0 0.0
    %2063 = vmatprep.subr.mxu0 0.0
    %2064 = vmatpush1.msra.mxu0 0.0
    %2065 = vmatprep.subr.mxu0 0.0
    %2066 = vmatpush1.msra.mxu0 0.0
    %2067 = vmatprep.subr.mxu0 0.0
    %2068 = vmatpush1.msra.mxu0 0.0
    %2069 = vmatprep.subr.mxu0 0.0
    %2070 = vmatpush1.msra.mxu0 0.0
    %2071 = vmatprep.subr.mxu0 0.0
    %2072 = vmatpush1.msra.mxu0 0.0
    %2073 = vmatprep.subr.mxu0 0.0
    %2074 = vmatpush1.msra.mxu0 0.0
    %2075 = vmatprep.subr.mxu0 0.0
    %2076 = vmatpush1.msra.mxu0 0.0
    %2077 = vmatprep.subr.mxu0 0.0
    %2078 = vmatpush1.msra.mxu0 0.0
    %2079 = vmatprep.subr.mxu0 0.0
    %2080 = vmatpush1.msra.mxu0 0.0
    %2081 = vmatprep.subr.mxu0 0.0
    %2082 = vmatpush1.msra.mxu0 0.0
    %2083 = vmatprep.subr.mxu0 0.0
    %2084 = vmatpush1.msra.mxu0 0.0
    %2085 = vmatprep.subr.mxu0 0.0
    %2086 = vmatpush1.msra.mxu0 0.0
    %2087 = vmatprep.subr.mxu0 0.0
    %2088 = vmatpush1.msra.mxu0 0.0
    %2089 = vmatprep.subr.mxu0 0.0
    %2090 = vmatpush1.msra.mxu0 %v2055
    %2091 = vmatprep.subr.mxu0 0.0
    %2092 = vmatpush1.msra.mxu0 %v2053
    %2093 = vmatprep.subr.mxu0 0.0
    %2094 = vmatpush2.msra.mxu0 0.0
    %2095 = vmatprep.subr.mxu0 0.0
    %2096 = vmatpush2.msra.mxu0 0.0
    %2097 = vmatprep.subr.mxu0 0.0
    %2098 = vmatpush2.msra.mxu0 0.0
    %2099 = vmatprep.subr.mxu0 0.0
    %2100 = vmatpush2.msra.mxu0 0.0
    %2101 = vmatprep.subr.mxu0 0.0
    %2102 = vmatpush2.msra.mxu0 0.0
    %2103 = vmatprep.subr.mxu0 0.0
    %2104 = vmatpush2.msra.mxu0 0.0
    %2105 = vmatprep.subr.mxu0 0.0
    %2106 = vmatpush2.msra.mxu0 0.0
    %2107 = vmatprep.subr.mxu0 0.0
    %2108 = vmatpush2.msra.mxu0 0.0
    %2109 = vmatprep.subr.mxu0 0.0
    %2110 = vmatpush2.msra.mxu0 0.0
    %2111 = vmatprep.subr.mxu0 0.0
    %2112 = vmatpush2.msra.mxu0 0.0
    %2113 = vmatprep.subr.mxu0 0.0
    %2114 = vmatpush2.msra.mxu0 0.0
    %2115 = vmatprep.subr.mxu0 0.0
    %2116 = vmatpush2.msra.mxu0 0.0
    %2117 = vmatprep.subr.mxu0 0.0
    %2118 = vmatpush2.msra.mxu0 0.0
    %2119 = vmatprep.subr.mxu0 0.0
    %2120 = vmatpush2.msra.mxu0 0.0
    %2121 = vmatprep.subr.mxu0 0.0
    %2122 = vmatpush2.msra.mxu0 0.0
    %2123 = vmatprep.subr.mxu0 0.0
    %2124 = vmatpush2.msra.mxu0 0.0
    %2125 = vmatprep.mubr.f32.mxu0 0.0
    %2126 = vmatmul.mubr.f32.gmra.mxu0 %v2059
    %v2127 = vpop.f32.mrf.mxu0
    %v2128 = vadd.f32 0.0, %v2127
    %v2129 = vpop.f32.mrf.mxu0
    %2130 = vdwg.mxu0
    %v2131 = vld [vmem:[#allocation3] sm:$0xff]
    %v2132 = vld [vmem:[#allocation3 + $0x8] sm:$0xff]
    %2134 = vset.pattern.permute.xlu0 1
    %2135 = vperm.xlu0 %2134, %v1942
    %v2136 = vpop.permute.xlu0 %2135
    %2139 = vset.pattern.permute.xlu0 1
    %2140 = vperm.xlu0 %2139, %v1944
    %v2141 = vpop.permute.xlu0 %2140
    %v2143 = vmul.f32 %v2136, %v2131
    %v2144 = vmul.f32 %v2141, %v2132
    %2147 = vrot.lane.b32.xlu0 %v2049, 8
    %v2148 = vpop.permute.xlu0 %2147
    %2149 = vrot.lane.b32.xlu0 %v2128, 8
    %v2150 = vpop.permute.xlu0 %2149
    %v2153 = vadd.f32 %v2143, %v2148
    %v2154 = vadd.f32 %v2144, %v2150
    %vm2155 = vcmask 130112
    %2156 = vst.msk [vmem:[#allocation3] sm:$0xff] %vm2155, %v2153
    %2157 = vst.msk [vmem:[#allocation3 + $0x8] sm:$0xff] %vm2155, %v2154
    %vm2158 = vcmask 15368
    %2159 = vst.msk [vmem:[#allocation4] sm:$0xff] %vm2158, %v1937
    %2160 = vst.msk [vmem:[#allocation4 + $0x8] sm:$0xff] %vm2158, %v1938
    %2161 = vst.msk [vmem:[#allocation5] sm:$0xff] %vm2158, %v1971
    %2162 = vst.msk [vmem:[#allocation5 + $0x8] sm:$0xff] %vm2158, %v1972
    %v2163 = vld [vmem:[#allocation6] sm:$0xff]
    %v2164 = vld [vmem:[#allocation6 + $0x8] sm:$0xff]
    %v2165 = vrcp.pop %v1971
    %v2166 = vrcp.pop %v1972
    %2168 = vset.pattern.permute.xlu0 1
    %2169 = vperm.xlu0 %2168, %v2165
    %v2170 = vpop.permute.xlu0 %2169
    %2173 = vset.pattern.permute.xlu0 1
    %2174 = vperm.xlu0 %2173, %v2166
    %v2175 = vpop.permute.xlu0 %2174
    %v2177 = vmul.f32 %v1958, %v2170
    %v2178 = vmul.f32 %v1960, %v2175
    %v2179 = vadd.f32 %v2163, %v2177
    %v2180 = vadd.f32 %v2164, %v2178
    %2181 = vst.msk [vmem:[#allocation6] sm:$0xff] %vm1445, %v2179
    %2182 = vst.msk [vmem:[#allocation6 + $0x8] sm:$0xff] %vm1445, %v2180
    %2183 = vrot.lane.b32.xlu0 %v1202, 112
    %v2184 = vpop.permute.xlu0 %2183
    %2185 = vrot.lane.b32.xlu0 %v1228, 112
    %v2186 = vpop.permute.xlu0 %2185
    %2187 = vrot.lane.b32.xlu0 %v1245, 112
    %v2188 = vpop.permute.xlu0 %2187
    %v2189 = vsel %vm1246, %v2184, 0
    %v2191 = vsel %vm1246, %v2186, 0
    %v2193 = vsel %vm1246, %v2188, 0
    %2195 = vmatprep.subr.mxu0 0.0
    %2196 = vmatpush1.xpose.msra.mxu0 0.0
    %2197 = vmatprep.subr.mxu0 0.0
    %2198 = vmatpush1.xpose.msra.mxu0 0.0
    %2199 = vmatprep.subr.mxu0 0.0
    %2200 = vmatpush1.xpose.msra.mxu0 0.0
    %2201 = vmatprep.subr.mxu0 0.0
    %2202 = vmatpush1.xpose.msra.mxu0 0.0
    %2203 = vmatprep.subr.mxu0 0.0
    %2204 = vmatpush1.xpose.msra.mxu0 0.0
    %2205 = vmatprep.subr.mxu0 0.0
    %2206 = vmatpush1.xpose.msra.mxu0 0.0
    %2207 = vmatprep.subr.mxu0 0.0
    %2208 = vmatpush1.xpose.msra.mxu0 0.0
    %2209 = vmatprep.subr.mxu0 0.0
    %2210 = vmatpush1.xpose.msra.mxu0 0.0
    %2211 = vmatprep.subr.mxu0 0.0
    %2212 = vmatpush1.xpose.msra.mxu0 0.0
    %2213 = vmatprep.subr.mxu0 0.0
    %2214 = vmatpush1.xpose.msra.mxu0 0.0
    %2215 = vmatprep.subr.mxu0 0.0
    %2216 = vmatpush1.xpose.msra.mxu0 0.0
    %2217 = vmatprep.subr.mxu0 0.0
    %2218 = vmatpush1.xpose.msra.mxu0 0.0
    %2219 = vmatprep.subr.mxu0 0.0
    %2220 = vmatpush1.xpose.msra.mxu0 0.0
    %2221 = vmatprep.subr.mxu0 0.0
    %2222 = vmatpush1.xpose.msra.mxu0 0.0
    %2223 = vmatprep.subr.mxu0 0.0
    %2224 = vmatpush1.xpose.msra.mxu0 %v2193
    %2225 = vmatprep.subr.mxu0 0.0
    %2226 = vmatpush1.xpose.msra.mxu0 %v2191
    %2227 = vmatprep.subr.mxu0 0.0
    %2228 = vmatpush2.xpose.msra.mxu0 0.0
    %2229 = vmatprep.subr.mxu0 0.0
    %2230 = vmatpush2.xpose.msra.mxu0 0.0
    %2231 = vmatprep.subr.mxu0 0.0
    %2232 = vmatpush2.xpose.msra.mxu0 0.0
    %2233 = vmatprep.subr.mxu0 0.0
    %2234 = vmatpush2.xpose.msra.mxu0 0.0
    %2235 = vmatprep.subr.mxu0 0.0
    %2236 = vmatpush2.xpose.msra.mxu0 0.0
    %2237 = vmatprep.subr.mxu0 0.0
    %2238 = vmatpush2.xpose.msra.mxu0 0.0
    %2239 = vmatprep.subr.mxu0 0.0
    %2240 = vmatpush2.xpose.msra.mxu0 0.0
    %2241 = vmatprep.subr.mxu0 0.0
    %2242 = vmatpush2.xpose.msra.mxu0 0.0
    %2243 = vmatprep.subr.mxu0 0.0
    %2244 = vmatpush2.xpose.msra.mxu0 0.0
    %2245 = vmatprep.subr.mxu0 0.0
    %2246 = vmatpush2.xpose.msra.mxu0 0.0
    %2247 = vmatprep.subr.mxu0 0.0
    %2248 = vmatpush2.xpose.msra.mxu0 0.0
    %2249 = vmatprep.subr.mxu0 0.0
    %2250 = vmatpush2.xpose.msra.mxu0 0.0
    %2251 = vmatprep.subr.mxu0 0.0
    %2252 = vmatpush2.xpose.msra.mxu0 0.0
    %2253 = vmatprep.subr.mxu0 0.0
    %2254 = vmatpush2.xpose.msra.mxu0 0.0
    %2255 = vmatprep.subr.mxu0 0.0
    %2256 = vmatpush2.xpose.msra.mxu0 0.0
    %2257 = vmatprep.subr.mxu0 0.0
    %2258 = vmatpush2.xpose.msra.mxu0 0.0
    %2259 = vmatprep.mubr.f32.mxu0 0.0
    %2260 = vmatmul.mubr.f32.gmra.mxu0 %v2189
    %v2261 = vpop.f32.mrf.mxu0
    %v2262 = vadd.f32 0.0, %v2261
    %v2263 = vpop.f32.mrf.mxu0
    %2264 = vdwg.mxu0
    %2265 = vrot.lane.b32.xlu0 %v1203, 112
    %v2266 = vpop.permute.xlu0 %2265
    %2267 = vrot.lane.b32.xlu0 %v1348, 112
    %v2268 = vpop.permute.xlu0 %2267
    %2269 = vrot.lane.b32.xlu0 %v1365, 112
    %v2270 = vpop.permute.xlu0 %2269
    %v2271 = vsel %vm1246, %v2266, 0
    %v2273 = vsel %vm1246, %v2268, 0
    %v2275 = vsel %vm1246, %v2270, 0
    %2277 = vmatprep.subr.mxu0 0.0
    %2278 = vmatpush1.xpose.msra.mxu0 0.0
    %2279 = vmatprep.subr.mxu0 0.0
    %2280 = vmatpush1.xpose.msra.mxu0 0.0
    %2281 = vmatprep.subr.mxu0 0.0
    %2282 = vmatpush1.xpose.msra.mxu0 0.0
    %2283 = vmatprep.subr.mxu0 0.0
    %2284 = vmatpush1.xpose.msra.mxu0 0.0
    %2285 = vmatprep.subr.mxu0 0.0
    %2286 = vmatpush1.xpose.msra.mxu0 0.0
    %2287 = vmatprep.subr.mxu0 0.0
    %2288 = vmatpush1.xpose.msra.mxu0 0.0
    %2289 = vmatprep.subr.mxu0 0.0
    %2290 = vmatpush1.xpose.msra.mxu0 0.0
    %2291 = vmatprep.subr.mxu0 0.0
    %2292 = vmatpush1.xpose.msra.mxu0 0.0
    %2293 = vmatprep.subr.mxu0 0.0
    %2294 = vmatpush1.xpose.msra.mxu0 0.0
    %2295 = vmatprep.subr.mxu0 0.0
    %2296 = vmatpush1.xpose.msra.mxu0 0.0
    %2297 = vmatprep.subr.mxu0 0.0
    %2298 = vmatpush1.xpose.msra.mxu0 0.0
    %2299 = vmatprep.subr.mxu0 0.0
    %2300 = vmatpush1.xpose.msra.mxu0 0.0
    %2301 = vmatprep.subr.mxu0 0.0
    %2302 = vmatpush1.xpose.msra.mxu0 0.0
    %2303 = vmatprep.subr.mxu0 0.0
    %2304 = vmatpush1.xpose.msra.mxu0 0.0
    %2305 = vmatprep.subr.mxu0 0.0
    %2306 = vmatpush1.xpose.msra.mxu0 %v2275
    %2307 = vmatprep.subr.mxu0 0.0
    %2308 = vmatpush1.xpose.msra.mxu0 %v2273
    %2309 = vmatprep.subr.mxu0 0.0
    %2310 = vmatpush2.xpose.msra.mxu0 0.0
    %2311 = vmatprep.subr.mxu0 0.0
    %2312 = vmatpush2.xpose.msra.mxu0 0.0
    %2313 = vmatprep.subr.mxu0 0.0
    %2314 = vmatpush2.xpose.msra.mxu0 0.0
    %2315 = vmatprep.subr.mxu0 0.0
    %2316 = vmatpush2.xpose.msra.mxu0 0.0
    %2317 = vmatprep.subr.mxu0 0.0
    %2318 = vmatpush2.xpose.msra.mxu0 0.0
    %2319 = vmatprep.subr.mxu0 0.0
    %2320 = vmatpush2.xpose.msra.mxu0 0.0
    %2321 = vmatprep.subr.mxu0 0.0
    %2322 = vmatpush2.xpose.msra.mxu0 0.0
    %2323 = vmatprep.subr.mxu0 0.0
    %2324 = vmatpush2.xpose.msra.mxu0 0.0
    %2325 = vmatprep.subr.mxu0 0.0
    %2326 = vmatpush2.xpose.msra.mxu0 0.0
    %2327 = vmatprep.subr.mxu0 0.0
    %2328 = vmatpush2.xpose.msra.mxu0 0.0
    %2329 = vmatprep.subr.mxu0 0.0
    %2330 = vmatpush2.xpose.msra.mxu0 0.0
    %2331 = vmatprep.subr.mxu0 0.0
    %2332 = vmatpush2.xpose.msra.mxu0 0.0
    %2333 = vmatprep.subr.mxu0 0.0
    %2334 = vmatpush2.xpose.msra.mxu0 0.0
    %2335 = vmatprep.subr.mxu0 0.0
    %2336 = vmatpush2.xpose.msra.mxu0 0.0
    %2337 = vmatprep.subr.mxu0 0.0
    %2338 = vmatpush2.xpose.msra.mxu0 0.0
    %2339 = vmatprep.subr.mxu0 0.0
    %2340 = vmatpush2.xpose.msra.mxu0 0.0
    %2341 = vmatprep.mubr.f32.mxu0 0.0
    %2342 = vmatmul.mubr.f32.gmra.mxu0 %v2271
    %v2343 = vpop.f32.mrf.mxu0
    %v2344 = vadd.f32 0.0, %v2343
    %v2345 = vpop.f32.mrf.mxu0
    %2346 = vdwg.mxu0
    %v2347 = vld [vmem:[#allocation4] sm:$0xff]
    %v2348 = vld [vmem:[#allocation4 + $0x8] sm:$0xff]
    %v2349 = vsel %vm1445, %v2262, -inf
    %2350 = vmax.xlane.f32.xlu0 %v2349
    %v2351 = vpop.xlane.xlu0 %2350
    %v2352 = vsel %vm1445, %v2344, -inf
    %2353 = vmax.xlane.f32.xlu0 %v2352
    %v2354 = vpop.xlane.xlu0 %2353
    %v2355 = vmax.f32 %v2347, %v2351
    %v2356 = vmax.f32 %v2348, %v2354
    %v2357 = vsub.f32 %v2347, %v2355
    %v2358 = vsub.f32 %v2348, %v2356
    %v2359 = vmul.f32 %v2357, 1.442695
    %v2360 = vpow.pop %v2359
    %v2361 = vmul.f32 %v2358, 1.442695
    %v2362 = vpow.pop %v2361
    %2364 = vset.pattern.permute.xlu0 2
    %2365 = vperm.xlu0 %2364, %v2355
    %v2366 = vpop.permute.xlu0 %2365
    %2369 = vset.pattern.permute.xlu0 2
    %2370 = vperm.xlu0 %2369, %v2356
    %v2371 = vpop.permute.xlu0 %2370
    %v2373 = vsub.f32 %v2262, %v2366
    %v2374 = vsub.f32 %v2344, %v2371
    %v2375 = vmul.f32 %v2373, 1.442695
    %v2376 = vpow.pop %v2375
    %v2377 = vmul.f32 %v2374, 1.442695
    %v2378 = vpow.pop %v2377
    %v2379 = vld [vmem:[#allocation5] sm:$0xff]
    %v2380 = vld [vmem:[#allocation5 + $0x8] sm:$0xff]
    %v2381 = vmul.f32 %v2360, %v2379
    %v2382 = vmul.f32 %v2362, %v2380
    %v2383 = vsel %vm1445, %v2376, 0.0
    %2384 = vadd.xlane.f32.xlu0 %v2383
    %v2385 = vpop.xlane.xlu0 %2384
    %v2386 = vsel %vm1445, %v2378, 0.0
    %2387 = vadd.xlane.f32.xlu0 %v2386
    %v2388 = vpop.xlane.xlu0 %2387
    %v2389 = vadd.f32 %v2381, %v2385
    %v2390 = vadd.f32 %v2382, %v2388
    %2391 = vrot.lane.b32.xlu0 %v1512, 112
    %v2392 = vpop.permute.xlu0 %2391
    %2393 = vrot.lane.b32.xlu0 %v1529, 112
    %v2394 = vpop.permute.xlu0 %2393
    %v2398 = vsel %vm1445, %v2376, 0
    %2400 = vmatprep.subr.mxu0 0.0
    %2401 = vmatpush1.msra.mxu0 0.0
    %2402 = vmatprep.subr.mxu0 0.0
    %2403 = vmatpush1.msra.mxu0 0.0
    %2404 = vmatprep.subr.mxu0 0.0
    %2405 = vmatpush1.msra.mxu0 0.0
    %2406 = vmatprep.subr.mxu0 0.0
    %2407 = vmatpush1.msra.mxu0 0.0
    %2408 = vmatprep.subr.mxu0 0.0
    %2409 = vmatpush1.msra.mxu0 0.0
    %2410 = vmatprep.subr.mxu0 0.0
    %2411 = vmatpush1.msra.mxu0 0.0
    %2412 = vmatprep.subr.mxu0 0.0
    %2413 = vmatpush1.msra.mxu0 0.0
    %2414 = vmatprep.subr.mxu0 0.0
    %2415 = vmatpush1.msra.mxu0 0.0
    %2416 = vmatprep.subr.mxu0 0.0
    %2417 = vmatpush1.msra.mxu0 0.0
    %2418 = vmatprep.subr.mxu0 0.0
    %2419 = vmatpush1.msra.mxu0 0.0
    %2420 = vmatprep.subr.mxu0 0.0
    %2421 = vmatpush1.msra.mxu0 0.0
    %2422 = vmatprep.subr.mxu0 0.0
    %2423 = vmatpush1.msra.mxu0 0.0
    %2424 = vmatprep.subr.mxu0 0.0
    %2425 = vmatpush1.msra.mxu0 0.0
    %2426 = vmatprep.subr.mxu0 0.0
    %2427 = vmatpush1.msra.mxu0 0.0
    %2428 = vmatprep.subr.mxu0 0.0
    %2429 = vmatpush1.msra.mxu0 %v2394
    %2430 = vmatprep.subr.mxu0 0.0
    %2431 = vmatpush1.msra.mxu0 %v2392
    %2432 = vmatprep.subr.mxu0 0.0
    %2433 = vmatpush2.msra.mxu0 0.0
    %2434 = vmatprep.subr.mxu0 0.0
    %2435 = vmatpush2.msra.mxu0 0.0
    %2436 = vmatprep.subr.mxu0 0.0
    %2437 = vmatpush2.msra.mxu0 0.0
    %2438 = vmatprep.subr.mxu0 0.0
    %2439 = vmatpush2.msra.mxu0 0.0
    %2440 = vmatprep.subr.mxu0 0.0
    %2441 = vmatpush2.msra.mxu0 0.0
    %2442 = vmatprep.subr.mxu0 0.0
    %2443 = vmatpush2.msra.mxu0 0.0
    %2444 = vmatprep.subr.mxu0 0.0
    %2445 = vmatpush2.msra.mxu0 0.0
    %2446 = vmatprep.subr.mxu0 0.0
    %2447 = vmatpush2.msra.mxu0 0.0
    %2448 = vmatprep.subr.mxu0 0.0
    %2449 = vmatpush2.msra.mxu0 0.0
    %2450 = vmatprep.subr.mxu0 0.0
    %2451 = vmatpush2.msra.mxu0 0.0
    %2452 = vmatprep.subr.mxu0 0.0
    %2453 = vmatpush2.msra.mxu0 0.0
    %2454 = vmatprep.subr.mxu0 0.0
    %2455 = vmatpush2.msra.mxu0 0.0
    %2456 = vmatprep.subr.mxu0 0.0
    %2457 = vmatpush2.msra.mxu0 0.0
    %2458 = vmatprep.subr.mxu0 0.0
    %2459 = vmatpush2.msra.mxu0 0.0
    %2460 = vmatprep.subr.mxu0 0.0
    %2461 = vmatpush2.msra.mxu0 0.0
    %2462 = vmatprep.subr.mxu0 0.0
    %2463 = vmatpush2.msra.mxu0 0.0
    %2464 = vmatprep.mubr.f32.mxu0 0.0
    %2465 = vmatmul.mubr.f32.gmra.mxu0 %v2398
    %v2466 = vpop.f32.mrf.mxu0
    %v2467 = vadd.f32 0.0, %v2466
    %v2468 = vpop.f32.mrf.mxu0
    %2469 = vdwg.mxu0
    %2470 = vrot.lane.b32.xlu0 %v1629, 112
    %v2471 = vpop.permute.xlu0 %2470
    %2472 = vrot.lane.b32.xlu0 %v1646, 112
    %v2473 = vpop.permute.xlu0 %2472
    %v2477 = vsel %vm1445, %v2378, 0
    %2479 = vmatprep.subr.mxu0 0.0
    %2480 = vmatpush1.msra.mxu0 0.0
    %2481 = vmatprep.subr.mxu0 0.0
    %2482 = vmatpush1.msra.mxu0 0.0
    %2483 = vmatprep.subr.mxu0 0.0
    %2484 = vmatpush1.msra.mxu0 0.0
    %2485 = vmatprep.subr.mxu0 0.0
    %2486 = vmatpush1.msra.mxu0 0.0
    %2487 = vmatprep.subr.mxu0 0.0
    %2488 = vmatpush1.msra.mxu0 0.0
    %2489 = vmatprep.subr.mxu0 0.0
    %2490 = vmatpush1.msra.mxu0 0.0
    %2491 = vmatprep.subr.mxu0 0.0
    %2492 = vmatpush1.msra.mxu0 0.0
    %2493 = vmatprep.subr.mxu0 0.0
    %2494 = vmatpush1.msra.mxu0 0.0
    %2495 = vmatprep.subr.mxu0 0.0
    %2496 = vmatpush1.msra.mxu0 0.0
    %2497 = vmatprep.subr.mxu0 0.0
    %2498 = vmatpush1.msra.mxu0 0.0
    %2499 = vmatprep.subr.mxu0 0.0
    %2500 = vmatpush1.msra.mxu0 0.0
    %2501 = vmatprep.subr.mxu0 0.0
    %2502 = vmatpush1.msra.mxu0 0.0
    %2503 = vmatprep.subr.mxu0 0.0
    %2504 = vmatpush1.msra.mxu0 0.0
    %2505 = vmatprep.subr.mxu0 0.0
    %2506 = vmatpush1.msra.mxu0 0.0
    %2507 = vmatprep.subr.mxu0 0.0
    %2508 = vmatpush1.msra.mxu0 %v2473
    %2509 = vmatprep.subr.mxu0 0.0
    %2510 = vmatpush1.msra.mxu0 %v2471
    %2511 = vmatprep.subr.mxu0 0.0
    %2512 = vmatpush2.msra.mxu0 0.0
    %2513 = vmatprep.subr.mxu0 0.0
    %2514 = vmatpush2.msra.mxu0 0.0
    %2515 = vmatprep.subr.mxu0 0.0
    %2516 = vmatpush2.msra.mxu0 0.0
    %2517 = vmatprep.subr.mxu0 0.0
    %2518 = vmatpush2.msra.mxu0 0.0
    %2519 = vmatprep.subr.mxu0 0.0
    %2520 = vmatpush2.msra.mxu0 0.0
    %2521 = vmatprep.subr.mxu0 0.0
    %2522 = vmatpush2.msra.mxu0 0.0
    %2523 = vmatprep.subr.mxu0 0.0
    %2524 = vmatpush2.msra.mxu0 0.0
    %2525 = vmatprep.subr.mxu0 0.0
    %2526 = vmatpush2.msra.mxu0 0.0
    %2527 = vmatprep.subr.mxu0 0.0
    %2528 = vmatpush2.msra.mxu0 0.0
    %2529 = vmatprep.subr.mxu0 0.0
    %2530 = vmatpush2.msra.mxu0 0.0
    %2531 = vmatprep.subr.mxu0 0.0
    %2532 = vmatpush2.msra.mxu0 0.0
    %2533 = vmatprep.subr.mxu0 0.0
    %2534 = vmatpush2.msra.mxu0 0.0
    %2535 = vmatprep.subr.mxu0 0.0
    %2536 = vmatpush2.msra.mxu0 0.0
    %2537 = vmatprep.subr.mxu0 0.0
    %2538 = vmatpush2.msra.mxu0 0.0
    %2539 = vmatprep.subr.mxu0 0.0
    %2540 = vmatpush2.msra.mxu0 0.0
    %2541 = vmatprep.subr.mxu0 0.0
    %2542 = vmatpush2.msra.mxu0 0.0
    %2543 = vmatprep.mubr.f32.mxu0 0.0
    %2544 = vmatmul.mubr.f32.gmra.mxu0 %v2477
    %v2545 = vpop.f32.mrf.mxu0
    %v2546 = vadd.f32 0.0, %v2545
    %v2547 = vpop.f32.mrf.mxu0
    %2548 = vdwg.mxu0
    %v2549 = vld [vmem:[#allocation3] sm:$0xff]
    %v2550 = vld [vmem:[#allocation3 + $0x8] sm:$0xff]
    %2552 = vset.pattern.permute.xlu0 2
    %2553 = vperm.xlu0 %2552, %v2360
    %v2554 = vpop.permute.xlu0 %2553
    %2557 = vset.pattern.permute.xlu0 2
    %2558 = vperm.xlu0 %2557, %v2362
    %v2559 = vpop.permute.xlu0 %2558
    %v2561 = vmul.f32 %v2554, %v2549
    %v2562 = vmul.f32 %v2559, %v2550
    %2565 = vrot.lane.b32.xlu0 %v2467, 16
    %v2566 = vpop.permute.xlu0 %2565
    %2567 = vrot.lane.b32.xlu0 %v2546, 16
    %v2568 = vpop.permute.xlu0 %2567
    %v2571 = vadd.f32 %v2561, %v2566
    %v2572 = vadd.f32 %v2562, %v2568
    %vm2573 = vcmask 195712
    %2574 = vst.msk [vmem:[#allocation3] sm:$0xff] %vm2573, %v2571
    %2575 = vst.msk [vmem:[#allocation3 + $0x8] sm:$0xff] %vm2573, %v2572
    %vm2576 = vcmask 23568
    %2577 = vst.msk [vmem:[#allocation4] sm:$0xff] %vm2576, %v2355
    %2578 = vst.msk [vmem:[#allocation4 + $0x8] sm:$0xff] %vm2576, %v2356
    %2579 = vst.msk [vmem:[#allocation5] sm:$0xff] %vm2576, %v2389
    %2580 = vst.msk [vmem:[#allocation5 + $0x8] sm:$0xff] %vm2576, %v2390
    %v2581 = vld [vmem:[#allocation6] sm:$0xff]
    %v2582 = vld [vmem:[#allocation6 + $0x8] sm:$0xff]
    %v2583 = vrcp.pop %v2389
    %v2584 = vrcp.pop %v2390
    %2586 = vset.pattern.permute.xlu0 2
    %2587 = vperm.xlu0 %2586, %v2583
    %v2588 = vpop.permute.xlu0 %2587
    %2591 = vset.pattern.permute.xlu0 2
    %2592 = vperm.xlu0 %2591, %v2584
    %v2593 = vpop.permute.xlu0 %2592
    %v2595 = vmul.f32 %v2376, %v2588
    %v2596 = vmul.f32 %v2378, %v2593
    %v2597 = vadd.f32 %v2581, %v2595
    %v2598 = vadd.f32 %v2582, %v2596
    %2599 = vst.msk [vmem:[#allocation6] sm:$0xff] %vm1445, %v2597
    %2600 = vst.msk [vmem:[#allocation6 + $0x8] sm:$0xff] %vm1445, %v2598
    %2601 = vrot.lane.b32.xlu0 %v1202, 104
    %v2602 = vpop.permute.xlu0 %2601
    %2603 = vrot.lane.b32.xlu0 %v1228, 104
    %v2604 = vpop.permute.xlu0 %2603
    %2605 = vrot.lane.b32.xlu0 %v1245, 104
    %v2606 = vpop.permute.xlu0 %2605
    %v2607 = vsel %vm1246, %v2602, 0
    %v2609 = vsel %vm1246, %v2604, 0
    %v2611 = vsel %vm1246, %v2606, 0
    %2613 = vmatprep.subr.mxu0 0.0
    %2614 = vmatpush1.xpose.msra.mxu0 0.0
    %2615 = vmatprep.subr.mxu0 0.0
    %2616 = vmatpush1.xpose.msra.mxu0 0.0
    %2617 = vmatprep.subr.mxu0 0.0
    %2618 = vmatpush1.xpose.msra.mxu0 0.0
    %2619 = vmatprep.subr.mxu0 0.0
    %2620 = vmatpush1.xpose.msra.mxu0 0.0
    %2621 = vmatprep.subr.mxu0 0.0
    %2622 = vmatpush1.xpose.msra.mxu0 0.0
    %2623 = vmatprep.subr.mxu0 0.0
    %2624 = vmatpush1.xpose.msra.mxu0 0.0
    %2625 = vmatprep.subr.mxu0 0.0
    %2626 = vmatpush1.xpose.msra.mxu0 0.0
    %2627 = vmatprep.subr.mxu0 0.0
    %2628 = vmatpush1.xpose.msra.mxu0 0.0
    %2629 = vmatprep.subr.mxu0 0.0
    %2630 = vmatpush1.xpose.msra.mxu0 0.0
    %2631 = vmatprep.subr.mxu0 0.0
    %2632 = vmatpush1.xpose.msra.mxu0 0.0
    %2633 = vmatprep.subr.mxu0 0.0
    %2634 = vmatpush1.xpose.msra.mxu0 0.0
    %2635 = vmatprep.subr.mxu0 0.0
    %2636 = vmatpush1.xpose.msra.mxu0 0.0
    %2637 = vmatprep.subr.mxu0 0.0
    %2638 = vmatpush1.xpose.msra.mxu0 0.0
    %2639 = vmatprep.subr.mxu0 0.0
    %2640 = vmatpush1.xpose.msra.mxu0 0.0
    %2641 = vmatprep.subr.mxu0 0.0
    %2642 = vmatpush1.xpose.msra.mxu0 %v2611
    %2643 = vmatprep.subr.mxu0 0.0
    %2644 = vmatpush1.xpose.msra.mxu0 %v2609
    %2645 = vmatprep.subr.mxu0 0.0
    %2646 = vmatpush2.xpose.msra.mxu0 0.0
    %2647 = vmatprep.subr.mxu0 0.0
    %2648 = vmatpush2.xpose.msra.mxu0 0.0
    %2649 = vmatprep.subr.mxu0 0.0
    %2650 = vmatpush2.xpose.msra.mxu0 0.0
    %2651 = vmatprep.subr.mxu0 0.0
    %2652 = vmatpush2.xpose.msra.mxu0 0.0
    %2653 = vmatprep.subr.mxu0 0.0
    %2654 = vmatpush2.xpose.msra.mxu0 0.0
    %2655 = vmatprep.subr.mxu0 0.0
    %2656 = vmatpush2.xpose.msra.mxu0 0.0
    %2657 = vmatprep.subr.mxu0 0.0
    %2658 = vmatpush2.xpose.msra.mxu0 0.0
    %2659 = vmatprep.subr.mxu0 0.0
    %2660 = vmatpush2.xpose.msra.mxu0 0.0
    %2661 = vmatprep.subr.mxu0 0.0
    %2662 = vmatpush2.xpose.msra.mxu0 0.0
    %2663 = vmatprep.subr.mxu0 0.0
    %2664 = vmatpush2.xpose.msra.mxu0 0.0
    %2665 = vmatprep.subr.mxu0 0.0
    %2666 = vmatpush2.xpose.msra.mxu0 0.0
    %2667 = vmatprep.subr.mxu0 0.0
    %2668 = vmatpush2.xpose.msra.mxu0 0.0
    %2669 = vmatprep.subr.mxu0 0.0
    %2670 = vmatpush2.xpose.msra.mxu0 0.0
    %2671 = vmatprep.subr.mxu0 0.0
    %2672 = vmatpush2.xpose.msra.mxu0 0.0
    %2673 = vmatprep.subr.mxu0 0.0
    %2674 = vmatpush2.xpose.msra.mxu0 0.0
    %2675 = vmatprep.subr.mxu0 0.0
    %2676 = vmatpush2.xpose.msra.mxu0 0.0
    %2677 = vmatprep.mubr.f32.mxu0 0.0
    %2678 = vmatmul.mubr.f32.gmra.mxu0 %v2607
    %v2679 = vpop.f32.mrf.mxu0
    %v2680 = vadd.f32 0.0, %v2679
    %v2681 = vpop.f32.mrf.mxu0
    %2682 = vdwg.mxu0
    %2683 = vrot.lane.b32.xlu0 %v1203, 104
    %v2684 = vpop.permute.xlu0 %2683
    %2685 = vrot.lane.b32.xlu0 %v1348, 104
    %v2686 = vpop.permute.xlu0 %2685
    %2687 = vrot.lane.b32.xlu0 %v1365, 104
    %v2688 = vpop.permute.xlu0 %2687
    %v2689 = vsel %vm1246, %v2684, 0
    %v2691 = vsel %vm1246, %v2686, 0
    %v2693 = vsel %vm1246, %v2688, 0
    %2695 = vmatprep.subr.mxu0 0.0
    %2696 = vmatpush1.xpose.msra.mxu0 0.0
    %2697 = vmatprep.subr.mxu0 0.0
    %2698 = vmatpush1.xpose.msra.mxu0 0.0
    %2699 = vmatprep.subr.mxu0 0.0
    %2700 = vmatpush1.xpose.msra.mxu0 0.0
    %2701 = vmatprep.subr.mxu0 0.0
    %2702 = vmatpush1.xpose.msra.mxu0 0.0
    %2703 = vmatprep.subr.mxu0 0.0
    %2704 = vmatpush1.xpose.msra.mxu0 0.0
    %2705 = vmatprep.subr.mxu0 0.0
    %2706 = vmatpush1.xpose.msra.mxu0 0.0
    %2707 = vmatprep.subr.mxu0 0.0
    %2708 = vmatpush1.xpose.msra.mxu0 0.0
    %2709 = vmatprep.subr.mxu0 0.0
    %2710 = vmatpush1.xpose.msra.mxu0 0.0
    %2711 = vmatprep.subr.mxu0 0.0
    %2712 = vmatpush1.xpose.msra.mxu0 0.0
    %2713 = vmatprep.subr.mxu0 0.0
    %2714 = vmatpush1.xpose.msra.mxu0 0.0
    %2715 = vmatprep.subr.mxu0 0.0
    %2716 = vmatpush1.xpose.msra.mxu0 0.0
    %2717 = vmatprep.subr.mxu0 0.0
    %2718 = vmatpush1.xpose.msra.mxu0 0.0
    %2719 = vmatprep.subr.mxu0 0.0
    %2720 = vmatpush1.xpose.msra.mxu0 0.0
    %2721 = vmatprep.subr.mxu0 0.0
    %2722 = vmatpush1.xpose.msra.mxu0 0.0
    %2723 = vmatprep.subr.mxu0 0.0
    %2724 = vmatpush1.xpose.msra.mxu0 %v2693
    %2725 = vmatprep.subr.mxu0 0.0
    %2726 = vmatpush1.xpose.msra.mxu0 %v2691
    %2727 = vmatprep.subr.mxu0 0.0
    %2728 = vmatpush2.xpose.msra.mxu0 0.0
    %2729 = vmatprep.subr.mxu0 0.0
    %2730 = vmatpush2.xpose.msra.mxu0 0.0
    %2731 = vmatprep.subr.mxu0 0.0
    %2732 = vmatpush2.xpose.msra.mxu0 0.0
    %2733 = vmatprep.subr.mxu0 0.0
    %2734 = vmatpush2.xpose.msra.mxu0 0.0
    %2735 = vmatprep.subr.mxu0 0.0
    %2736 = vmatpush2.xpose.msra.mxu0 0.0
    %2737 = vmatprep.subr.mxu0 0.0
    %2738 = vmatpush2.xpose.msra.mxu0 0.0
    %2739 = vmatprep.subr.mxu0 0.0
    %2740 = vmatpush2.xpose.msra.mxu0 0.0
    %2741 = vmatprep.subr.mxu0 0.0
    %2742 = vmatpush2.xpose.msra.mxu0 0.0
    %2743 = vmatprep.subr.mxu0 0.0
    %2744 = vmatpush2.xpose.msra.mxu0 0.0
    %2745 = vmatprep.subr.mxu0 0.0
    %2746 = vmatpush2.xpose.msra.mxu0 0.0
    %2747 = vmatprep.subr.mxu0 0.0
    %2748 = vmatpush2.xpose.msra.mxu0 0.0
    %2749 = vmatprep.subr.mxu0 0.0
    %2750 = vmatpush2.xpose.msra.mxu0 0.0
    %2751 = vmatprep.subr.mxu0 0.0
    %2752 = vmatpush2.xpose.msra.mxu0 0.0
    %2753 = vmatprep.subr.mxu0 0.0
    %2754 = vmatpush2.xpose.msra.mxu0 0.0
    %2755 = vmatprep.subr.mxu0 0.0
    %2756 = vmatpush2.xpose.msra.mxu0 0.0
    %2757 = vmatprep.subr.mxu0 0.0
    %2758 = vmatpush2.xpose.msra.mxu0 0.0
    %2759 = vmatprep.mubr.f32.mxu0 0.0
    %2760 = vmatmul.mubr.f32.gmra.mxu0 %v2689
    %v2761 = vpop.f32.mrf.mxu0
    %v2762 = vadd.f32 0.0, %v2761
    %v2763 = vpop.f32.mrf.mxu0
    %2764 = vdwg.mxu0
    %v2765 = vld [vmem:[#allocation4] sm:$0xff]
    %v2766 = vld [vmem:[#allocation4 + $0x8] sm:$0xff]
    %v2767 = vsel %vm1445, %v2680, -inf
    %2768 = vmax.xlane.f32.xlu0 %v2767
    %v2769 = vpop.xlane.xlu0 %2768
    %v2770 = vsel %vm1445, %v2762, -inf
    %2771 = vmax.xlane.f32.xlu0 %v2770
    %v2772 = vpop.xlane.xlu0 %2771
    %v2773 = vmax.f32 %v2765, %v2769
    %v2774 = vmax.f32 %v2766, %v2772
    %v2775 = vsub.f32 %v2765, %v2773
    %v2776 = vsub.f32 %v2766, %v2774
    %v2777 = vmul.f32 %v2775, 1.442695
    %v2778 = vpow.pop %v2777
    %v2779 = vmul.f32 %v2776, 1.442695
    %v2780 = vpow.pop %v2779
    %2782 = vset.pattern.permute.xlu0 3
    %2783 = vperm.xlu0 %2782, %v2773
    %v2784 = vpop.permute.xlu0 %2783
    %2787 = vset.pattern.permute.xlu0 3
    %2788 = vperm.xlu0 %2787, %v2774
    %v2789 = vpop.permute.xlu0 %2788
    %v2791 = vsub.f32 %v2680, %v2784
    %v2792 = vsub.f32 %v2762, %v2789
    %v2793 = vmul.f32 %v2791, 1.442695
    %v2794 = vpow.pop %v2793
    %v2795 = vmul.f32 %v2792, 1.442695
    %v2796 = vpow.pop %v2795
    %v2797 = vld [vmem:[#allocation5] sm:$0xff]
    %v2798 = vld [vmem:[#allocation5 + $0x8] sm:$0xff]
    %v2799 = vmul.f32 %v2778, %v2797
    %v2800 = vmul.f32 %v2780, %v2798
    %v2801 = vsel %vm1445, %v2794, 0.0
    %2802 = vadd.xlane.f32.xlu0 %v2801
    %v2803 = vpop.xlane.xlu0 %2802
    %v2804 = vsel %vm1445, %v2796, 0.0
    %2805 = vadd.xlane.f32.xlu0 %v2804
    %v2806 = vpop.xlane.xlu0 %2805
    %v2807 = vadd.f32 %v2799, %v2803
    %v2808 = vadd.f32 %v2800, %v2806
    %2809 = vrot.lane.b32.xlu0 %v1512, 104
    %v2810 = vpop.permute.xlu0 %2809
    %2811 = vrot.lane.b32.xlu0 %v1529, 104
    %v2812 = vpop.permute.xlu0 %2811
    %v2816 = vsel %vm1445, %v2794, 0
    %2818 = vmatprep.subr.mxu0 0.0
    %2819 = vmatpush1.msra.mxu0 0.0
    %2820 = vmatprep.subr.mxu0 0.0
    %2821 = vmatpush1.msra.mxu0 0.0
    %2822 = vmatprep.subr.mxu0 0.0
    %2823 = vmatpush1.msra.mxu0 0.0
    %2824 = vmatprep.subr.mxu0 0.0
    %2825 = vmatpush1.msra.mxu0 0.0
    %2826 = vmatprep.subr.mxu0 0.0
    %2827 = vmatpush1.msra.mxu0 0.0
    %2828 = vmatprep.subr.mxu0 0.0
    %2829 = vmatpush1.msra.mxu0 0.0
    %2830 = vmatprep.subr.mxu0 0.0
    %2831 = vmatpush1.msra.mxu0 0.0
    %2832 = vmatprep.subr.mxu0 0.0
    %2833 = vmatpush1.msra.mxu0 0.0
    %2834 = vmatprep.subr.mxu0 0.0
    %2835 = vmatpush1.msra.mxu0 0.0
    %2836 = vmatprep.subr.mxu0 0.0
    %2837 = vmatpush1.msra.mxu0 0.0
    %2838 = vmatprep.subr.mxu0 0.0
    %2839 = vmatpush1.msra.mxu0 0.0
    %2840 = vmatprep.subr.mxu0 0.0
    %2841 = vmatpush1.msra.mxu0 0.0
    %2842 = vmatprep.subr.mxu0 0.0
    %2843 = vmatpush1.msra.mxu0 0.0
    %2844 = vmatprep.subr.mxu0 0.0
    %2845 = vmatpush1.msra.mxu0 0.0
    %2846 = vmatprep.subr.mxu0 0.0
    %2847 = vmatpush1.msra.mxu0 %v2812
    %2848 = vmatprep.subr.mxu0 0.0
    %2849 = vmatpush1.msra.mxu0 %v2810
    %2850 = vmatprep.subr.mxu0 0.0
    %2851 = vmatpush2.msra.mxu0 0.0
    %2852 = vmatprep.subr.mxu0 0.0
    %2853 = vmatpush2.msra.mxu0 0.0
    %2854 = vmatprep.subr.mxu0 0.0
    %2855 = vmatpush2.msra.mxu0 0.0
    %2856 = vmatprep.subr.mxu0 0.0
    %2857 = vmatpush2.msra.mxu0 0.0
    %2858 = vmatprep.subr.mxu0 0.0
    %2859 = vmatpush2.msra.mxu0 0.0
    %2860 = vmatprep.subr.mxu0 0.0
    %2861 = vmatpush2.msra.mxu0 0.0
    %2862 = vmatprep.subr.mxu0 0.0
    %2863 = vmatpush2.msra.mxu0 0.0
    %2864 = vmatprep.subr.mxu0 0.0
    %2865 = vmatpush2.msra.mxu0 0.0
    %2866 = vmatprep.subr.mxu0 0.0
    %2867 = vmatpush2.msra.mxu0 0.0
    %2868 = vmatprep.subr.mxu0 0.0
    %2869 = vmatpush2.msra.mxu0 0.0
    %2870 = vmatprep.subr.mxu0 0.0
    %2871 = vmatpush2.msra.mxu0 0.0
    %2872 = vmatprep.subr.mxu0 0.0
    %2873 = vmatpush2.msra.mxu0 0.0
    %2874 = vmatprep.subr.mxu0 0.0
    %2875 = vmatpush2.msra.mxu0 0.0
    %2876 = vmatprep.subr.mxu0 0.0
    %2877 = vmatpush2.msra.mxu0 0.0
    %2878 = vmatprep.subr.mxu0 0.0
    %2879 = vmatpush2.msra.mxu0 0.0
    %2880 = vmatprep.subr.mxu0 0.0
    %2881 = vmatpush2.msra.mxu0 0.0
    %2882 = vmatprep.mubr.f32.mxu0 0.0
    %2883 = vmatmul.mubr.f32.gmra.mxu0 %v2816
    %v2884 = vpop.f32.mrf.mxu0
    %v2885 = vadd.f32 0.0, %v2884
    %v2886 = vpop.f32.mrf.mxu0
    %2887 = vdwg.mxu0
    %2888 = vrot.lane.b32.xlu0 %v1629, 104
    %v2889 = vpop.permute.xlu0 %2888
    %2890 = vrot.lane.b32.xlu0 %v1646, 104
    %v2891 = vpop.permute.xlu0 %2890
    %v2895 = vsel %vm1445, %v2796, 0
    %2897 = vmatprep.subr.mxu0 0.0
    %2898 = vmatpush1.msra.mxu0 0.0
    %2899 = vmatprep.subr.mxu0 0.0
    %2900 = vmatpush1.msra.mxu0 0.0
    %2901 = vmatprep.subr.mxu0 0.0
    %2902 = vmatpush1.msra.mxu0 0.0
    %2903 = vmatprep.subr.mxu0 0.0
    %2904 = vmatpush1.msra.mxu0 0.0
    %2905 = vmatprep.subr.mxu0 0.0
    %2906 = vmatpush1.msra.mxu0 0.0
    %2907 = vmatprep.subr.mxu0 0.0
    %2908 = vmatpush1.msra.mxu0 0.0
    %2909 = vmatprep.subr.mxu0 0.0
    %2910 = vmatpush1.msra.mxu0 0.0
    %2911 = vmatprep.subr.mxu0 0.0
    %2912 = vmatpush1.msra.mxu0 0.0
    %2913 = vmatprep.subr.mxu0 0.0
    %2914 = vmatpush1.msra.mxu0 0.0
    %2915 = vmatprep.subr.mxu0 0.0
    %2916 = vmatpush1.msra.mxu0 0.0
    %2917 = vmatprep.subr.mxu0 0.0
    %2918 = vmatpush1.msra.mxu0 0.0
    %2919 = vmatprep.subr.mxu0 0.0
    %2920 = vmatpush1.msra.mxu0 0.0
    %2921 = vmatprep.subr.mxu0 0.0
    %2922 = vmatpush1.msra.mxu0 0.0
    %2923 = vmatprep.subr.mxu0 0.0
    %2924 = vmatpush1.msra.mxu0 0.0
    %2925 = vmatprep.subr.mxu0 0.0
    %2926 = vmatpush1.msra.mxu0 %v2891
    %2927 = vmatprep.subr.mxu0 0.0
    %2928 = vmatpush1.msra.mxu0 %v2889
    %2929 = vmatprep.subr.mxu0 0.0
    %2930 = vmatpush2.msra.mxu0 0.0
    %2931 = vmatprep.subr.mxu0 0.0
    %2932 = vmatpush2.msra.mxu0 0.0
    %2933 = vmatprep.subr.mxu0 0.0
    %2934 = vmatpush2.msra.mxu0 0.0
    %2935 = vmatprep.subr.mxu0 0.0
    %2936 = vmatpush2.msra.mxu0 0.0
    %2937 = vmatprep.subr.mxu0 0.0
    %2938 = vmatpush2.msra.mxu0 0.0
    %2939 = vmatprep.subr.mxu0 0.0
    %2940 = vmatpush2.msra.mxu0 0.0
    %2941 = vmatprep.subr.mxu0 0.0
    %2942 = vmatpush2.msra.mxu0 0.0
    %2943 = vmatprep.subr.mxu0 0.0
    %2944 = vmatpush2.msra.mxu0 0.0
    %2945 = vmatprep.subr.mxu0 0.0
    %2946 = vmatpush2.msra.mxu0 0.0
    %2947 = vmatprep.subr.mxu0 0.0
    %2948 = vmatpush2.msra.mxu0 0.0
    %2949 = vmatprep.subr.mxu0 0.0
    %2950 = vmatpush2.msra.mxu0 0.0
    %2951 = vmatprep.subr.mxu0 0.0
    %2952 = vmatpush2.msra.mxu0 0.0
    %2953 = vmatprep.subr.mxu0 0.0
    %2954 = vmatpush2.msra.mxu0 0.0
    %2955 = vmatprep.subr.mxu0 0.0
    %2956 = vmatpush2.msra.mxu0 0.0
    %2957 = vmatprep.subr.mxu0 0.0
    %2958 = vmatpush2.msra.mxu0 0.0
    %2959 = vmatprep.subr.mxu0 0.0
    %2960 = vmatpush2.msra.mxu0 0.0
    %2961 = vmatprep.mubr.f32.mxu0 0.0
    %2962 = vmatmul.mubr.f32.gmra.mxu0 %v2895
    %v2963 = vpop.f32.mrf.mxu0
    %v2964 = vadd.f32 0.0, %v2963
    %v2965 = vpop.f32.mrf.mxu0
    %2966 = vdwg.mxu0
    %v2967 = vld [vmem:[#allocation3] sm:$0xff]
    %v2968 = vld [vmem:[#allocation3 + $0x8] sm:$0xff]
    %2970 = vset.pattern.permute.xlu0 3
    %2971 = vperm.xlu0 %2970, %v2778
    %v2972 = vpop.permute.xlu0 %2971
    %2975 = vset.pattern.permute.xlu0 3
    %2976 = vperm.xlu0 %2975, %v2780
    %v2977 = vpop.permute.xlu0 %2976
    %v2979 = vmul.f32 %v2972, %v2967
    %v2980 = vmul.f32 %v2977, %v2968
    %2983 = vrot.lane.b32.xlu0 %v2885, 24
    %v2984 = vpop.permute.xlu0 %2983
    %2985 = vrot.lane.b32.xlu0 %v2964, 24
    %v2986 = vpop.permute.xlu0 %2985
    %v2989 = vadd.f32 %v2979, %v2984
    %v2990 = vadd.f32 %v2980, %v2986
    %vm2991 = vcmask 261312
    %2992 = vst.msk [vmem:[#allocation3] sm:$0xff] %vm2991, %v2989
    %2993 = vst.msk [vmem:[#allocation3 + $0x8] sm:$0xff] %vm2991, %v2990
    %vm2994 = vcmask 31768
    %2995 = vst.msk [vmem:[#allocation4] sm:$0xff] %vm2994, %v2773
    %2996 = vst.msk [vmem:[#allocation4 + $0x8] sm:$0xff] %vm2994, %v2774
    %2997 = vst.msk [vmem:[#allocation5] sm:$0xff] %vm2994, %v2807
    %2998 = vst.msk [vmem:[#allocation5 + $0x8] sm:$0xff] %vm2994, %v2808
    %v2999 = vld [vmem:[#allocation6] sm:$0xff]
    %v3000 = vld [vmem:[#allocation6 + $0x8] sm:$0xff]
    %v3001 = vrcp.pop %v2807
    %v3002 = vrcp.pop %v2808
    %3004 = vset.pattern.permute.xlu0 3
    %3005 = vperm.xlu0 %3004, %v3001
    %v3006 = vpop.permute.xlu0 %3005
    %3009 = vset.pattern.permute.xlu0 3
    %3010 = vperm.xlu0 %3009, %v3002
    %v3011 = vpop.permute.xlu0 %3010
    %v3013 = vmul.f32 %v2794, %v3006
    %v3014 = vmul.f32 %v2796, %v3011
    %v3015 = vadd.f32 %v2999, %v3013
    %v3016 = vadd.f32 %v3000, %v3014
    %3017 = vst.msk [vmem:[#allocation6] sm:$0xff] %vm1445, %v3015
    %3018 = vst.msk [vmem:[#allocation6 + $0x8] sm:$0xff] %vm1445, %v3016
    // Predicated region
    $region94: #{tpu_custom_call.1} parent=1 // pred_check
      %p3019 = pneg %p160
    $region95: #{tpu_custom_call.1} parent=1 // pred_check_branch
      %3021 = sbr.rel (%p3019) target = $region97
    $region96: #{tpu_custom_call.1} parent=1 // pred_region
      %v3022 = vld [vmem:[#allocation5] sm:$0xff]
      %v3023 = vld [vmem:[#allocation5 + $0x8] sm:$0xff]
      %v3024 = vrcp.pop %v3022
      %v3025 = vrcp.pop %v3023
      %v3026 = vld [vmem:[#allocation3] sm:$0xff]
      %v3027 = vld [vmem:[#allocation3 + $0x8] sm:$0xff]
      %3029 = vset.pattern.permute.xlu0 0
      %3030 = vperm.xlu0 %3029, %v3024
      %v3031 = vpop.permute.xlu0 %3030
      %3034 = vset.pattern.permute.xlu0 0
      %3035 = vperm.xlu0 %3034, %v3025
      %v3036 = vpop.permute.xlu0 %3035
      %v3038 = vmul.f32 %v3026, %v3031
      %v3039 = vmul.f32 %v3027, %v3036
      %3040 = vst.msk [vmem:[#allocation3] sm:$0xff] %vm1246, %v3038
      %3041 = vst.msk [vmem:[#allocation3 + $0x8] sm:$0xff] %vm1246, %v3039
      %v3042 = vld [vmem:[#allocation3] sm:$0xff]
      %v3043 = vld [vmem:[#allocation3 + $0x8] sm:$0xff]
      %3044 = vset.pattern.permute.xlu0 1
      %3045 = vperm.xlu0 %3044, %v3024
      %v3046 = vpop.permute.xlu0 %3045
      %3048 = vset.pattern.permute.xlu0 1
      %3049 = vperm.xlu0 %3048, %v3025
      %v3050 = vpop.permute.xlu0 %3049
      %v3052 = vmul.f32 %v3042, %v3046
      %v3053 = vmul.f32 %v3043, %v3050
      %3054 = vst.msk [vmem:[#allocation3] sm:$0xff] %vm2155, %v3052
      %3055 = vst.msk [vmem:[#allocation3 + $0x8] sm:$0xff] %vm2155, %v3053
      %v3056 = vld [vmem:[#allocation3] sm:$0xff]
      %v3057 = vld [vmem:[#allocation3 + $0x8] sm:$0xff]
      %3058 = vset.pattern.permute.xlu0 2
      %3059 = vperm.xlu0 %3058, %v3024
      %v3060 = vpop.permute.xlu0 %3059
      %3062 = vset.pattern.permute.xlu0 2
      %3063 = vperm.xlu0 %3062, %v3025
      %v3064 = vpop.permute.xlu0 %3063
      %v3066 = vmul.f32 %v3056, %v3060
      %v3067 = vmul.f32 %v3057, %v3064
      %3068 = vst.msk [vmem:[#allocation3] sm:$0xff] %vm2573, %v3066
      %3069 = vst.msk [vmem:[#allocation3 + $0x8] sm:$0xff] %vm2573, %v3067
      %v3070 = vld [vmem:[#allocation3] sm:$0xff]
      %v3071 = vld [vmem:[#allocation3 + $0x8] sm:$0xff]
      %3072 = vset.pattern.permute.xlu0 3
      %3073 = vperm.xlu0 %3072, %v3024
      %v3074 = vpop.permute.xlu0 %3073
      %3076 = vset.pattern.permute.xlu0 3
      %3077 = vperm.xlu0 %3076, %v3025
      %v3078 = vpop.permute.xlu0 %3077
      %v3080 = vmul.f32 %v3070, %v3074
      %v3081 = vmul.f32 %v3071, %v3078
      %3082 = vst.msk [vmem:[#allocation3] sm:$0xff] %vm2991, %v3080
      %3083 = vst.msk [vmem:[#allocation3 + $0x8] sm:$0xff] %vm2991, %v3081
      %v3084 = vld [vmem:[#allocation3] sm:$0xff]
      %v3085 = vld [vmem:[#allocation3 + $0x8] sm:$0xff]
      %v3086 = vld [vmem:[#allocation19] sm:$0xff]
      %v3087 = vld [vmem:[#allocation19 + $0x8] sm:$0xff]
      %v3088 = vld [vmem:[#allocation19 + $0x10] sm:$0xff]
      %v3089 = vld [vmem:[#allocation19 + $0x18] sm:$0xff]
      %v3090 = vld [vmem:[%s11] sm:$0x1]
      %v3092 = vlaneseq
      %v3093 = vshrl.u32 %v3092, 7
      %v3094 = vsub.s32 0, %v3093
      %v3095 = vrot.slane %v3090, %v3094
      %v3098 = vsel %vm600, %v3084, 0
      %v3101 = vsel %vm600, %v3085, 0
      %3103 = vmatprep.subr.mxu0 0.0
      %3104 = vmatpush1.msra.mxu0 0.0
      %3105 = vmatprep.subr.mxu0 0.0
      %3106 = vmatpush1.msra.mxu0 0.0
      %3107 = vmatprep.subr.mxu0 0.0
      %3108 = vmatpush1.msra.mxu0 0.0
      %3109 = vmatprep.subr.mxu0 0.0
      %3110 = vmatpush1.msra.mxu0 0.0
      %3111 = vmatprep.subr.mxu0 0.0
      %3112 = vmatpush1.msra.mxu0 0.0
      %3113 = vmatprep.subr.mxu0 0.0
      %3114 = vmatpush1.msra.mxu0 0.0
      %3115 = vmatprep.subr.mxu0 0.0
      %3116 = vmatpush1.msra.mxu0 0.0
      %3117 = vmatprep.subr.mxu0 0.0
      %3118 = vmatpush1.msra.mxu0 0.0
      %3119 = vmatprep.subr.mxu0 0.0
      %3120 = vmatpush1.msra.mxu0 0.0
      %3121 = vmatprep.subr.mxu0 0.0
      %3122 = vmatpush1.msra.mxu0 0.0
      %3123 = vmatprep.subr.mxu0 0.0
      %3124 = vmatpush1.msra.mxu0 0.0
      %3125 = vmatprep.subr.mxu0 0.0
      %3126 = vmatpush1.msra.mxu0 0.0
      %3127 = vmatprep.subr.mxu0 0.0
      %3128 = vmatpush1.msra.mxu0 %v3089
      %3129 = vmatprep.subr.mxu0 0.0
      %3130 = vmatpush1.msra.mxu0 %v3088
      %3131 = vmatprep.subr.mxu0 0.0
      %3132 = vmatpush1.msra.mxu0 %v3087
      %3133 = vmatprep.subr.mxu0 0.0
      %3134 = vmatpush1.msra.mxu0 %v3086
      %3135 = vmatprep.subr.mxu0 0.0
      %3136 = vmatpush2.msra.mxu0 0.0
      %3137 = vmatprep.subr.mxu0 0.0
      %3138 = vmatpush2.msra.mxu0 0.0
      %3139 = vmatprep.subr.mxu0 0.0
      %3140 = vmatpush2.msra.mxu0 0.0
      %3141 = vmatprep.subr.mxu0 0.0
      %3142 = vmatpush2.msra.mxu0 0.0
      %3143 = vmatprep.subr.mxu0 0.0
      %3144 = vmatpush2.msra.mxu0 0.0
      %3145 = vmatprep.subr.mxu0 0.0
      %3146 = vmatpush2.msra.mxu0 0.0
      %3147 = vmatprep.subr.mxu0 0.0
      %3148 = vmatpush2.msra.mxu0 0.0
      %3149 = vmatprep.subr.mxu0 0.0
      %3150 = vmatpush2.msra.mxu0 0.0
      %3151 = vmatprep.subr.mxu0 0.0
      %3152 = vmatpush2.msra.mxu0 0.0
      %3153 = vmatprep.subr.mxu0 0.0
      %3154 = vmatpush2.msra.mxu0 0.0
      %3155 = vmatprep.subr.mxu0 0.0
      %3156 = vmatpush2.msra.mxu0 0.0
      %3157 = vmatprep.subr.mxu0 0.0
      %3158 = vmatpush2.msra.mxu0 0.0
      %3159 = vmatprep.subr.mxu0 0.0
      %3160 = vmatpush2.msra.mxu0 0.0
      %3161 = vmatprep.subr.mxu0 0.0
      %3162 = vmatpush2.msra.mxu0 0.0
      %3163 = vmatprep.subr.mxu0 0.0
      %3164 = vmatpush2.msra.mxu0 0.0
      %3165 = vmatprep.subr.mxu0 0.0
      %3166 = vmatpush2.msra.mxu0 0.0
      %3167 = vmatprep.mubr.f32.mxu0 0.0
      %3168 = vmatmul.mubr.f32.gmra.mxu0 %v3098
      %v3169 = vpop.f32.mrf.mxu0
      %v3170 = vadd.f32 %v3095, %v3169
      %v3171 = vpop.f32.mrf.mxu0
      %3172 = vmatprep.mubr.f32.mxu0 0.0
      %3173 = vmatmul.mubr.f32.gmra.mxu0 %v3101
      %v3174 = vpop.f32.mrf.mxu0
      %v3175 = vadd.f32 %v3095, %v3174
      %v3176 = vpop.f32.mrf.mxu0
      %3177 = vdwg.mxu0
      %v3178 = vcombine.high %v3170, 0.0
      %v3180 = vunpack.c.l.s4 1983009808
      %v3181 = vunpack.c.0.s8 %v3180
      %v3182 = vlaneseq
      %v3183 = vshrl.u32 %v3182, 7
      %v3184 = vsub.s32 %v3181, %v3183
      %v3185 = vrot.slane %v3170, %v3184
      %v3187 = vunpack.c.l.s4 1983009808
      %v3188 = vunpack.c.0.s8 %v3187
      %v3189 = vlaneseq
      %v3190 = vshrl.u32 %v3189, 7
      %v3191 = vsub.s32 %v3188, %v3190
      %v3192 = vrot.slane %v3178, %v3191
      %v3193 = vcombine.high %v3175, 0.0
      %v3195 = vunpack.c.l.s4 1983009808
      %v3196 = vunpack.c.0.s8 %v3195
      %v3197 = vlaneseq
      %v3198 = vshrl.u32 %v3197, 7
      %v3199 = vsub.s32 %v3196, %v3198
      %v3200 = vrot.slane %v3175, %v3199
      %v3202 = vunpack.c.l.s4 1983009808
      %v3203 = vunpack.c.0.s8 %v3202
      %v3204 = vlaneseq
      %v3205 = vshrl.u32 %v3204, 7
      %v3206 = vsub.s32 %v3203, %v3205
      %v3207 = vrot.slane %v3193, %v3206
      %v3208 = vcombine.low %v3185, %v3200
      %v3209 = vcombine.high %v3185, %v3200
      %v3211 = vunpack.c.l.s4 1934713408
      %v3212 = vunpack.c.0.s8 %v3211
      %v3213 = vlaneseq
      %v3214 = vshrl.u32 %v3213, 7
      %v3215 = vsub.s32 %v3212, %v3214
      %v3216 = vrot.slane %v3208, %v3215
      %v3218 = vunpack.c.l.s4 1934713408
      %v3219 = vunpack.c.0.s8 %v3218
      %v3220 = vlaneseq
      %v3221 = vshrl.u32 %v3220, 7
      %v3222 = vsub.s32 %v3219, %v3221
      %v3223 = vrot.slane %v3209, %v3222
      %v3224 = vcombine.low %v3192, %v3207
      %v3225 = vcombine.high %v3192, %v3207
      %v3227 = vunpack.c.l.s4 1934713408
      %v3228 = vunpack.c.0.s8 %v3227
      %v3229 = vlaneseq
      %v3230 = vshrl.u32 %v3229, 7
      %v3231 = vsub.s32 %v3228, %v3230
      %v3232 = vrot.slane %v3224, %v3231
      %v3234 = vunpack.c.l.s4 1934713408
      %v3235 = vunpack.c.0.s8 %v3234
      %v3236 = vlaneseq
      %v3237 = vshrl.u32 %v3236, 7
      %v3238 = vsub.s32 %v3235, %v3237
      %v3239 = vrot.slane %v3225, %v3238
      %v3240 = vcombine.high %v3216, 0.0
      %v3241 = vcombine.high %v3223, 0.0
      %v3242 = vcombine.high %v3232, 0.0
      %v3243 = vcombine.high %v3239, 0.0
      %v3244 = vld [vmem:[#allocation7] sm:$0x3]
      %v3245 = vld [vmem:[#allocation7 + $0x2] sm:$0x3]
      %v3246 = vld [vmem:[#allocation7 + $0x4] sm:$0x3]
      %v3247 = vld [vmem:[#allocation7 + $0x6] sm:$0x3]
      %v3248 = vld [vmem:[#allocation7 + $0x8] sm:$0x3]
      %v3249 = vld [vmem:[#allocation7 + $0xa] sm:$0x3]
      %v3250 = vld [vmem:[#allocation7 + $0xc] sm:$0x3]
      %v3251 = vld [vmem:[#allocation7 + $0xe] sm:$0x3]
      %v3252 = vadd.f32 %v3244, %v3216
      %v3253 = vadd.f32 %v3245, %v3240
      %v3254 = vadd.f32 %v3246, %v3223
      %v3255 = vadd.f32 %v3247, %v3241
      %v3256 = vadd.f32 %v3248, %v3232
      %v3257 = vadd.f32 %v3249, %v3242
      %v3258 = vadd.f32 %v3250, %v3239
      %v3259 = vadd.f32 %v3251, %v3243
      %vm3260 = vcmask 254976
      %v3261 = vsel %vm3260, %v3252, 0.0
      %3262 = vadd.xlane.f32.xlu0 %v3261
      %v3263 = vpop.xlane.xlu0 %3262
      %v3264 = vsel %vm3260, %v3253, 0.0
      %3265 = vadd.xlane.f32.xlu0 %v3264
      %v3266 = vpop.xlane.xlu0 %3265
      %v3267 = vsel %vm3260, %v3254, 0.0
      %3268 = vadd.xlane.f32.xlu0 %v3267
      %v3269 = vpop.xlane.xlu0 %3268
      %v3270 = vsel %vm3260, %v3255, 0.0
      %3271 = vadd.xlane.f32.xlu0 %v3270
      %v3272 = vpop.xlane.xlu0 %3271
      %v3273 = vsel %vm3260, %v3256, 0.0
      %3274 = vadd.xlane.f32.xlu0 %v3273
      %v3275 = vpop.xlane.xlu0 %3274
      %v3276 = vsel %vm3260, %v3257, 0.0
      %3277 = vadd.xlane.f32.xlu0 %v3276
      %v3278 = vpop.xlane.xlu0 %3277
      %v3279 = vsel %vm3260, %v3258, 0.0
      %3280 = vadd.xlane.f32.xlu0 %v3279
      %v3281 = vpop.xlane.xlu0 %3280
      %v3282 = vsel %vm3260, %v3259, 0.0
      %3283 = vadd.xlane.f32.xlu0 %v3282
      %v3284 = vpop.xlane.xlu0 %3283
      %v3285 = vrcp.pop 32.0
      %v3286 = vmul.f32 %v3263, %v3285
      %v3287 = vmul.f32 %v3266, %v3285
      %v3288 = vmul.f32 %v3269, %v3285
      %v3289 = vmul.f32 %v3272, %v3285
      %v3290 = vmul.f32 %v3275, %v3285
      %v3291 = vmul.f32 %v3278, %v3285
      %v3292 = vmul.f32 %v3281, %v3285
      %v3293 = vmul.f32 %v3284, %v3285
      %v3294 = vsub.f32 %v3252, %v3286
      %v3295 = vsub.f32 %v3253, %v3287
      %v3296 = vsub.f32 %v3254, %v3288
      %v3297 = vsub.f32 %v3255, %v3289
      %v3298 = vsub.f32 %v3256, %v3290
      %v3299 = vsub.f32 %v3257, %v3291
      %v3300 = vsub.f32 %v3258, %v3292
      %v3301 = vsub.f32 %v3259, %v3293
      %v3302 = vmul.f32 %v3294, %v3294
      %v3303 = vmul.f32 %v3295, %v3295
      %v3304 = vmul.f32 %v3296, %v3296
      %v3305 = vmul.f32 %v3297, %v3297
      %v3306 = vmul.f32 %v3298, %v3298
      %v3307 = vmul.f32 %v3299, %v3299
      %v3308 = vmul.f32 %v3300, %v3300
      %v3309 = vmul.f32 %v3301, %v3301
      %v3310 = vsel %vm3260, %v3302, 0.0
      %3311 = vadd.xlane.f32.xlu0 %v3310
      %v3312 = vpop.xlane.xlu0 %3311
      %v3313 = vsel %vm3260, %v3303, 0.0
      %3314 = vadd.xlane.f32.xlu0 %v3313
      %v3315 = vpop.xlane.xlu0 %3314
      %v3316 = vsel %vm3260, %v3304, 0.0
      %3317 = vadd.xlane.f32.xlu0 %v3316
      %v3318 = vpop.xlane.xlu0 %3317
      %v3319 = vsel %vm3260, %v3305, 0.0
      %3320 = vadd.xlane.f32.xlu0 %v3319
      %v3321 = vpop.xlane.xlu0 %3320
      %v3322 = vsel %vm3260, %v3306, 0.0
      %3323 = vadd.xlane.f32.xlu0 %v3322
      %v3324 = vpop.xlane.xlu0 %3323
      %v3325 = vsel %vm3260, %v3307, 0.0
      %3326 = vadd.xlane.f32.xlu0 %v3325
      %v3327 = vpop.xlane.xlu0 %3326
      %v3328 = vsel %vm3260, %v3308, 0.0
      %3329 = vadd.xlane.f32.xlu0 %v3328
      %v3330 = vpop.xlane.xlu0 %3329
      %v3331 = vsel %vm3260, %v3309, 0.0
      %3332 = vadd.xlane.f32.xlu0 %v3331
      %v3333 = vpop.xlane.xlu0 %3332
      %v3334 = vmul.f32 %v3312, %v3285
      %v3335 = vmul.f32 %v3315, %v3285
      %v3336 = vmul.f32 %v3318, %v3285
      %v3337 = vmul.f32 %v3321, %v3285
      %v3338 = vmul.f32 %v3324, %v3285
      %v3339 = vmul.f32 %v3327, %v3285
      %v3340 = vmul.f32 %v3330, %v3285
      %v3341 = vmul.f32 %v3333, %v3285
      %v3342 = vadd.f32 %v3334, 1e-05
      %v3343 = vadd.f32 %v3335, 1e-05
      %v3344 = vadd.f32 %v3336, 1e-05
      %v3345 = vadd.f32 %v3337, 1e-05
      %v3346 = vadd.f32 %v3338, 1e-05
      %v3347 = vadd.f32 %v3339, 1e-05
      %v3348 = vadd.f32 %v3340, 1e-05
      %v3349 = vadd.f32 %v3341, 1e-05
      %v3350 = vrsqrt.pop %v3342
      %v3351 = vrsqrt.pop %v3343
      %v3352 = vrsqrt.pop %v3344
      %v3353 = vrsqrt.pop %v3345
      %v3354 = vrsqrt.pop %v3346
      %v3355 = vrsqrt.pop %v3347
      %v3356 = vrsqrt.pop %v3348
      %v3357 = vrsqrt.pop %v3349
      %v3358 = vmul.f32 %v3294, %v3350
      %v3359 = vmul.f32 %v3295, %v3351
      %v3360 = vmul.f32 %v3296, %v3352
      %v3361 = vmul.f32 %v3297, %v3353
      %v3362 = vmul.f32 %v3298, %v3354
      %v3363 = vmul.f32 %v3299, %v3355
      %v3364 = vmul.f32 %v3300, %v3356
      %v3365 = vmul.f32 %v3301, %v3357
      %v3366 = vld [vmem:[%s12] sm:$0x1]
      %v3368 = vlaneseq
      %v3369 = vshrl.u32 %v3368, 7
      %v3370 = vsub.s32 0, %v3369
      %v3371 = vrot.slane %v3366, %v3370
      %v3373 = vmul.f32 %v3358, %v3371
      %v3374 = vmul.f32 %v3359, %v3371
      %v3375 = vmul.f32 %v3360, %v3371
      %v3376 = vmul.f32 %v3361, %v3371
      %v3377 = vmul.f32 %v3362, %v3371
      %v3378 = vmul.f32 %v3363, %v3371
      %v3379 = vmul.f32 %v3364, %v3371
      %v3380 = vmul.f32 %v3365, %v3371
      %v3381 = vld [vmem:[%s13] sm:$0x1]
      %v3383 = vlaneseq
      %v3384 = vshrl.u32 %v3383, 7
      %v3385 = vsub.s32 0, %v3384
      %v3386 = vrot.slane %v3381, %v3385
      %v3388 = vadd.f32 %v3373, %v3386
      %v3389 = vadd.f32 %v3374, %v3386
      %v3390 = vadd.f32 %v3375, %v3386
      %v3391 = vadd.f32 %v3376, %v3386
      %v3392 = vadd.f32 %v3377, %v3386
      %v3393 = vadd.f32 %v3378, %v3386
      %v3394 = vadd.f32 %v3379, %v3386
      %v3395 = vadd.f32 %v3380, %v3386
      %3396 = vst.msk [vmem:[#allocation21] sm:$0x3] %vm3260, %v3388
      %3397 = vst.msk [vmem:[#allocation21 + $0x2] sm:$0x3] %vm3260, %v3389
      %3398 = vst.msk [vmem:[#allocation21 + $0x4] sm:$0x3] %vm3260, %v3390
      %3399 = vst.msk [vmem:[#allocation21 + $0x6] sm:$0x3] %vm3260, %v3391
      %3400 = vst.msk [vmem:[#allocation21 + $0x8] sm:$0x3] %vm3260, %v3392
      %3401 = vst.msk [vmem:[#allocation21 + $0xa] sm:$0x3] %vm3260, %v3393
      %3402 = vst.msk [vmem:[#allocation21 + $0xc] sm:$0x3] %vm3260, %v3394
      %3403 = vst.msk [vmem:[#allocation21 + $0xe] sm:$0x3] %vm3260, %v3395
      %v3404 = vld [vmem:[#allocation6] sm:$0xff]
      %v3405 = vld [vmem:[#allocation6 + $0x8] sm:$0xff]
      %v3406 = vmul.f32 %v3404, 0.25
      %v3407 = vmul.f32 %v3405, 0.25
      %3408 = vst.msk [vmem:[#allocation22] sm:$0xff] %vm1445, %v3406
      %3409 = vst.msk [vmem:[#allocation22 + $0x8] sm:$0xff] %vm1445, %v3407
    $region97: #{tpu_custom_call.1} parent=1 // pred_fallthru
      _
    // Predicated region
    $region98: #{tpu_custom_call.1} parent=1 // pred_check
      _
    $region99: #{tpu_custom_call.1} parent=1 // pred_check_branch
      %3411 = sbr.rel (0) target = $region101
    $region100: #{tpu_custom_call.1} parent=1 // pred_region
      %s3413 = ssub.s32 256, 256
      %3414 = vsyncadd [#allocation9], %s3413
      %s3415 = sshll.u32 [#allocation21], 4
      %s3416 = int_to_ptr.vmem [resolvable:$true] %s3415
      %3421 = dma.vmem_to_hbm [thread:$0]  %s3416, 256, %s14, [#allocation9], 32, 32, 2
    $region101: #{tpu_custom_call.1} parent=1 // pred_fallthru
      _
    // Predicated region
    $region102: #{tpu_custom_call.1} parent=1 // pred_check
      _
    $region103: #{tpu_custom_call.1} parent=1 // pred_check_branch
      %3423 = sbr.rel (0) target = $region105
    $region104: #{tpu_custom_call.1} parent=1 // pred_region
      %s3425 = ssub.s32 256, 256
      %3426 = vsyncadd [#allocation23], %s3425
      %s3427 = sshll.u32 [#allocation22], 4
      %s3428 = int_to_ptr.vmem [resolvable:$true] %s3427
      %3433 = dma.vmem_to_hbm [thread:$0]  %s3428, 256, %s15, [#allocation23], 128, 128, 8
    $region105: #{tpu_custom_call.1} parent=1 // pred_fallthru
      _
    // Predicated region
    $region106: #{tpu_custom_call.1} parent=1 // pred_check
      _
    $region107: #{tpu_custom_call.1} parent=1 // pred_check_branch
      %3435 = sbr.rel (0) target = $region109
    $region108: #{tpu_custom_call.1} parent=1 // pred_region
      %3436 = dma.done [#allocation9], 256
    $region109: #{tpu_custom_call.1} parent=1 // pred_fallthru
      _
    // Predicated region
    $region110: #{tpu_custom_call.1} parent=1 // pred_check
      _
    $region111: #{tpu_custom_call.1} parent=1 // pred_check_branch
      %3438 = sbr.rel (0) target = $region113
    $region112: #{tpu_custom_call.1} parent=1 // pred_region
      %3439 = dma.done [#allocation23], 256
    $region113: #{tpu_custom_call.1} parent=1 // pred_fallthru
      _
    %3440 = vsyncpa [#allocation8], 1
    %3441 = vsyncpa [#allocation11], 1
    %3442 = vsyncpa [#allocation14], 1
    %3443 = vsyncpa [#allocation17], 1
    %3444 = vsyncpa [#allocation20], 1
    %3445 = vsyncpa [#allocation9], 1
    %3446 = vsyncpa [#allocation23], 1

</llo_original>
